<compile_context>
chip_gen: v7x
topology: tpu7x:2x2x1
jax: 0.10.0
libtpu: 0.0.40
codegen_flags: <defaults>
</compile_context>

<pallas_src>
import math

import jax
import jax.numpy as jnp
from jax.experimental import pallas as pl
from jax.experimental.pallas import tpu as pltpu

EPS = 1e-6
GELU_C = math.sqrt(2.0 / math.pi)


def _round_up(v, m):
    return ((v + m - 1) // m) * m


def _norm(v, alpha, bias, d):
    # alpha * (v - mean) / (std_unbiased + eps) + bias, reduced over last dim.
    mean = jnp.mean(v, axis=-1, keepdims=True)
    c = v - mean
    var = jnp.sum(c * c, axis=-1, keepdims=True) * (1.0 / (d - 1))  # torch.std (unbiased)
    inv = 1.0 / (jnp.sqrt(var) + EPS)          # exact: (tile_n,1) column, negligible cost
    return alpha * (c * inv) + bias


def _gelu_tanh(h):
    # dtype-preserving (runs in bf16 inside the kernel on the FFN intermediate)
    return 0.5 * h * (1.0 + jnp.tanh(GELU_C * (h + 0.044715 * h * h * h)))


def l_kernel(x_ref,
             a1_ref, g1_ref,          # Norm1 alpha / bias       (1, D) f32
             w_ref, b_ref,            # self.linear              (D, D) bf16, (1, D) f32
             a2_ref, g2_ref,          # Norm2 alpha / bias       (1, D) f32
             w1_ref, b1_ref,          # ffn.linear_1             (D, F) bf16, (1, F) f32
             w2_ref, b2_ref,          # ffn.linear_2             (F, D) bf16, (1, D) f32
             o_ref,
             acc_ref):                # resident f32 activation tile (TILE_N, D)
    l = pl.program_id(1)

    @pl.when(l == 0)
    def _():
        acc_ref[...] = x_ref[...].astype(jnp.float32)

    x = acc_ref[...]
    d = x.shape[-1]

    # --- sublayer 1: x = x + Linear(Norm1(x))  (dropout -> identity) ---
    x2 = _norm(x, a1_ref[...], g1_ref[...], d)
    y = jnp.dot(x2.astype(jnp.bfloat16), w_ref[...],
                preferred_element_type=jnp.float32) + b_ref[...]
    x = x + y

    # --- sublayer 2: x = x + Linear2(GELU(Linear1(Norm2(x)))) ---
    x2 = _norm(x, a2_ref[...], g2_ref[...], d)
    h = jnp.dot(x2.astype(jnp.bfloat16), w1_ref[...],
                preferred_element_type=jnp.float32)
    h = (h + b1_ref[...]).astype(jnp.bfloat16)     # bf16 elementwise GELU intermediate
    h = _gelu_tanh(h)
    y = jnp.dot(h, w2_ref[...],
                preferred_element_type=jnp.float32) + b2_ref[...]
    x = x + y

    acc_ref[...] = x

    @pl.when(l == pl.num_programs(1) - 1)
    def _():
        o_ref[...] = x.astype(o_ref.dtype)


def _weight_spec(block_shape, index_map, bufs):
    """Weight/bias spec with explicit buffer count; falls back to default."""
    if bufs is None:
        return pl.BlockSpec(block_shape, index_map)
    try:
        return pl.BlockSpec(block_shape, index_map, pipeline_mode=pl.Buffered(bufs))
    except (TypeError, AttributeError):
        return pl.BlockSpec(block_shape, index_map)


def l_forward(x, layer_params_list, tile_n=512):
    """x: (batch, seq, d_model) f32.  layer_params_list: list of per-layer dicts."""
    b, s, d = x.shape
    num_layers = len(layer_params_list)
    f = layer_params_list[0]["w1"].shape[1]

    h2d = x.reshape(b * s, d).astype(jnp.float32)
    n = h2d.shape[0]

    # Row tile: multiple of 8 (sublane); ensure >= 2 row tiles when possible so the
    # "parallel" axis splits across both TensorCores on v7x.
    tile_n = min(tile_n, _round_up(n, 8))
    if pl.cdiv(n, tile_n) < 2 and n > 8:
        tile_n = _round_up(pl.cdiv(n, 2), 8)
    n_pad = pl.cdiv(n, tile_n) * tile_n
    if n_pad != n:
        h2d = jnp.pad(h2d, ((0, n_pad - n), (0, 0)))

    # Stack per-layer params along a leading layer axis (streamed per grid step).
    stk = lambda name: jnp.stack([p[name] for p in layer_params_list], axis=0)
    a1, g1, bb, a2, g2 = stk("a1"), stk("g1"), stk("b"), stk("a2"), stk("g2")
    b1, b2 = stk("b1"), stk("b2")
    w, w1, w2 = stk("w"), stk("w1"), stk("w2")

    args = (h2d, a1, g1, w, bb, a2, g2, w1, b1, w2, b2)

    # single-buffer resident weights when there is only one layer; double-buffer
    # (prefetch next layer) when streaming per layer.
    wbufs = 1 if num_layers == 1 else 2

    row = lambda i, l: (i, 0)
    lay = lambda i, l: (l, 0, 0)

    def build_in_specs(bufs):
        return [
            pl.BlockSpec((tile_n, d), row),           # x
            _weight_spec((None, 1, d), lay, bufs),    # a1
            _weight_spec((None, 1, d), lay, bufs),    # g1
            _weight_spec((None, d, d), lay, bufs),    # w
            _weight_spec((None, 1, d), lay, bufs),    # b
            _weight_spec((None, 1, d), lay, bufs),    # a2
            _weight_spec((None, 1, d), lay, bufs),    # g2
            _weight_spec((None, d, f), lay, bufs),    # w1
            _weight_spec((None, 1, f), lay, bufs),    # b1
            _weight_spec((None, f, d), lay, bufs),    # w2
            _weight_spec((None, 1, d), lay, bufs),    # b2
        ]

    # VMEM budget derived from footprint (+headroom), capped below physical VMEM.
    w_block_bytes = (d * d + 2 * d * f) * 2 + (5 * d + f) * 4       # one layer's weights
    act_bytes = 5 * tile_n * d * 4 + tile_n * f * (4 + 2)           # tiles + FFN temps
    needed = wbufs * w_block_bytes + act_bytes + (2 << 20)
    try:
        cap = pltpu.get_tpu_info().vmem_capacity_bytes
    except Exception:
        cap = 64 << 20                                              # v7x per-TC floor
    vmem_limit = int(max(min(max(2 * needed, 32 << 20), int(0.75 * cap)), needed))

    weight_bytes = sum(int(a.size) * a.dtype.itemsize for a in args[1:])
    cost = pl.CostEstimate(
        flops=2 * n_pad * num_layers * (d * d + 2 * d * f),
        transcendentals=n_pad * num_layers * f,                     # tanh in GELU
        bytes_accessed=2 * n_pad * d * 4 + weight_bytes,
    )

    def run(bufs):
        return pl.pallas_call(
            l_kernel,
            out_shape=jax.ShapeDtypeStruct((n_pad, d), jnp.float32),
            grid=(n_pad // tile_n, num_layers),
            in_specs=build_in_specs(bufs),
            out_specs=pl.BlockSpec((tile_n, d), row),
            scratch_shapes=[pltpu.VMEM((tile_n, d), jnp.float32)],
            compiler_params=pltpu.CompilerParams(
                dimension_semantics=("parallel", "arbitrary"),
                vmem_limit_bytes=vmem_limit),
            cost_estimate=cost,
        )(*args)

    try:
        out = run(wbufs)
    except Exception:
        out = run(None)   # fallback: default buffering if Buffered(k) unsupported

    out = out[:n] if n_pad != n else out
    return out.reshape(b, s, d)


def init_llayer_params(key, d_model, d_ff=1024):
    ks = jax.random.split(key, 6)
    scale = 0.02
    return {
        # Norm params: torch init -> alpha=1, bias=0 (kept (1, D) for broadcast)
        "a1": jnp.ones((1, d_model), jnp.float32),
        "g1": jnp.zeros((1, d_model), jnp.float32),
        "a2": jnp.ones((1, d_model), jnp.float32),
        "g2": jnp.zeros((1, d_model), jnp.float32),
        # self.linear : Linear(d_model, d_model) -- weights stored bf16 for the MXU
        "w": (scale * jax.random.normal(ks[0], (d_model, d_model), jnp.float32)
              ).astype(jnp.bfloat16),
        "b": scale * jax.random.normal(ks[1], (1, d_model), jnp.float32),
        # ffn.linear_1 : Linear(d_model, d_ff)
        "w1": (scale * jax.random.normal(ks[2], (d_model, d_ff), jnp.float32)
               ).astype(jnp.bfloat16),
        "b1": scale * jax.random.normal(ks[3], (1, d_ff), jnp.float32),
        # ffn.linear_2 : Linear(d_ff, d_model)
        "w2": (scale * jax.random.normal(ks[4], (d_ff, d_model), jnp.float32)
               ).astype(jnp.bfloat16),
        "b2": scale * jax.random.normal(ks[5], (1, d_model), jnp.float32),
    }


# ------------------------- pure-JAX reference -------------------------------
def _norm_ref(v, alpha, bias, d):
    mean = jnp.mean(v, axis=-1, keepdims=True)
    c = v - mean
    var = jnp.sum(c * c, axis=-1, keepdims=True) / (d - 1)
    return alpha * c / (jnp.sqrt(var) + EPS) + bias


def _mm_ref(a, b_bf16):
    # Matches kernel numerics: bf16-rounded operands, f32 accumulation.
    return jnp.dot(a.astype(jnp.bfloat16).astype(jnp.float32),
                   b_bf16.astype(jnp.float32))


def l_reference(x, layer_params_list):
    """Pure-JAX reference of L.forward (dropout = identity), kernel numerics."""
    h = x.astype(jnp.float32)
    d = h.shape[-1]
    for p in layer_params_list:
        x2 = _norm_ref(h, p["a1"], p["g1"], d)
        h = h + (_mm_ref(x2, p["w"]) + p["b"])
        x2 = _norm_ref(h, p["a2"], p["g2"], d)
        t = (_mm_ref(x2, p["w1"]) + p["b1"]).astype(jnp.bfloat16)
        t = _gelu_tanh(t)
        ff = jnp.dot(t.astype(jnp.float32), p["w2"].astype(jnp.float32)) + p["b2"]
        h = h + ff
    return h


if __name__ == "__main__":
    # Small but lane-dense test config: d_model multiple of 128; two layers to
    # exercise the fused layer axis and the multi-tile (megacore) row axis.
    batch, seq, d_model, num_layers = 2, 8, 128, 2
    key = jax.random.PRNGKey(0)
    kx, kp = jax.random.split(key)

    x = jax.random.normal(kx, (batch, seq, d_model), jnp.float32)
    layer_keys = jax.random.split(kp, num_layers)
    layer_params = [init_llayer_params(k, d_model) for k in layer_keys]

    out = jax.block_until_ready(l_forward(x, layer_params))

    ref = l_reference(x, layer_params)
    assert out.shape == (batch, seq, d_model)
    # bf16 MXU matmuls + bf16 GELU intermediate -> modest tolerance.
    assert jnp.allclose(out, ref, atol=1e-2, rtol=1e-2), "mismatch vs reference"

    print("KERNEL_OK")
</pallas_src>

<mosaic_0001>
module attributes {stable_mosaic.version = 11 : i64} {
  func.func @l_kernel(%arg0: i32, %arg1: i32, %arg2: memref<8x128xf32, #tpu.memory_space<vmem>>, %arg3: memref<1x1x128xf32, #tpu.memory_space<vmem>>, %arg4: memref<1x1x128xf32, #tpu.memory_space<vmem>>, %arg5: memref<1x128x128xbf16, #tpu.memory_space<vmem>>, %arg6: memref<1x1x128xf32, #tpu.memory_space<vmem>>, %arg7: memref<1x1x128xf32, #tpu.memory_space<vmem>>, %arg8: memref<1x1x128xf32, #tpu.memory_space<vmem>>, %arg9: memref<1x128x1024xbf16, #tpu.memory_space<vmem>>, %arg10: memref<1x1x1024xf32, #tpu.memory_space<vmem>>, %arg11: memref<1x1024x128xbf16, #tpu.memory_space<vmem>>, %arg12: memref<1x1x128xf32, #tpu.memory_space<vmem>>, %arg13: memref<8x128xf32, #tpu.memory_space<vmem>>, %arg14: memref<8x128xf32, #tpu.memory_space<vmem>>) attributes {dimension_semantics = [#tpu.dimension_semantics<parallel>, #tpu.dimension_semantics<arbitrary>], iteration_bounds = array<i64: 2, 2>, scalar_prefetch = 0 : i64, scratch_operands = 1 : i64, tpu.core_type = #tpu.core_type<tc>, window_params = [{transform_indices = @transform_0, window_bounds = array<i64: 8, 128>}, {pipeline_mode = #tpu.pipeline_mode<double_buffered>, transform_indices = @transform_1, window_bounds = array<i64: 1, 1, 128>}, {pipeline_mode = #tpu.pipeline_mode<double_buffered>, transform_indices = @transform_2, window_bounds = array<i64: 1, 1, 128>}, {pipeline_mode = #tpu.pipeline_mode<double_buffered>, transform_indices = @transform_3, window_bounds = array<i64: 1, 128, 128>}, {pipeline_mode = #tpu.pipeline_mode<double_buffered>, transform_indices = @transform_4, window_bounds = array<i64: 1, 1, 128>}, {pipeline_mode = #tpu.pipeline_mode<double_buffered>, transform_indices = @transform_5, window_bounds = array<i64: 1, 1, 128>}, {pipeline_mode = #tpu.pipeline_mode<double_buffered>, transform_indices = @transform_6, window_bounds = array<i64: 1, 1, 128>}, {pipeline_mode = #tpu.pipeline_mode<double_buffered>, transform_indices = @transform_7, window_bounds = array<i64: 1, 128, 1024>}, {pipeline_mode = #tpu.pipeline_mode<double_buffered>, transform_indices = @transform_8, window_bounds = array<i64: 1, 1, 1024>}, {pipeline_mode = #tpu.pipeline_mode<double_buffered>, transform_indices = @transform_9, window_bounds = array<i64: 1, 1024, 128>}, {pipeline_mode = #tpu.pipeline_mode<double_buffered>, transform_indices = @transform_10, window_bounds = array<i64: 1, 1, 128>}, {transform_indices = @transform_11, window_bounds = array<i64: 8, 128>}]} {
    %c0_i32 = arith.constant 0 : i32
    %0 = arith.cmpi eq, %arg1, %c0_i32 : i32
    %1 = arith.extui %0 : i1 to i32
    %c0_i32_0 = arith.constant 0 : i32
    %2 = arith.cmpi ne, %1, %c0_i32_0 : i32
    scf.if %2 {
      %c0_53 = arith.constant 0 : index
      %c0_54 = arith.constant 0 : index
      %99 = vector.load %arg2[%c0_53, %c0_54] : memref<8x128xf32, #tpu.memory_space<vmem>>, vector<8x128xf32>
      %c0_55 = arith.constant 0 : index
      %c0_56 = arith.constant 0 : index
      %100 = vector.load %arg14[%c0_55, %c0_56] : memref<8x128xf32, #tpu.memory_space<vmem>>, vector<8x128xf32>
      tpu.vector_store %arg14[%c0_55, %c0_56], %99 {strides = array<i32>} : memref<8x128xf32, #tpu.memory_space<vmem>>, vector<8x128xf32>,
    } else {
    }
    %c0 = arith.constant 0 : index
    %c0_1 = arith.constant 0 : index
    %3 = vector.load %arg14[%c0, %c0_1] : memref<8x128xf32, #tpu.memory_space<vmem>>, vector<8x128xf32>
    %c0_2 = arith.constant 0 : index
    %c0_3 = arith.constant 0 : index
    %c0_4 = arith.constant 0 : index
    %4 = vector.load %arg3[%c0_2, %c0_3, %c0_4] : memref<1x1x128xf32, #tpu.memory_space<vmem>>, vector<1x1x128xf32>
    %5 = vector.shape_cast %4 : vector<1x1x128xf32> to vector<1x128xf32>
    %c0_5 = arith.constant 0 : index
    %c0_6 = arith.constant 0 : index
    %c0_7 = arith.constant 0 : index
    %6 = vector.load %arg4[%c0_5, %c0_6, %c0_7] : memref<1x1x128xf32, #tpu.memory_space<vmem>>, vector<1x1x128xf32>
    %7 = vector.shape_cast %6 : vector<1x1x128xf32> to vector<1x128xf32>
    %cst = arith.constant dense<0.000000e+00> : vector<8xf32>
    %8 = vector.multi_reduction <add>, %3, %cst [1] : vector<8x128xf32> to vector<8xf32>
    %9 = vector.shape_cast %8 : vector<8xf32> to vector<8x1xf32>
    %cst_8 = arith.constant 1.280000e+02 : f32
    %10 = vector.broadcast %cst_8 : f32 to vector<8x1xf32>
    %11 = arith.divf %9, %10 : vector<8x1xf32>
    %12 = vector.broadcast %11 : vector<8x1xf32> to vector<8x128xf32>
    %13 = arith.subf %3, %12 : vector<8x128xf32>
    %14 = arith.mulf %13, %13 : vector<8x128xf32>
    %cst_9 = arith.constant dense<0.000000e+00> : vector<8xf32>
    %15 = vector.multi_reduction <add>, %14, %cst_9 [1] : vector<8x128xf32> to vector<8xf32>
    %16 = vector.shape_cast %15 : vector<8xf32> to vector<8x1xf32>
    %cst_10 = arith.constant 0.00787401571 : f32
    %17 = vector.broadcast %cst_10 : f32 to vector<8x1xf32>
    %18 = arith.mulf %16, %17 : vector<8x1xf32>
    %19 = math.sqrt %18 : vector<8x1xf32>
    %cst_11 = arith.constant 9.99999997E-7 : f32
    %20 = vector.broadcast %cst_11 : f32 to vector<8x1xf32>
    %21 = arith.addf %19, %20 : vector<8x1xf32>
    %cst_12 = arith.constant 1.000000e+00 : f32
    %22 = vector.broadcast %cst_12 : f32 to vector<8x1xf32>
    %23 = arith.divf %22, %21 : vector<8x1xf32>
    %24 = vector.broadcast %23 : vector<8x1xf32> to vector<8x128xf32>
    %25 = arith.mulf %13, %24 : vector<8x128xf32>
    %26 = vector.broadcast %5 : vector<1x128xf32> to vector<8x128xf32>
    %27 = arith.mulf %26, %25 : vector<8x128xf32>
    %28 = vector.broadcast %7 : vector<1x128xf32> to vector<8x128xf32>
    %29 = arith.addf %27, %28 : vector<8x128xf32>
    %30 = arith.truncf %29 : vector<8x128xf32> to vector<8x128xbf16>
    %c0_13 = arith.constant 0 : index
    %c0_14 = arith.constant 0 : index
    %c0_15 = arith.constant 0 : index
    %31 = vector.load %arg5[%c0_13, %c0_14, %c0_15] : memref<1x128x128xbf16, #tpu.memory_space<vmem>>, vector<1x128x128xbf16>
    %32 = vector.shape_cast %31 : vector<1x128x128xbf16> to vector<128x128xbf16>
    %cst_16 = arith.constant dense<0.000000e+00> : vector<8x128xf32>
    %33 = tpu.matmul %30, %32, %cst_16 {dimension_numbers = #tpu.dot_dimension_numbers<[1], [0], [0], [1], [0, 0, 1, 1], [], []>} : vector<8x128xbf16>, vector<128x128xbf16>, vector<8x128xf32> -> vector<8x128xf32>
    %c0_17 = arith.constant 0 : index
    %c0_18 = arith.constant 0 : index
    %c0_19 = arith.constant 0 : index
    %34 = vector.load %arg6[%c0_17, %c0_18, %c0_19] : memref<1x1x128xf32, #tpu.memory_space<vmem>>, vector<1x1x128xf32>
    %35 = vector.shape_cast %34 : vector<1x1x128xf32> to vector<1x128xf32>
    %36 = vector.broadcast %35 : vector<1x128xf32> to vector<8x128xf32>
    %37 = arith.addf %33, %36 : vector<8x128xf32>
    %38 = arith.addf %3, %37 : vector<8x128xf32>
    %c0_20 = arith.constant 0 : index
    %c0_21 = arith.constant 0 : index
    %c0_22 = arith.constant 0 : index
    %39 = vector.load %arg7[%c0_20, %c0_21, %c0_22] : memref<1x1x128xf32, #tpu.memory_space<vmem>>, vector<1x1x128xf32>
    %40 = vector.shape_cast %39 : vector<1x1x128xf32> to vector<1x128xf32>
    %c0_23 = arith.constant 0 : index
    %c0_24 = arith.constant 0 : index
    %c0_25 = arith.constant 0 : index
    %41 = vector.load %arg8[%c0_23, %c0_24, %c0_25] : memref<1x1x128xf32, #tpu.memory_space<vmem>>, vector<1x1x128xf32>
    %42 = vector.shape_cast %41 : vector<1x1x128xf32> to vector<1x128xf32>
    %cst_26 = arith.constant dense<0.000000e+00> : vector<8xf32>
    %43 = vector.multi_reduction <add>, %38, %cst_26 [1] : vector<8x128xf32> to vector<8xf32>
    %44 = vector.shape_cast %43 : vector<8xf32> to vector<8x1xf32>
    %cst_27 = arith.constant 1.280000e+02 : f32
    %45 = vector.broadcast %cst_27 : f32 to vector<8x1xf32>
    %46 = arith.divf %44, %45 : vector<8x1xf32>
    %47 = vector.broadcast %46 : vector<8x1xf32> to vector<8x128xf32>
    %48 = arith.subf %38, %47 : vector<8x128xf32>
    %49 = arith.mulf %48, %48 : vector<8x128xf32>
    %cst_28 = arith.constant dense<0.000000e+00> : vector<8xf32>
    %50 = vector.multi_reduction <add>, %49, %cst_28 [1] : vector<8x128xf32> to vector<8xf32>
    %51 = vector.shape_cast %50 : vector<8xf32> to vector<8x1xf32>
    %cst_29 = arith.constant 0.00787401571 : f32
    %52 = vector.broadcast %cst_29 : f32 to vector<8x1xf32>
    %53 = arith.mulf %51, %52 : vector<8x1xf32>
    %54 = math.sqrt %53 : vector<8x1xf32>
    %cst_30 = arith.constant 9.99999997E-7 : f32
    %55 = vector.broadcast %cst_30 : f32 to vector<8x1xf32>
    %56 = arith.addf %54, %55 : vector<8x1xf32>
    %cst_31 = arith.constant 1.000000e+00 : f32
    %57 = vector.broadcast %cst_31 : f32 to vector<8x1xf32>
    %58 = arith.divf %57, %56 : vector<8x1xf32>
    %59 = vector.broadcast %58 : vector<8x1xf32> to vector<8x128xf32>
    %60 = arith.mulf %48, %59 : vector<8x128xf32>
    %61 = vector.broadcast %40 : vector<1x128xf32> to vector<8x128xf32>
    %62 = arith.mulf %61, %60 : vector<8x128xf32>
    %63 = vector.broadcast %42 : vector<1x128xf32> to vector<8x128xf32>
    %64 = arith.addf %62, %63 : vector<8x128xf32>
    %65 = arith.truncf %64 : vector<8x128xf32> to vector<8x128xbf16>
    %c0_32 = arith.constant 0 : index
    %c0_33 = arith.constant 0 : index
    %c0_34 = arith.constant 0 : index
    %66 = vector.load %arg9[%c0_32, %c0_33, %c0_34] : memref<1x128x1024xbf16, #tpu.memory_space<vmem>>, vector<1x128x1024xbf16>
    %67 = vector.shape_cast %66 : vector<1x128x1024xbf16> to vector<128x1024xbf16>
    %cst_35 = arith.constant dense<0.000000e+00> : vector<8x1024xf32>
    %68 = tpu.matmul %65, %67, %cst_35 {dimension_numbers = #tpu.dot_dimension_numbers<[1], [0], [0], [1], [0, 0, 1, 1], [], []>} : vector<8x128xbf16>, vector<128x1024xbf16>, vector<8x1024xf32> -> vector<8x1024xf32>
    %c0_36 = arith.constant 0 : index
    %c0_37 = arith.constant 0 : index
    %c0_38 = arith.constant 0 : index
    %69 = vector.load %arg10[%c0_36, %c0_37, %c0_38] : memref<1x1x1024xf32, #tpu.memory_space<vmem>>, vector<1x1x1024xf32>
    %70 = vector.shape_cast %69 : vector<1x1x1024xf32> to vector<1x1024xf32>
    %71 = vector.broadcast %70 : vector<1x1024xf32> to vector<8x1024xf32>
    %72 = arith.addf %68, %71 : vector<8x1024xf32>
    %73 = arith.truncf %72 : vector<8x1024xf32> to vector<8x1024xbf16>
    %cst_39 = arith.constant 5.000000e-01 : bf16
    %74 = vector.broadcast %cst_39 : bf16 to vector<8x1024xbf16>
    %75 = arith.mulf %74, %73 : vector<8x1024xbf16>
    %cst_40 = arith.constant 4.467770e-02 : bf16
    %76 = vector.broadcast %cst_40 : bf16 to vector<8x1024xbf16>
    %77 = arith.mulf %76, %73 : vector<8x1024xbf16>
    %78 = arith.mulf %77, %73 : vector<8x1024xbf16>
    %79 = arith.mulf %78, %73 : vector<8x1024xbf16>
    %80 = arith.addf %73, %79 : vector<8x1024xbf16>
    %cst_41 = arith.constant 7.968750e-01 : bf16
    %81 = vector.broadcast %cst_41 : bf16 to vector<8x1024xbf16>
    %82 = arith.mulf %81, %80 : vector<8x1024xbf16>
    %83 = math.tanh %82 : vector<8x1024xbf16>
    %cst_42 = arith.constant 1.000000e+00 : bf16
    %84 = vector.broadcast %cst_42 : bf16 to vector<8x1024xbf16>
    %85 = arith.addf %84, %83 : vector<8x1024xbf16>
    %86 = arith.mulf %75, %85 : vector<8x1024xbf16>
    %c0_43 = arith.constant 0 : index
    %c0_44 = arith.constant 0 : index
    %c0_45 = arith.constant 0 : index
    %87 = vector.load %arg11[%c0_43, %c0_44, %c0_45] : memref<1x1024x128xbf16, #tpu.memory_space<vmem>>, vector<1x1024x128xbf16>
    %88 = vector.shape_cast %87 : vector<1x1024x128xbf16> to vector<1024x128xbf16>
    %cst_46 = arith.constant dense<0.000000e+00> : vector<8x128xf32>
    %89 = tpu.matmul %86, %88, %cst_46 {dimension_numbers = #tpu.dot_dimension_numbers<[1], [0], [0], [1], [0, 0, 1, 1], [], []>} : vector<8x1024xbf16>, vector<1024x128xbf16>, vector<8x128xf32> -> vector<8x128xf32>
    %c0_47 = arith.constant 0 : index
    %c0_48 = arith.constant 0 : index
    %c0_49 = arith.constant 0 : index
    %90 = vector.load %arg12[%c0_47, %c0_48, %c0_49] : memref<1x1x128xf32, #tpu.memory_space<vmem>>, vector<1x1x128xf32>
    %91 = vector.shape_cast %90 : vector<1x1x128xf32> to vector<1x128xf32>
    %92 = vector.broadcast %91 : vector<1x128xf32> to vector<8x128xf32>
    %93 = arith.addf %89, %92 : vector<8x128xf32>
    %94 = arith.addf %38, %93 : vector<8x128xf32>
    %c0_50 = arith.constant 0 : index
    %c0_51 = arith.constant 0 : index
    %95 = vector.load %arg14[%c0_50, %c0_51] : memref<8x128xf32, #tpu.memory_space<vmem>>, vector<8x128xf32>
    tpu.vector_store %arg14[%c0_50, %c0_51], %94 {strides = array<i32>} : memref<8x128xf32, #tpu.memory_space<vmem>>, vector<8x128xf32>,
    %c1_i32 = arith.constant 1 : i32
    %96 = arith.cmpi eq, %arg1, %c1_i32 : i32
    %97 = arith.extui %96 : i1 to i32
    %c0_i32_52 = arith.constant 0 : i32
    %98 = arith.cmpi ne, %97, %c0_i32_52 : i32
    scf.if %98 {
      %c0_53 = arith.constant 0 : index
      %c0_54 = arith.constant 0 : index
      %99 = vector.load %arg13[%c0_53, %c0_54] : memref<8x128xf32, #tpu.memory_space<vmem>>, vector<8x128xf32>
      tpu.vector_store %arg13[%c0_53, %c0_54], %94 {strides = array<i32>} : memref<8x128xf32, #tpu.memory_space<vmem>>, vector<8x128xf32>,
    } else {
    }
    return
  }
  func.func @transform_0(%arg0: i32, %arg1: i32) -> (i32, i32) {
    %c0_i32 = arith.constant 0 : i32
    %c0_i32_0 = arith.constant 0 : i32
    return %arg0, %c0_i32 : i32, i32
  }
  func.func @transform_1(%arg0: i32, %arg1: i32) -> (i32, i32, i32) {
    %c0_i32 = arith.constant 0 : i32
    %c0_i32_0 = arith.constant 0 : i32
    %c0_i32_1 = arith.constant 0 : i32
    return %arg1, %c0_i32, %c0_i32_0 : i32, i32, i32
  }
  func.func @transform_2(%arg0: i32, %arg1: i32) -> (i32, i32, i32) {
    %c0_i32 = arith.constant 0 : i32
    %c0_i32_0 = arith.constant 0 : i32
    %c0_i32_1 = arith.constant 0 : i32
    return %arg1, %c0_i32, %c0_i32_0 : i32, i32, i32
  }
  func.func @transform_3(%arg0: i32, %arg1: i32) -> (i32, i32, i32) {
    %c0_i32 = arith.constant 0 : i32
    %c0_i32_0 = arith.constant 0 : i32
    %c0_i32_1 = arith.constant 0 : i32
    return %arg1, %c0_i32, %c0_i32_0 : i32, i32, i32
  }
  func.func @transform_4(%arg0: i32, %arg1: i32) -> (i32, i32, i32) {
    %c0_i32 = arith.constant 0 : i32
    %c0_i32_0 = arith.constant 0 : i32
    %c0_i32_1 = arith.constant 0 : i32
    return %arg1, %c0_i32, %c0_i32_0 : i32, i32, i32
  }
  func.func @transform_5(%arg0: i32, %arg1: i32) -> (i32, i32, i32) {
    %c0_i32 = arith.constant 0 : i32
    %c0_i32_0 = arith.constant 0 : i32
    %c0_i32_1 = arith.constant 0 : i32
    return %arg1, %c0_i32, %c0_i32_0 : i32, i32, i32
  }
  func.func @transform_6(%arg0: i32, %arg1: i32) -> (i32, i32, i32) {
    %c0_i32 = arith.constant 0 : i32
    %c0_i32_0 = arith.constant 0 : i32
    %c0_i32_1 = arith.constant 0 : i32
    return %arg1, %c0_i32, %c0_i32_0 : i32, i32, i32
  }
  func.func @transform_7(%arg0: i32, %arg1: i32) -> (i32, i32, i32) {
    %c0_i32 = arith.constant 0 : i32
    %c0_i32_0 = arith.constant 0 : i32
    %c0_i32_1 = arith.constant 0 : i32
    return %arg1, %c0_i32, %c0_i32_0 : i32, i32, i32
  }
  func.func @transform_8(%arg0: i32, %arg1: i32) -> (i32, i32, i32) {
    %c0_i32 = arith.constant 0 : i32
    %c0_i32_0 = arith.constant 0 : i32
    %c0_i32_1 = arith.constant 0 : i32
    return %arg1, %c0_i32, %c0_i32_0 : i32, i32, i32
  }
  func.func @transform_9(%arg0: i32, %arg1: i32) -> (i32, i32, i32) {
    %c0_i32 = arith.constant 0 : i32
    %c0_i32_0 = arith.constant 0 : i32
    %c0_i32_1 = arith.constant 0 : i32
    return %arg1, %c0_i32, %c0_i32_0 : i32, i32, i32
  }
  func.func @transform_10(%arg0: i32, %arg1: i32) -> (i32, i32, i32) {
    %c0_i32 = arith.constant 0 : i32
    %c0_i32_0 = arith.constant 0 : i32
    %c0_i32_1 = arith.constant 0 : i32
    return %arg1, %c0_i32, %c0_i32_0 : i32, i32, i32
  }
  func.func @transform_11(%arg0: i32, %arg1: i32) -> (i32, i32) {
    %c0_i32 = arith.constant 0 : i32
    %c0_i32_0 = arith.constant 0 : i32
    return %arg0, %c0_i32 : i32, i32
  }
}

module attributes {stable_mosaic.version = 11 : i64} {
  func.func @l_kernel(%arg0: i32, %arg1: i32, %arg2: memref<8x128xf32, #tpu.memory_space<vmem>>, %arg3: memref<1x1x128xf32, #tpu.memory_space<vmem>>, %arg4: memref<1x1x128xf32, #tpu.memory_space<vmem>>, %arg5: memref<1x128x128xbf16, #tpu.memory_space<vmem>>, %arg6: memref<1x1x128xf32, #tpu.memory_space<vmem>>, %arg7: memref<1x1x128xf32, #tpu.memory_space<vmem>>, %arg8: memref<1x1x128xf32, #tpu.memory_space<vmem>>, %arg9: memref<1x128x1024xbf16, #tpu.memory_space<vmem>>, %arg10: memref<1x1x1024xf32, #tpu.memory_space<vmem>>, %arg11: memref<1x1024x128xbf16, #tpu.memory_space<vmem>>, %arg12: memref<1x1x128xf32, #tpu.memory_space<vmem>>, %arg13: memref<8x128xf32, #tpu.memory_space<vmem>>, %arg14: memref<8x128xf32, #tpu.memory_space<vmem>>) attributes {dimension_semantics = [#tpu.dimension_semantics<parallel>, #tpu.dimension_semantics<arbitrary>], iteration_bounds = array<i64: 2, 2>, scalar_prefetch = 0 : i64, scratch_operands = 1 : i64, tpu.core_type = #tpu.core_type<tc>, window_params = [{transform_indices = @transform_0, window_bounds = array<i64: 8, 128>}, {transform_indices = @transform_1, window_bounds = array<i64: 1, 1, 128>}, {transform_indices = @transform_2, window_bounds = array<i64: 1, 1, 128>}, {transform_indices = @transform_3, window_bounds = array<i64: 1, 128, 128>}, {transform_indices = @transform_4, window_bounds = array<i64: 1, 1, 128>}, {transform_indices = @transform_5, window_bounds = array<i64: 1, 1, 128>}, {transform_indices = @transform_6, window_bounds = array<i64: 1, 1, 128>}, {transform_indices = @transform_7, window_bounds = array<i64: 1, 128, 1024>}, {transform_indices = @transform_8, window_bounds = array<i64: 1, 1, 1024>}, {transform_indices = @transform_9, window_bounds = array<i64: 1, 1024, 128>}, {transform_indices = @transform_10, window_bounds = array<i64: 1, 1, 128>}, {transform_indices = @transform_11, window_bounds = array<i64: 8, 128>}]} {
    %c0_i32 = arith.constant 0 : i32
    %0 = arith.cmpi eq, %arg1, %c0_i32 : i32
    %1 = arith.extui %0 : i1 to i32
    %c0_i32_0 = arith.constant 0 : i32
    %2 = arith.cmpi ne, %1, %c0_i32_0 : i32
    scf.if %2 {
      %c0_53 = arith.constant 0 : index
      %c0_54 = arith.constant 0 : index
      %99 = vector.load %arg2[%c0_53, %c0_54] : memref<8x128xf32, #tpu.memory_space<vmem>>, vector<8x128xf32>
      %c0_55 = arith.constant 0 : index
      %c0_56 = arith.constant 0 : index
      %100 = vector.load %arg14[%c0_55, %c0_56] : memref<8x128xf32, #tpu.memory_space<vmem>>, vector<8x128xf32>
      tpu.vector_store %arg14[%c0_55, %c0_56], %99 {strides = array<i32>} : memref<8x128xf32, #tpu.memory_space<vmem>>, vector<8x128xf32>,
    } else {
    }
    %c0 = arith.constant 0 : index
    %c0_1 = arith.constant 0 : index
    %3 = vector.load %arg14[%c0, %c0_1] : memref<8x128xf32, #tpu.memory_space<vmem>>, vector<8x128xf32>
    %c0_2 = arith.constant 0 : index
    %c0_3 = arith.constant 0 : index
    %c0_4 = arith.constant 0 : index
    %4 = vector.load %arg3[%c0_2, %c0_3, %c0_4] : memref<1x1x128xf32, #tpu.memory_space<vmem>>, vector<1x1x128xf32>
    %5 = vector.shape_cast %4 : vector<1x1x128xf32> to vector<1x128xf32>
    %c0_5 = arith.constant 0 : index
    %c0_6 = arith.constant 0 : index
    %c0_7 = arith.constant 0 : index
    %6 = vector.load %arg4[%c0_5, %c0_6, %c0_7] : memref<1x1x128xf32, #tpu.memory_space<vmem>>, vector<1x1x128xf32>
    %7 = vector.shape_cast %6 : vector<1x1x128xf32> to vector<1x128xf32>
    %cst = arith.constant dense<0.000000e+00> : vector<8xf32>
    %8 = vector.multi_reduction <add>, %3, %cst [1] : vector<8x128xf32> to vector<8xf32>
    %9 = vector.shape_cast %8 : vector<8xf32> to vector<8x1xf32>
    %cst_8 = arith.constant 1.280000e+02 : f32
    %10 = vector.broadcast %cst_8 : f32 to vector<8x1xf32>
    %11 = arith.divf %9, %10 : vector<8x1xf32>
    %12 = vector.broadcast %11 : vector<8x1xf32> to vector<8x128xf32>
    %13 = arith.subf %3, %12 : vector<8x128xf32>
    %14 = arith.mulf %13, %13 : vector<8x128xf32>
    %cst_9 = arith.constant dense<0.000000e+00> : vector<8xf32>
    %15 = vector.multi_reduction <add>, %14, %cst_9 [1] : vector<8x128xf32> to vector<8xf32>
    %16 = vector.shape_cast %15 : vector<8xf32> to vector<8x1xf32>
    %cst_10 = arith.constant 0.00787401571 : f32
    %17 = vector.broadcast %cst_10 : f32 to vector<8x1xf32>
    %18 = arith.mulf %16, %17 : vector<8x1xf32>
    %19 = math.sqrt %18 : vector<8x1xf32>
    %cst_11 = arith.constant 9.99999997E-7 : f32
    %20 = vector.broadcast %cst_11 : f32 to vector<8x1xf32>
    %21 = arith.addf %19, %20 : vector<8x1xf32>
    %cst_12 = arith.constant 1.000000e+00 : f32
    %22 = vector.broadcast %cst_12 : f32 to vector<8x1xf32>
    %23 = arith.divf %22, %21 : vector<8x1xf32>
    %24 = vector.broadcast %23 : vector<8x1xf32> to vector<8x128xf32>
    %25 = arith.mulf %13, %24 : vector<8x128xf32>
    %26 = vector.broadcast %5 : vector<1x128xf32> to vector<8x128xf32>
    %27 = arith.mulf %26, %25 : vector<8x128xf32>
    %28 = vector.broadcast %7 : vector<1x128xf32> to vector<8x128xf32>
    %29 = arith.addf %27, %28 : vector<8x128xf32>
    %30 = arith.truncf %29 : vector<8x128xf32> to vector<8x128xbf16>
    %c0_13 = arith.constant 0 : index
    %c0_14 = arith.constant 0 : index
    %c0_15 = arith.constant 0 : index
    %31 = vector.load %arg5[%c0_13, %c0_14, %c0_15] : memref<1x128x128xbf16, #tpu.memory_space<vmem>>, vector<1x128x128xbf16>
    %32 = vector.shape_cast %31 : vector<1x128x128xbf16> to vector<128x128xbf16>
    %cst_16 = arith.constant dense<0.000000e+00> : vector<8x128xf32>
    %33 = tpu.matmul %30, %32, %cst_16 {dimension_numbers = #tpu.dot_dimension_numbers<[1], [0], [0], [1], [0, 0, 1, 1], [], []>} : vector<8x128xbf16>, vector<128x128xbf16>, vector<8x128xf32> -> vector<8x128xf32>
    %c0_17 = arith.constant 0 : index
    %c0_18 = arith.constant 0 : index
    %c0_19 = arith.constant 0 : index
    %34 = vector.load %arg6[%c0_17, %c0_18, %c0_19] : memref<1x1x128xf32, #tpu.memory_space<vmem>>, vector<1x1x128xf32>
    %35 = vector.shape_cast %34 : vector<1x1x128xf32> to vector<1x128xf32>
    %36 = vector.broadcast %35 : vector<1x128xf32> to vector<8x128xf32>
    %37 = arith.addf %33, %36 : vector<8x128xf32>
    %38 = arith.addf %3, %37 : vector<8x128xf32>
    %c0_20 = arith.constant 0 : index
    %c0_21 = arith.constant 0 : index
    %c0_22 = arith.constant 0 : index
    %39 = vector.load %arg7[%c0_20, %c0_21, %c0_22] : memref<1x1x128xf32, #tpu.memory_space<vmem>>, vector<1x1x128xf32>
    %40 = vector.shape_cast %39 : vector<1x1x128xf32> to vector<1x128xf32>
    %c0_23 = arith.constant 0 : index
    %c0_24 = arith.constant 0 : index
    %c0_25 = arith.constant 0 : index
    %41 = vector.load %arg8[%c0_23, %c0_24, %c0_25] : memref<1x1x128xf32, #tpu.memory_space<vmem>>, vector<1x1x128xf32>
    %42 = vector.shape_cast %41 : vector<1x1x128xf32> to vector<1x128xf32>
    %cst_26 = arith.constant dense<0.000000e+00> : vector<8xf32>
    %43 = vector.multi_reduction <add>, %38, %cst_26 [1] : vector<8x128xf32> to vector<8xf32>
    %44 = vector.shape_cast %43 : vector<8xf32> to vector<8x1xf32>
    %cst_27 = arith.constant 1.280000e+02 : f32
    %45 = vector.broadcast %cst_27 : f32 to vector<8x1xf32>
    %46 = arith.divf %44, %45 : vector<8x1xf32>
    %47 = vector.broadcast %46 : vector<8x1xf32> to vector<8x128xf32>
    %48 = arith.subf %38, %47 : vector<8x128xf32>
    %49 = arith.mulf %48, %48 : vector<8x128xf32>
    %cst_28 = arith.constant dense<0.000000e+00> : vector<8xf32>
    %50 = vector.multi_reduction <add>, %49, %cst_28 [1] : vector<8x128xf32> to vector<8xf32>
    %51 = vector.shape_cast %50 : vector<8xf32> to vector<8x1xf32>
    %cst_29 = arith.constant 0.00787401571 : f32
    %52 = vector.broadcast %cst_29 : f32 to vector<8x1xf32>
    %53 = arith.mulf %51, %52 : vector<8x1xf32>
    %54 = math.sqrt %53 : vector<8x1xf32>
    %cst_30 = arith.constant 9.99999997E-7 : f32
    %55 = vector.broadcast %cst_30 : f32 to vector<8x1xf32>
    %56 = arith.addf %54, %55 : vector<8x1xf32>
    %cst_31 = arith.constant 1.000000e+00 : f32
    %57 = vector.broadcast %cst_31 : f32 to vector<8x1xf32>
    %58 = arith.divf %57, %56 : vector<8x1xf32>
    %59 = vector.broadcast %58 : vector<8x1xf32> to vector<8x128xf32>
    %60 = arith.mulf %48, %59 : vector<8x128xf32>
    %61 = vector.broadcast %40 : vector<1x128xf32> to vector<8x128xf32>
    %62 = arith.mulf %61, %60 : vector<8x128xf32>
    %63 = vector.broadcast %42 : vector<1x128xf32> to vector<8x128xf32>
    %64 = arith.addf %62, %63 : vector<8x128xf32>
    %65 = arith.truncf %64 : vector<8x128xf32> to vector<8x128xbf16>
    %c0_32 = arith.constant 0 : index
    %c0_33 = arith.constant 0 : index
    %c0_34 = arith.constant 0 : index
    %66 = vector.load %arg9[%c0_32, %c0_33, %c0_34] : memref<1x128x1024xbf16, #tpu.memory_space<vmem>>, vector<1x128x1024xbf16>
    %67 = vector.shape_cast %66 : vector<1x128x1024xbf16> to vector<128x1024xbf16>
    %cst_35 = arith.constant dense<0.000000e+00> : vector<8x1024xf32>
    %68 = tpu.matmul %65, %67, %cst_35 {dimension_numbers = #tpu.dot_dimension_numbers<[1], [0], [0], [1], [0, 0, 1, 1], [], []>} : vector<8x128xbf16>, vector<128x1024xbf16>, vector<8x1024xf32> -> vector<8x1024xf32>
    %c0_36 = arith.constant 0 : index
    %c0_37 = arith.constant 0 : index
    %c0_38 = arith.constant 0 : index
    %69 = vector.load %arg10[%c0_36, %c0_37, %c0_38] : memref<1x1x1024xf32, #tpu.memory_space<vmem>>, vector<1x1x1024xf32>
    %70 = vector.shape_cast %69 : vector<1x1x1024xf32> to vector<1x1024xf32>
    %71 = vector.broadcast %70 : vector<1x1024xf32> to vector<8x1024xf32>
    %72 = arith.addf %68, %71 : vector<8x1024xf32>
    %73 = arith.truncf %72 : vector<8x1024xf32> to vector<8x1024xbf16>
    %cst_39 = arith.constant 5.000000e-01 : bf16
    %74 = vector.broadcast %cst_39 : bf16 to vector<8x1024xbf16>
    %75 = arith.mulf %74, %73 : vector<8x1024xbf16>
    %cst_40 = arith.constant 4.467770e-02 : bf16
    %76 = vector.broadcast %cst_40 : bf16 to vector<8x1024xbf16>
    %77 = arith.mulf %76, %73 : vector<8x1024xbf16>
    %78 = arith.mulf %77, %73 : vector<8x1024xbf16>
    %79 = arith.mulf %78, %73 : vector<8x1024xbf16>
    %80 = arith.addf %73, %79 : vector<8x1024xbf16>
    %cst_41 = arith.constant 7.968750e-01 : bf16
    %81 = vector.broadcast %cst_41 : bf16 to vector<8x1024xbf16>
    %82 = arith.mulf %81, %80 : vector<8x1024xbf16>
    %83 = math.tanh %82 : vector<8x1024xbf16>
    %cst_42 = arith.constant 1.000000e+00 : bf16
    %84 = vector.broadcast %cst_42 : bf16 to vector<8x1024xbf16>
    %85 = arith.addf %84, %83 : vector<8x1024xbf16>
    %86 = arith.mulf %75, %85 : vector<8x1024xbf16>
    %c0_43 = arith.constant 0 : index
    %c0_44 = arith.constant 0 : index
    %c0_45 = arith.constant 0 : index
    %87 = vector.load %arg11[%c0_43, %c0_44, %c0_45] : memref<1x1024x128xbf16, #tpu.memory_space<vmem>>, vector<1x1024x128xbf16>
    %88 = vector.shape_cast %87 : vector<1x1024x128xbf16> to vector<1024x128xbf16>
    %cst_46 = arith.constant dense<0.000000e+00> : vector<8x128xf32>
    %89 = tpu.matmul %86, %88, %cst_46 {dimension_numbers = #tpu.dot_dimension_numbers<[1], [0], [0], [1], [0, 0, 1, 1], [], []>} : vector<8x1024xbf16>, vector<1024x128xbf16>, vector<8x128xf32> -> vector<8x128xf32>
    %c0_47 = arith.constant 0 : index
    %c0_48 = arith.constant 0 : index
    %c0_49 = arith.constant 0 : index
    %90 = vector.load %arg12[%c0_47, %c0_48, %c0_49] : memref<1x1x128xf32, #tpu.memory_space<vmem>>, vector<1x1x128xf32>
    %91 = vector.shape_cast %90 : vector<1x1x128xf32> to vector<1x128xf32>
    %92 = vector.broadcast %91 : vector<1x128xf32> to vector<8x128xf32>
    %93 = arith.addf %89, %92 : vector<8x128xf32>
    %94 = arith.addf %38, %93 : vector<8x128xf32>
    %c0_50 = arith.constant 0 : index
    %c0_51 = arith.constant 0 : index
    %95 = vector.load %arg14[%c0_50, %c0_51] : memref<8x128xf32, #tpu.memory_space<vmem>>, vector<8x128xf32>
    tpu.vector_store %arg14[%c0_50, %c0_51], %94 {strides = array<i32>} : memref<8x128xf32, #tpu.memory_space<vmem>>, vector<8x128xf32>,
    %c1_i32 = arith.constant 1 : i32
    %96 = arith.cmpi eq, %arg1, %c1_i32 : i32
    %97 = arith.extui %96 : i1 to i32
    %c0_i32_52 = arith.constant 0 : i32
    %98 = arith.cmpi ne, %97, %c0_i32_52 : i32
    scf.if %98 {
      %c0_53 = arith.constant 0 : index
      %c0_54 = arith.constant 0 : index
      %99 = vector.load %arg13[%c0_53, %c0_54] : memref<8x128xf32, #tpu.memory_space<vmem>>, vector<8x128xf32>
      tpu.vector_store %arg13[%c0_53, %c0_54], %94 {strides = array<i32>} : memref<8x128xf32, #tpu.memory_space<vmem>>, vector<8x128xf32>,
    } else {
    }
    return
  }
  func.func @transform_0(%arg0: i32, %arg1: i32) -> (i32, i32) {
    %c0_i32 = arith.constant 0 : i32
    %c0_i32_0 = arith.constant 0 : i32
    return %arg0, %c0_i32 : i32, i32
  }
  func.func @transform_1(%arg0: i32, %arg1: i32) -> (i32, i32, i32) {
    %c0_i32 = arith.constant 0 : i32
    %c0_i32_0 = arith.constant 0 : i32
    %c0_i32_1 = arith.constant 0 : i32
    return %arg1, %c0_i32, %c0_i32_0 : i32, i32, i32
  }
  func.func @transform_2(%arg0: i32, %arg1: i32) -> (i32, i32, i32) {
    %c0_i32 = arith.constant 0 : i32
    %c0_i32_0 = arith.constant 0 : i32
    %c0_i32_1 = arith.constant 0 : i32
    return %arg1, %c0_i32, %c0_i32_0 : i32, i32, i32
  }
  func.func @transform_3(%arg0: i32, %arg1: i32) -> (i32, i32, i32) {
    %c0_i32 = arith.constant 0 : i32
    %c0_i32_0 = arith.constant 0 : i32
    %c0_i32_1 = arith.constant 0 : i32
    return %arg1, %c0_i32, %c0_i32_0 : i32, i32, i32
  }
  func.func @transform_4(%arg0: i32, %arg1: i32) -> (i32, i32, i32) {
    %c0_i32 = arith.constant 0 : i32
    %c0_i32_0 = arith.constant 0 : i32
    %c0_i32_1 = arith.constant 0 : i32
    return %arg1, %c0_i32, %c0_i32_0 : i32, i32, i32
  }
  func.func @transform_5(%arg0: i32, %arg1: i32) -> (i32, i32, i32) {
    %c0_i32 = arith.constant 0 : i32
    %c0_i32_0 = arith.constant 0 : i32
    %c0_i32_1 = arith.constant 0 : i32
    return %arg1, %c0_i32, %c0_i32_0 : i32, i32, i32
  }
  func.func @transform_6(%arg0: i32, %arg1: i32) -> (i32, i32, i32) {
    %c0_i32 = arith.constant 0 : i32
    %c0_i32_0 = arith.constant 0 : i32
    %c0_i32_1 = arith.constant 0 : i32
    return %arg1, %c0_i32, %c0_i32_0 : i32, i32, i32
  }
  func.func @transform_7(%arg0: i32, %arg1: i32) -> (i32, i32, i32) {
    %c0_i32 = arith.constant 0 : i32
    %c0_i32_0 = arith.constant 0 : i32
    %c0_i32_1 = arith.constant 0 : i32
    return %arg1, %c0_i32, %c0_i32_0 : i32, i32, i32
  }
  func.func @transform_8(%arg0: i32, %arg1: i32) -> (i32, i32, i32) {
    %c0_i32 = arith.constant 0 : i32
    %c0_i32_0 = arith.constant 0 : i32
    %c0_i32_1 = arith.constant 0 : i32
    return %arg1, %c0_i32, %c0_i32_0 : i32, i32, i32
  }
  func.func @transform_9(%arg0: i32, %arg1: i32) -> (i32, i32, i32) {
    %c0_i32 = arith.constant 0 : i32
    %c0_i32_0 = arith.constant 0 : i32
    %c0_i32_1 = arith.constant 0 : i32
    return %arg1, %c0_i32, %c0_i32_0 : i32, i32, i32
  }
  func.func @transform_10(%arg0: i32, %arg1: i32) -> (i32, i32, i32) {
    %c0_i32 = arith.constant 0 : i32
    %c0_i32_0 = arith.constant 0 : i32
    %c0_i32_1 = arith.constant 0 : i32
    return %arg1, %c0_i32, %c0_i32_0 : i32, i32, i32
  }
  func.func @transform_11(%arg0: i32, %arg1: i32) -> (i32, i32) {
    %c0_i32 = arith.constant 0 : i32
    %c0_i32_0 = arith.constant 0 : i32
    return %arg0, %c0_i32 : i32, i32
  }
}

</mosaic_0001>

<llo_original>
// kernel: tpu_custom_call.1
$region0: #{tpu_custom_call.1}
  #allocation0 [shape = 'u32[]', space=smem, size = 0x4, offset = 0x4, fixed_abs, tag = 'smem constant byte address 0x4 - core index']
  #allocation1 [shape = 'u32[144,128]{1,0:T(1,128)}', space=vmem, size = 0x12000, scoped, tag = 'internal scratch']
  #allocation2 [shape = 'f32[8,128]{1,0:T(8,128)}', space=vmem, size = 0x1000, scoped, tag = 'scratch operand']
  %s0 = inlined_call_operand.hbm [shape: f32[16,128], index: 0, kind: input, shape index: {}]
  %s1 = inlined_call_operand.vmem [shape: f32[2,1,128], index: 1, kind: input, shape index: {}]
  %s2 = inlined_call_operand.vmem [shape: f32[2,1,128], index: 2, kind: input, shape index: {}]
  %s3 = inlined_call_operand.hbm [shape: bf16[2,128,128], index: 3, kind: input, shape index: {}]
  %s4 = inlined_call_operand.vmem [shape: f32[2,1,128], index: 4, kind: input, shape index: {}]
  %s5 = inlined_call_operand.vmem [shape: f32[2,1,128], index: 5, kind: input, shape index: {}]
  %s6 = inlined_call_operand.vmem [shape: f32[2,1,128], index: 6, kind: input, shape index: {}]
  %s7 = inlined_call_operand.hbm [shape: bf16[2,128,1024], index: 7, kind: input, shape index: {}]
  %s8 = inlined_call_operand.vmem [shape: f32[2,1,1024], index: 8, kind: input, shape index: {}]
  %s9 = inlined_call_operand.hbm [shape: bf16[2,1024,128], index: 9, kind: input, shape index: {}]
  %s10 = inlined_call_operand.vmem [shape: f32[2,1,128], index: 10, kind: input, shape index: {}]
  %s11 = inlined_call_operand.hbm [shape: f32[16,128], index: 11, kind: output, shape index: {}]
  %s12 = sld [smem:[#allocation0]]
  $region101: #{tpu_custom_call.1} parent=0
    _
  %s14 = ssub.s32 1, %s12
  %s15 = scalar_select 0, %s14, %s12
  $region1: #{tpu_custom_call.1} parent=0
    #allocation3 [shape = 'u8[8192]{0}', space=vmem, size = 0x2000, scoped, tag = 'input window, operand 0']
    #allocation4 [shape = 's32[2]{0}', space=sflag, size = 0x8, scoped, tag = 'scoped memory for tpu_custom_call.1']
    #allocation5 [shape = 's32[2]{0}', space=sflag, size = 0x8, scoped, tag = 'scoped memory for tpu_custom_call.1']
    #allocation6 [shape = 'u8[65536]{0}', space=vmem, size = 0x10000, scoped, tag = 'input window, operand 3']
    #allocation7 [shape = 's32[2]{0}', space=sflag, size = 0x8, scoped, tag = 'scoped memory for tpu_custom_call.1']
    #allocation8 [shape = 'u8[524288]{0}', space=vmem, size = 0x80000, scoped, tag = 'input window, operand 7']
    #allocation9 [shape = 'u8[524288]{0}', space=vmem, size = 0x80000, scoped, tag = 'input window, operand 9']
    #allocation10 [shape = 's32[2]{0}', space=sflag, size = 0x8, scoped, tag = 'scoped memory for tpu_custom_call.1']
    #allocation11 [shape = 'u8[8192]{0}', space=vmem, size = 0x2000, scoped, tag = 'output window, operand 0']
    %16 = vsyncpa [#allocation4], 0
    %s17 = scalar_lea.sflag [#allocation4], 1
    %18 = vsyncpa %s17, 0
    %19 = vsyncpa [#allocation7], 0
    %s20 = scalar_lea.sflag [#allocation7], 1
    %21 = vsyncpa %s20, 0
    %22 = vsyncpa [#allocation10], 0
    %s23 = scalar_lea.sflag [#allocation10], 1
    %24 = vsyncpa %s23, 0
    %25 = vsyncpa [#allocation5], 0
    %s26 = scalar_lea.sflag [#allocation5], 1
    %27 = vsyncpa %s26, 0
    loop: start=0, step=1, limit=6
    $region2: #{tpu_custom_call.1} parent=1 // loop_pre_header
      _
    $region3: #{tpu_custom_call.1} parent=1 // loop_header
      %s29 = sphi 0, %s33
      %p30 = scmp.ge.s32.totalorder %s29, 6
      %s36 = sphi 0, %s48
      %s37 = sphi 0, %s44
      %s38 = sphi 0, %s36
      %s39 = sphi 0, %s37
      %s40 = sphi 0, %s38
      %s41 = sphi 0, %s39
      %s51 = sphi 0, %s53
      %s54 = sphi 0, %s51
      %s55 = sphi 0, %s54
      %s71 = sphi 0, %s55
      %s77 = sphi 0, %s79
      %s80 = sphi 0, %s77
      %s81 = sphi 0, %s80
      %s97 = sphi 0, %s81
      %s103 = sphi 0, %s105
      %s106 = sphi 0, %s103
      %s107 = sphi 0, %s106
      %s123 = sphi 0, %s107
      %s129 = sphi 0, %s131
      %s132 = sphi 0, %s129
      %s133 = sphi 0, %s132
      %s149 = sphi 0, %s133
      %s155 = sphi 0, %s157
      %s158 = sphi 0, %s155
      %s159 = sphi 0, %s158
      %s175 = sphi 0, %s159
      %s181 = sphi 0, %s183
      %s184 = sphi 0, %s181
      %s185 = sphi 0, %s184
      %s201 = sphi 0, %s185
      %s207 = sphi 0, %s209
      %s210 = sphi 0, %s207
      %s211 = sphi 0, %s210
      %s227 = sphi 0, %s211
      %s233 = sphi 0, %s235
      %s236 = sphi 0, %s233
      %s237 = sphi 0, %s236
      %s253 = sphi 0, %s237
      %s259 = sphi 0, %s261
      %s262 = sphi 0, %s259
      %s263 = sphi 0, %s262
      %s279 = sphi 0, %s263
      %s285 = sphi 0, %s287
      %s288 = sphi 0, %s285
      %s289 = sphi 0, %s288
      %s305 = sphi 0, %s289
      %s311 = sphi 0, %s313
      %s314 = sphi 0, %s311
      %s315 = sphi 0, %s314
      %s331 = sphi 0, %s315
      %s337 = sphi 0, %s339
      %s340 = sphi 0, %s337
      %s341 = sphi 0, %s340
      %s357 = sphi 0, %s341
    $region4: #{tpu_custom_call.1} parent=1 // loop_header_branch
      %32 = sbr.rel (%p30) target = $region8
    $region5: #{tpu_custom_call.1} parent=1 // loop_body
      %s34 = ssub.s32 %s29, 1
      %s35 = ssub.s32 %s29, 2
      %s42 = sadd.s32 1, %s37
      %p43 = scmp.ge.s32.totalorder %s42, 2
      %s44 = scalar_select %p43, 0, %s42
      %s45 = sadd.s32 1, %s36
      %s46 = scalar_select %p43, %s45, %s36
      %p47 = scmp.ge.s32.totalorder %s46, 2
      %s48 = scalar_select %p47, 0, %s46
      %s49 = ssub.s32 %s36, %s48
      %p50 = scmp.eq.s32.totalorder %s49, 0
      %s52 = sadd.s32 %s51, 1
      %s53 = scalar_select %p50, %s51, %s52
      %p56 = pneg %p50
      %p57 = scmp.eq.s32.totalorder %s29, 3
      %p58 = por %p56, %p57
      %p59 = scmp.ne.s32.totalorder %s51, %s54
      %p60 = scmp.eq.s32.totalorder %s29, 0
      %p61 = por %p59, %p60
      %p62 = scmp.ne.s32.totalorder %s51, %s54
      %p63 = scmp.eq.s32.totalorder %s34, 3
      %p64 = por %p62, %p63
      %p65 = scmp.ne.s32.totalorder %s54, %s55
      %p66 = scmp.eq.s32.totalorder %s34, 0
      %p67 = por %p65, %p66
      %p68 = scmp.ne.s32.totalorder %s54, %s55
      %p69 = scmp.eq.s32.totalorder %s35, 3
      %p70 = por %p68, %p69
      %p72 = scmp.ne.s32.totalorder %s55, %s71
      %p73 = scmp.eq.s32.totalorder %s35, 0
      %p74 = por %p72, %p73
      %s75 = ssub.s32 %s37, %s44
      %p76 = scmp.eq.s32.totalorder %s75, 0
      %s78 = sadd.s32 %s77, 1
      %s79 = scalar_select %p76, %s77, %s78
      %p82 = pneg %p76
      %p83 = scmp.eq.s32.totalorder %s29, 3
      %p84 = por %p82, %p83
      %p85 = scmp.ne.s32.totalorder %s77, %s80
      %p86 = scmp.eq.s32.totalorder %s29, 0
      %p87 = por %p85, %p86
      %p88 = scmp.ne.s32.totalorder %s77, %s80
      %p89 = scmp.eq.s32.totalorder %s34, 3
      %p90 = por %p88, %p89
      %p91 = scmp.ne.s32.totalorder %s80, %s81
      %p92 = scmp.eq.s32.totalorder %s34, 0
      %p93 = por %p91, %p92
      %p94 = scmp.ne.s32.totalorder %s80, %s81
      %p95 = scmp.eq.s32.totalorder %s35, 3
      %p96 = por %p94, %p95
      %p98 = scmp.ne.s32.totalorder %s81, %s97
      %p99 = scmp.eq.s32.totalorder %s35, 0
      %p100 = por %p98, %p99
      %s101 = ssub.s32 %s37, %s44
      %p102 = scmp.eq.s32.totalorder %s101, 0
      %s104 = sadd.s32 %s103, 1
      %s105 = scalar_select %p102, %s103, %s104
      %p108 = pneg %p102
      %p109 = scmp.eq.s32.totalorder %s29, 3
      %p110 = por %p108, %p109
      %p111 = scmp.ne.s32.totalorder %s103, %s106
      %p112 = scmp.eq.s32.totalorder %s29, 0
      %p113 = por %p111, %p112
      %p114 = scmp.ne.s32.totalorder %s103, %s106
      %p115 = scmp.eq.s32.totalorder %s34, 3
      %p116 = por %p114, %p115
      %p117 = scmp.ne.s32.totalorder %s106, %s107
      %p118 = scmp.eq.s32.totalorder %s34, 0
      %p119 = por %p117, %p118
      %p120 = scmp.ne.s32.totalorder %s106, %s107
      %p121 = scmp.eq.s32.totalorder %s35, 3
      %p122 = por %p120, %p121
      %p124 = scmp.ne.s32.totalorder %s107, %s123
      %p125 = scmp.eq.s32.totalorder %s35, 0
      %p126 = por %p124, %p125
      %s127 = ssub.s32 %s37, %s44
      %p128 = scmp.eq.s32.totalorder %s127, 0
      %s130 = sadd.s32 %s129, 1
      %s131 = scalar_select %p128, %s129, %s130
      %p134 = pneg %p128
      %p135 = scmp.eq.s32.totalorder %s29, 3
      %p136 = por %p134, %p135
      %p137 = scmp.ne.s32.totalorder %s129, %s132
      %p138 = scmp.eq.s32.totalorder %s29, 0
      %p139 = por %p137, %p138
      %p140 = scmp.ne.s32.totalorder %s129, %s132
      %p141 = scmp.eq.s32.totalorder %s34, 3
      %p142 = por %p140, %p141
      %p143 = scmp.ne.s32.totalorder %s132, %s133
      %p144 = scmp.eq.s32.totalorder %s34, 0
      %p145 = por %p143, %p144
      %p146 = scmp.ne.s32.totalorder %s132, %s133
      %p147 = scmp.eq.s32.totalorder %s35, 3
      %p148 = por %p146, %p147
      %p150 = scmp.ne.s32.totalorder %s133, %s149
      %p151 = scmp.eq.s32.totalorder %s35, 0
      %p152 = por %p150, %p151
      %s153 = ssub.s32 %s37, %s44
      %p154 = scmp.eq.s32.totalorder %s153, 0
      %s156 = sadd.s32 %s155, 1
      %s157 = scalar_select %p154, %s155, %s156
      %p160 = pneg %p154
      %p161 = scmp.eq.s32.totalorder %s29, 3
      %p162 = por %p160, %p161
      %p163 = scmp.ne.s32.totalorder %s155, %s158
      %p164 = scmp.eq.s32.totalorder %s29, 0
      %p165 = por %p163, %p164
      %p166 = scmp.ne.s32.totalorder %s155, %s158
      %p167 = scmp.eq.s32.totalorder %s34, 3
      %p168 = por %p166, %p167
      %p169 = scmp.ne.s32.totalorder %s158, %s159
      %p170 = scmp.eq.s32.totalorder %s34, 0
      %p171 = por %p169, %p170
      %p172 = scmp.ne.s32.totalorder %s158, %s159
      %p173 = scmp.eq.s32.totalorder %s35, 3
      %p174 = por %p172, %p173
      %p176 = scmp.ne.s32.totalorder %s159, %s175
      %p177 = scmp.eq.s32.totalorder %s35, 0
      %p178 = por %p176, %p177
      %s179 = ssub.s32 %s37, %s44
      %p180 = scmp.eq.s32.totalorder %s179, 0
      %s182 = sadd.s32 %s181, 1
      %s183 = scalar_select %p180, %s181, %s182
      %p186 = pneg %p180
      %p187 = scmp.eq.s32.totalorder %s29, 3
      %p188 = por %p186, %p187
      %p189 = scmp.ne.s32.totalorder %s181, %s184
      %p190 = scmp.eq.s32.totalorder %s29, 0
      %p191 = por %p189, %p190
      %p192 = scmp.ne.s32.totalorder %s181, %s184
      %p193 = scmp.eq.s32.totalorder %s34, 3
      %p194 = por %p192, %p193
      %p195 = scmp.ne.s32.totalorder %s184, %s185
      %p196 = scmp.eq.s32.totalorder %s34, 0
      %p197 = por %p195, %p196
      %p198 = scmp.ne.s32.totalorder %s184, %s185
      %p199 = scmp.eq.s32.totalorder %s35, 3
      %p200 = por %p198, %p199
      %p202 = scmp.ne.s32.totalorder %s185, %s201
      %p203 = scmp.eq.s32.totalorder %s35, 0
      %p204 = por %p202, %p203
      %s205 = ssub.s32 %s37, %s44
      %p206 = scmp.eq.s32.totalorder %s205, 0
      %s208 = sadd.s32 %s207, 1
      %s209 = scalar_select %p206, %s207, %s208
      %p212 = pneg %p206
      %p213 = scmp.eq.s32.totalorder %s29, 3
      %p214 = por %p212, %p213
      %p215 = scmp.ne.s32.totalorder %s207, %s210
      %p216 = scmp.eq.s32.totalorder %s29, 0
      %p217 = por %p215, %p216
      %p218 = scmp.ne.s32.totalorder %s207, %s210
      %p219 = scmp.eq.s32.totalorder %s34, 3
      %p220 = por %p218, %p219
      %p221 = scmp.ne.s32.totalorder %s210, %s211
      %p222 = scmp.eq.s32.totalorder %s34, 0
      %p223 = por %p221, %p222
      %p224 = scmp.ne.s32.totalorder %s210, %s211
      %p225 = scmp.eq.s32.totalorder %s35, 3
      %p226 = por %p224, %p225
      %p228 = scmp.ne.s32.totalorder %s211, %s227
      %p229 = scmp.eq.s32.totalorder %s35, 0
      %p230 = por %p228, %p229
      %s231 = ssub.s32 %s37, %s44
      %p232 = scmp.eq.s32.totalorder %s231, 0
      %s234 = sadd.s32 %s233, 1
      %s235 = scalar_select %p232, %s233, %s234
      %p238 = pneg %p232
      %p239 = scmp.eq.s32.totalorder %s29, 3
      %p240 = por %p238, %p239
      %p241 = scmp.ne.s32.totalorder %s233, %s236
      %p242 = scmp.eq.s32.totalorder %s29, 0
      %p243 = por %p241, %p242
      %p244 = scmp.ne.s32.totalorder %s233, %s236
      %p245 = scmp.eq.s32.totalorder %s34, 3
      %p246 = por %p244, %p245
      %p247 = scmp.ne.s32.totalorder %s236, %s237
      %p248 = scmp.eq.s32.totalorder %s34, 0
      %p249 = por %p247, %p248
      %p250 = scmp.ne.s32.totalorder %s236, %s237
      %p251 = scmp.eq.s32.totalorder %s35, 3
      %p252 = por %p250, %p251
      %p254 = scmp.ne.s32.totalorder %s237, %s253
      %p255 = scmp.eq.s32.totalorder %s35, 0
      %p256 = por %p254, %p255
      %s257 = ssub.s32 %s37, %s44
      %p258 = scmp.eq.s32.totalorder %s257, 0
      %s260 = sadd.s32 %s259, 1
      %s261 = scalar_select %p258, %s259, %s260
      %p264 = pneg %p258
      %p265 = scmp.eq.s32.totalorder %s29, 3
      %p266 = por %p264, %p265
      %p267 = scmp.ne.s32.totalorder %s259, %s262
      %p268 = scmp.eq.s32.totalorder %s29, 0
      %p269 = por %p267, %p268
      %p270 = scmp.ne.s32.totalorder %s259, %s262
      %p271 = scmp.eq.s32.totalorder %s34, 3
      %p272 = por %p270, %p271
      %p273 = scmp.ne.s32.totalorder %s262, %s263
      %p274 = scmp.eq.s32.totalorder %s34, 0
      %p275 = por %p273, %p274
      %p276 = scmp.ne.s32.totalorder %s262, %s263
      %p277 = scmp.eq.s32.totalorder %s35, 3
      %p278 = por %p276, %p277
      %p280 = scmp.ne.s32.totalorder %s263, %s279
      %p281 = scmp.eq.s32.totalorder %s35, 0
      %p282 = por %p280, %p281
      %s283 = ssub.s32 %s37, %s44
      %p284 = scmp.eq.s32.totalorder %s283, 0
      %s286 = sadd.s32 %s285, 1
      %s287 = scalar_select %p284, %s285, %s286
      %p290 = pneg %p284
      %p291 = scmp.eq.s32.totalorder %s29, 3
      %p292 = por %p290, %p291
      %p293 = scmp.ne.s32.totalorder %s285, %s288
      %p294 = scmp.eq.s32.totalorder %s29, 0
      %p295 = por %p293, %p294
      %p296 = scmp.ne.s32.totalorder %s285, %s288
      %p297 = scmp.eq.s32.totalorder %s34, 3
      %p298 = por %p296, %p297
      %p299 = scmp.ne.s32.totalorder %s288, %s289
      %p300 = scmp.eq.s32.totalorder %s34, 0
      %p301 = por %p299, %p300
      %p302 = scmp.ne.s32.totalorder %s288, %s289
      %p303 = scmp.eq.s32.totalorder %s35, 3
      %p304 = por %p302, %p303
      %p306 = scmp.ne.s32.totalorder %s289, %s305
      %p307 = scmp.eq.s32.totalorder %s35, 0
      %p308 = por %p306, %p307
      %s309 = ssub.s32 %s37, %s44
      %p310 = scmp.eq.s32.totalorder %s309, 0
      %s312 = sadd.s32 %s311, 1
      %s313 = scalar_select %p310, %s311, %s312
      %p316 = pneg %p310
      %p317 = scmp.eq.s32.totalorder %s29, 3
      %p318 = por %p316, %p317
      %p319 = scmp.ne.s32.totalorder %s311, %s314
      %p320 = scmp.eq.s32.totalorder %s29, 0
      %p321 = por %p319, %p320
      %p322 = scmp.ne.s32.totalorder %s311, %s314
      %p323 = scmp.eq.s32.totalorder %s34, 3
      %p324 = por %p322, %p323
      %p325 = scmp.ne.s32.totalorder %s314, %s315
      %p326 = scmp.eq.s32.totalorder %s34, 0
      %p327 = por %p325, %p326
      %p328 = scmp.ne.s32.totalorder %s314, %s315
      %p329 = scmp.eq.s32.totalorder %s35, 3
      %p330 = por %p328, %p329
      %p332 = scmp.ne.s32.totalorder %s315, %s331
      %p333 = scmp.eq.s32.totalorder %s35, 0
      %p334 = por %p332, %p333
      %s335 = ssub.s32 %s36, %s48
      %p336 = scmp.eq.s32.totalorder %s335, 0
      %s338 = sadd.s32 %s337, 1
      %s339 = scalar_select %p336, %s337, %s338
      %p342 = pneg %p336
      %p343 = scmp.eq.s32.totalorder %s29, 3
      %p344 = por %p342, %p343
      %p345 = scmp.ne.s32.totalorder %s337, %s340
      %p346 = scmp.eq.s32.totalorder %s29, 0
      %p347 = por %p345, %p346
      %p348 = scmp.ne.s32.totalorder %s337, %s340
      %p349 = scmp.eq.s32.totalorder %s34, 3
      %p350 = por %p348, %p349
      %p351 = scmp.ne.s32.totalorder %s340, %s341
      %p352 = scmp.eq.s32.totalorder %s34, 0
      %p353 = por %p351, %p352
      %p354 = scmp.ne.s32.totalorder %s340, %s341
      %p355 = scmp.eq.s32.totalorder %s35, 3
      %p356 = por %p354, %p355
      %p358 = scmp.ne.s32.totalorder %s341, %s357
      %p359 = scmp.eq.s32.totalorder %s35, 0
      %p360 = por %p358, %p359
      %p361 = scmp.le.s32.totalorder 1, %s29
      %p362 = scmp.lt.s32.totalorder %s29, 5
      %p363 = pnand %p361, %p362
      %p364 = pneg %p363
      // Predicated region
      $region9: #{tpu_custom_call.1} parent=5 // pred_check
        _
      $region10: #{tpu_custom_call.1} parent=5 // pred_check_branch
        %366 = sbr.rel (%p363) target = $region12
      $region11: #{tpu_custom_call.1} parent=5 // pred_region
        %s367 = ssub.s32 %s29, 1
      $region12: #{tpu_custom_call.1} parent=5 // pred_fallthru
        _
      %p368 = scmp.lt.s32.totalorder %s29, 4
      // Predicated region
      $region13: #{tpu_custom_call.1} parent=5 // pred_check
        %p369 = pneg %p368
      $region14: #{tpu_custom_call.1} parent=5 // pred_check_branch
        %371 = sbr.rel (%p369) target = $region16
      $region15: #{tpu_custom_call.1} parent=5 // pred_region
        // Predicated region
        $region17: #{tpu_custom_call.1} parent=15 // pred_check
          %p372 = pneg %p61
        $region18: #{tpu_custom_call.1} parent=15 // pred_check_branch
          %374 = sbr.rel (%p372) target = $region20
        $region19: #{tpu_custom_call.1} parent=15 // pred_region
          %s375 = sand.u32 %s51, 1
          %s376 = scalar_lea.sflag [#allocation4], %s375
          %s377 = sand.u32 %s51, 1
          %s378 = smul.addr %s377, 8
          %s379 = scalar_lea.vmem [#allocation3], %s378
          %s381 = ssub.s32 128, 128
          %382 = vsyncadd %s376, %s381
          %s383 = smul.addr %s36, 128
          %s384 = scalar_lea.hbm %s0, %s383
          %s386 = sshll.u32 %s379, 4
          %s387 = int_to_ptr.vmem [resolvable:$true] %s386
          %389 = dma.hbm_to_vmem [thread:$0]  %s384, 128, %s387, %s376
        $region20: #{tpu_custom_call.1} parent=15 // pred_fallthru
          _
        // Predicated region
        $region21: #{tpu_custom_call.1} parent=15 // pred_check
          %p390 = pneg %p87
        $region22: #{tpu_custom_call.1} parent=15 // pred_check_branch
          %392 = sbr.rel (%p390) target = $region24
        $region23: #{tpu_custom_call.1} parent=15 // pred_region
          %p393 = scmp.lt.s32.totalorder %s37, 1
          %s394 = scalar_select %p393, %s37, 1
          %s395 = scalar_lea.vmem %s1, %s394
        $region24: #{tpu_custom_call.1} parent=15 // pred_fallthru
          _
        // Predicated region
        $region25: #{tpu_custom_call.1} parent=15 // pred_check
          %p396 = pneg %p113
        $region26: #{tpu_custom_call.1} parent=15 // pred_check_branch
          %398 = sbr.rel (%p396) target = $region28
        $region27: #{tpu_custom_call.1} parent=15 // pred_region
          %p399 = scmp.lt.s32.totalorder %s37, 1
          %s400 = scalar_select %p399, %s37, 1
          %s401 = scalar_lea.vmem %s2, %s400
        $region28: #{tpu_custom_call.1} parent=15 // pred_fallthru
          _
        // Predicated region
        $region29: #{tpu_custom_call.1} parent=15 // pred_check
          %p402 = pneg %p139
        $region30: #{tpu_custom_call.1} parent=15 // pred_check_branch
          %404 = sbr.rel (%p402) target = $region32
        $region31: #{tpu_custom_call.1} parent=15 // pred_region
          %s405 = sand.u32 %s29, 1
          %s406 = scalar_lea.sflag [#allocation7], %s405
          %s407 = sand.u32 %s129, 1
          %s408 = smul.addr %s407, 64
          %s409 = scalar_lea.vmem [#allocation6], %s408
          %s411 = ssub.s32 1024, 1024
          %412 = vsyncadd %s406, %s411
          %s413 = smul.addr %s37, 16
          %s414 = smul.addr %s413, 64
          %s415 = scalar_lea.hbm %s3, %s414
          %s416 = sshll.u32 %s409, 4
          %s417 = int_to_ptr.vmem [resolvable:$true] %s416
          %422 = dma.hbm_to_vmem [thread:$0]  %s415, 1024, %s417, %s406, 64, 64, 4
        $region32: #{tpu_custom_call.1} parent=15 // pred_fallthru
          _
        // Predicated region
        $region33: #{tpu_custom_call.1} parent=15 // pred_check
          %p423 = pneg %p165
        $region34: #{tpu_custom_call.1} parent=15 // pred_check_branch
          %425 = sbr.rel (%p423) target = $region36
        $region35: #{tpu_custom_call.1} parent=15 // pred_region
          %p426 = scmp.lt.s32.totalorder %s37, 1
          %s427 = scalar_select %p426, %s37, 1
          %s428 = scalar_lea.vmem %s4, %s427
        $region36: #{tpu_custom_call.1} parent=15 // pred_fallthru
          _
        // Predicated region
        $region37: #{tpu_custom_call.1} parent=15 // pred_check
          %p429 = pneg %p191
        $region38: #{tpu_custom_call.1} parent=15 // pred_check_branch
          %431 = sbr.rel (%p429) target = $region40
        $region39: #{tpu_custom_call.1} parent=15 // pred_region
          %p432 = scmp.lt.s32.totalorder %s37, 1
          %s433 = scalar_select %p432, %s37, 1
          %s434 = scalar_lea.vmem %s5, %s433
        $region40: #{tpu_custom_call.1} parent=15 // pred_fallthru
          _
        // Predicated region
        $region41: #{tpu_custom_call.1} parent=15 // pred_check
          %p435 = pneg %p217
        $region42: #{tpu_custom_call.1} parent=15 // pred_check_branch
          %437 = sbr.rel (%p435) target = $region44
        $region43: #{tpu_custom_call.1} parent=15 // pred_region
          %p438 = scmp.lt.s32.totalorder %s37, 1
          %s439 = scalar_select %p438, %s37, 1
          %s440 = scalar_lea.vmem %s6, %s439
        $region44: #{tpu_custom_call.1} parent=15 // pred_fallthru
          _
        // Predicated region
        $region45: #{tpu_custom_call.1} parent=15 // pred_check
          %p441 = pneg %p243
        $region46: #{tpu_custom_call.1} parent=15 // pred_check_branch
          %443 = sbr.rel (%p441) target = $region48
        $region47: #{tpu_custom_call.1} parent=15 // pred_region
          %s444 = sand.u32 %s29, 1
          %s445 = scalar_lea.sflag [#allocation7], %s444
          %s446 = sand.u32 %s233, 1
          %s447 = smul.addr %s446, 512
          %s448 = scalar_lea.vmem [#allocation8], %s447
          %s450 = ssub.s32 8192, 8192
          %451 = vsyncadd %s445, %s450
          %s452 = smul.addr %s37, 128
          %s453 = smul.addr %s452, 64
          %s454 = scalar_lea.hbm %s7, %s453
          %s455 = sshll.u32 %s448, 4
          %s456 = int_to_ptr.vmem [resolvable:$true] %s455
          %461 = dma.hbm_to_vmem [thread:$0]  %s454, 8192, %s456, %s445, 512, 512, 32
        $region48: #{tpu_custom_call.1} parent=15 // pred_fallthru
          _
        // Predicated region
        $region49: #{tpu_custom_call.1} parent=15 // pred_check
          %p462 = pneg %p269
        $region50: #{tpu_custom_call.1} parent=15 // pred_check_branch
          %464 = sbr.rel (%p462) target = $region52
        $region51: #{tpu_custom_call.1} parent=15 // pred_region
          %p465 = scmp.lt.s32.totalorder %s37, 1
          %s466 = scalar_select %p465, %s37, 1
          %s467 = smul.addr %s466, 8
          %s468 = scalar_lea.vmem %s8, %s467
        $region52: #{tpu_custom_call.1} parent=15 // pred_fallthru
          _
        // Predicated region
        $region53: #{tpu_custom_call.1} parent=15 // pred_check
          %p469 = pneg %p295
        $region54: #{tpu_custom_call.1} parent=15 // pred_check_branch
          %471 = sbr.rel (%p469) target = $region56
        $region55: #{tpu_custom_call.1} parent=15 // pred_region
          %s472 = sand.u32 %s285, 1
          %s473 = scalar_lea.sflag [#allocation10], %s472
          %s474 = sand.u32 %s285, 1
          %s475 = smul.addr %s474, 512
          %s476 = scalar_lea.vmem [#allocation9], %s475
          %s478 = ssub.s32 8192, 8192
          %479 = vsyncadd %s473, %s478
          %s480 = smul.addr %s37, 128
          %s481 = smul.addr %s480, 64
          %s482 = scalar_lea.hbm %s9, %s481
          %s483 = sshll.u32 %s476, 4
          %s484 = int_to_ptr.vmem [resolvable:$true] %s483
          %489 = dma.hbm_to_vmem [thread:$0]  %s482, 8192, %s484, %s473, 64, 64, 4
        $region56: #{tpu_custom_call.1} parent=15 // pred_fallthru
          _
        // Predicated region
        $region57: #{tpu_custom_call.1} parent=15 // pred_check
          %p490 = pneg %p321
        $region58: #{tpu_custom_call.1} parent=15 // pred_check_branch
          %492 = sbr.rel (%p490) target = $region60
        $region59: #{tpu_custom_call.1} parent=15 // pred_region
          %p493 = scmp.lt.s32.totalorder %s37, 1
          %s494 = scalar_select %p493, %s37, 1
          %s495 = scalar_lea.vmem %s10, %s494
        $region60: #{tpu_custom_call.1} parent=15 // pred_fallthru
          _
      $region16: #{tpu_custom_call.1} parent=5 // pred_fallthru
        _
      %p496 = scmp.le.s32.totalorder 1, %s29
      %p497 = scmp.lt.s32.totalorder %s29, 5
      %p498 = pnand %p496, %p497
      %p499 = pneg %p498
      // Predicated region
      $region61: #{tpu_custom_call.1} parent=5 // pred_check
        _
      $region62: #{tpu_custom_call.1} parent=5 // pred_check_branch
        %501 = sbr.rel (%p498) target = $region64
      $region63: #{tpu_custom_call.1} parent=5 // pred_region
        %s502 = ssub.s32 %s29, 1
        %s503 = sand.u32 %s54, 1
        %s504 = scalar_lea.sflag [#allocation4], %s503
        %s505 = sand.u32 %s54, 1
        %s506 = smul.addr %s505, 8
        %s507 = scalar_lea.vmem [#allocation3], %s506
        // Predicated region
        $region65: #{tpu_custom_call.1} parent=63 // pred_check
          %p508 = pneg %p67
        $region66: #{tpu_custom_call.1} parent=63 // pred_check_branch
          %510 = sbr.rel (%p508) target = $region68
        $region67: #{tpu_custom_call.1} parent=63 // pred_region
          %511 = dma.done %s504, 128
        $region68: #{tpu_custom_call.1} parent=63 // pred_fallthru
          _
        %s512 = sand.u32 %s34, 1
        %s513 = scalar_lea.sflag [#allocation7], %s512
        %s514 = sand.u32 %s132, 1
        %s515 = smul.addr %s514, 64
        %s516 = scalar_lea.vmem [#allocation6], %s515
        // Predicated region
        $region69: #{tpu_custom_call.1} parent=63 // pred_check
          %p517 = pneg %p145
        $region70: #{tpu_custom_call.1} parent=63 // pred_check_branch
          %519 = sbr.rel (%p517) target = $region72
        $region71: #{tpu_custom_call.1} parent=63 // pred_region
          %520 = dma.done %s513, 1024
        $region72: #{tpu_custom_call.1} parent=63 // pred_fallthru
          _
        %s521 = sand.u32 %s34, 1
        %s522 = scalar_lea.sflag [#allocation7], %s521
        %s523 = sand.u32 %s236, 1
        %s524 = smul.addr %s523, 512
        %s525 = scalar_lea.vmem [#allocation8], %s524
        // Predicated region
        $region73: #{tpu_custom_call.1} parent=63 // pred_check
          %p526 = pneg %p249
        $region74: #{tpu_custom_call.1} parent=63 // pred_check_branch
          %528 = sbr.rel (%p526) target = $region76
        $region75: #{tpu_custom_call.1} parent=63 // pred_region
          %529 = dma.done %s522, 8192
        $region76: #{tpu_custom_call.1} parent=63 // pred_fallthru
          _
        %s530 = sand.u32 %s288, 1
        %s531 = scalar_lea.sflag [#allocation10], %s530
        %s532 = sand.u32 %s288, 1
        %s533 = smul.addr %s532, 512
        %s534 = scalar_lea.vmem [#allocation9], %s533
        // Predicated region
        $region77: #{tpu_custom_call.1} parent=63 // pred_check
          %p535 = pneg %p301
        $region78: #{tpu_custom_call.1} parent=63 // pred_check_branch
          %537 = sbr.rel (%p535) target = $region80
        $region79: #{tpu_custom_call.1} parent=63 // pred_region
          %538 = dma.done %s531, 8192
        $region80: #{tpu_custom_call.1} parent=63 // pred_fallthru
          _
        %s539 = sand.u32 %s54, 1
        %s540 = scalar_lea.sflag [#allocation4], %s539
        %s541 = sand.u32 %s54, 1
        %s542 = smul.addr %s541, 8
        %s543 = scalar_lea.vmem [#allocation3], %s542
        %p544 = pneg %p67
        %p545 = pneg %p64
        %p546 = scmp.lt.s32.totalorder %s39, 1
        %s547 = scalar_select %p546, %s39, 1
        %s548 = scalar_lea.vmem %s1, %s547
        %p549 = pneg %p93
        %p550 = pneg %p90
        %p551 = scmp.lt.s32.totalorder %s39, 1
        %s552 = scalar_select %p551, %s39, 1
        %s553 = scalar_lea.vmem %s2, %s552
        %p554 = pneg %p119
        %p555 = pneg %p116
        %s556 = sand.u32 %s34, 1
        %s557 = scalar_lea.sflag [#allocation7], %s556
        %s558 = sand.u32 %s132, 1
        %s559 = smul.addr %s558, 64
        %s560 = scalar_lea.vmem [#allocation6], %s559
        %p561 = pneg %p145
        %p562 = pneg %p142
        %p563 = scmp.lt.s32.totalorder %s39, 1
        %s564 = scalar_select %p563, %s39, 1
        %s565 = scalar_lea.vmem %s4, %s564
        %p566 = pneg %p171
        %p567 = pneg %p168
        %p568 = scmp.lt.s32.totalorder %s39, 1
        %s569 = scalar_select %p568, %s39, 1
        %s570 = scalar_lea.vmem %s5, %s569
        %p571 = pneg %p197
        %p572 = pneg %p194
        %p573 = scmp.lt.s32.totalorder %s39, 1
        %s574 = scalar_select %p573, %s39, 1
        %s575 = scalar_lea.vmem %s6, %s574
        %p576 = pneg %p223
        %p577 = pneg %p220
        %s578 = sand.u32 %s34, 1
        %s579 = scalar_lea.sflag [#allocation7], %s578
        %s580 = sand.u32 %s236, 1
        %s581 = smul.addr %s580, 512
        %s582 = scalar_lea.vmem [#allocation8], %s581
        %p583 = pneg %p249
        %p584 = pneg %p246
        %p585 = scmp.lt.s32.totalorder %s39, 1
        %s586 = scalar_select %p585, %s39, 1
        %s587 = smul.addr %s586, 8
        %s588 = scalar_lea.vmem %s8, %s587
        %p589 = pneg %p275
        %p590 = pneg %p272
        %s591 = sand.u32 %s288, 1
        %s592 = scalar_lea.sflag [#allocation10], %s591
        %s593 = sand.u32 %s288, 1
        %s594 = smul.addr %s593, 512
        %s595 = scalar_lea.vmem [#allocation9], %s594
        %p596 = pneg %p301
        %p597 = pneg %p298
        %p598 = scmp.lt.s32.totalorder %s39, 1
        %s599 = scalar_select %p598, %s39, 1
        %s600 = scalar_lea.vmem %s10, %s599
        %p601 = pneg %p327
        %p602 = pneg %p324
        %p603 = pneg %p353
        %p604 = pneg %p350
        %s605 = sand.u32 %s340, 1
        %s606 = scalar_lea.sflag [#allocation5], %s605
        %s607 = sand.u32 %s340, 1
        %s608 = smul.addr %s607, 8
        %s609 = scalar_lea.vmem [#allocation11], %s608
        %p610 = scmp.lt.s32.totalorder %s39, 1
        %s611 = scalar_select %p610, %s39, 1
        %s612 = scalar_lea.vmem %s1, %s611
        %p613 = scmp.lt.s32.totalorder %s39, 1
        %s614 = scalar_select %p613, %s39, 1
        %s615 = scalar_lea.vmem %s2, %s614
        %p616 = scmp.lt.s32.totalorder %s39, 1
        %s617 = scalar_select %p616, %s39, 1
        %s618 = scalar_lea.vmem %s4, %s617
        %p619 = scmp.lt.s32.totalorder %s39, 1
        %s620 = scalar_select %p619, %s39, 1
        %s621 = scalar_lea.vmem %s5, %s620
        %p622 = scmp.lt.s32.totalorder %s39, 1
        %s623 = scalar_select %p622, %s39, 1
        %s624 = scalar_lea.vmem %s6, %s623
        %p625 = scmp.lt.s32.totalorder %s39, 1
        %s626 = scalar_select %p625, %s39, 1
        %s627 = smul.addr %s626, 8
        %s628 = scalar_lea.vmem %s8, %s627
        %p629 = scmp.lt.s32.totalorder %s39, 1
        %s630 = scalar_select %p629, %s39, 1
        %s631 = scalar_lea.vmem %s10, %s630
        %p637 = scmp.eq.s32.totalorder %s39, 0
        // Predicated region
        $region81: #{tpu_custom_call.1} parent=63 // pred_check
          %p638 = pneg %p637
        $region82: #{tpu_custom_call.1} parent=63 // pred_check_branch
          %640 = sbr.rel (%p638) target = $region84
        $region83: #{tpu_custom_call.1} parent=63 // pred_region
          %v641 = vld [vmem:[%s507] sm:$0xff]
          %642 = vst [vmem:[#allocation2] sm:$0xff] %v641
        $region84: #{tpu_custom_call.1} parent=63 // pred_fallthru
          _
        %v643 = vld [vmem:[#allocation2] sm:$0xff]
        %v644 = vld [vmem:[%s612] sm:$0x1]
        %v645 = vld [vmem:[%s615] sm:$0x1]
        %646 = vadd.xlane.f32.xlu0 %v643
        %v647 = vpop.xlane.xlu0 %646
        %v648 = vrcp.pop 128.0
        %v649 = vmul.f32 %v647, %v648
        %v650 = vsub.f32 %v643, %v649
        %v651 = vmul.f32 %v650, %v650
        %652 = vadd.xlane.f32.xlu0 %v651
        %v653 = vpop.xlane.xlu0 %652
        %v654 = vmul.f32 %v653, 0.007874016
        %v655 = vrsqrt.pop %v654
        %v656 = vmul.f32 %v654, %v655
        %vm657 = vcmp.eq.f32.partialorder %v654, inf
        %v658 = vsel %vm657, %v654, %v656
        %vm659 = vcmp.eq.f32.partialorder %v654, 0.0
        %v660 = vand.u32 %v654, 2147483648
        %v661 = vsel %vm659, %v660, %v658
        %v662 = vadd.f32 %v661, 1e-06
        %v663 = vrcp.pop %v662
        %v664 = vmul.f32 1.0, %v663
        %v665 = vmul.f32 %v650, %v664
        %v667 = vlaneseq
        %v668 = vshrl.u32 %v667, 7
        %v669 = vsub.s32 0, %v668
        %v670 = vrot.slane %v644, %v669
        %v672 = vmul.f32 %v670, %v665
        %v674 = vlaneseq
        %v675 = vshrl.u32 %v674, 7
        %v676 = vsub.s32 0, %v675
        %v677 = vrot.slane %v645, %v676
        %v679 = vadd.f32 %v672, %v677
        %v680 = vpack.c.bf16 %v679, %v679
        %v681 = vld [vmem:[%s516] sm:$0xf]
        %v682 = vld [vmem:[%s516 + $0x4] sm:$0xf]
        %v683 = vld [vmem:[%s516 + $0x8] sm:$0xf]
        %v684 = vld [vmem:[%s516 + $0xc] sm:$0xf]
        %v685 = vld [vmem:[%s516 + $0x10] sm:$0xf]
        %v686 = vld [vmem:[%s516 + $0x14] sm:$0xf]
        %v687 = vld [vmem:[%s516 + $0x18] sm:$0xf]
        %v688 = vld [vmem:[%s516 + $0x1c] sm:$0xf]
        %v689 = vld [vmem:[%s516 + $0x20] sm:$0xf]
        %v690 = vld [vmem:[%s516 + $0x24] sm:$0xf]
        %v691 = vld [vmem:[%s516 + $0x28] sm:$0xf]
        %v692 = vld [vmem:[%s516 + $0x2c] sm:$0xf]
        %v693 = vld [vmem:[%s516 + $0x30] sm:$0xf]
        %v694 = vld [vmem:[%s516 + $0x34] sm:$0xf]
        %v695 = vld [vmem:[%s516 + $0x38] sm:$0xf]
        %v696 = vld [vmem:[%s516 + $0x3c] sm:$0xf]
        %v697 = vld [vmem:[%s618] sm:$0x1]
        %v699 = vlaneseq
        %v700 = vshrl.u32 %v699, 7
        %v701 = vsub.s32 0, %v700
        %v702 = vrot.slane %v697, %v701
        %v720 = vunpack.c.l.b16 %v681
        %v721 = vunpack.c.l.b16 %v682
        %v722 = vunpack.c.l.b16 %v683
        %v723 = vunpack.c.l.b16 %v684
        %v724 = vunpack.c.l.b16 %v685
        %v725 = vunpack.c.l.b16 %v686
        %v726 = vunpack.c.l.b16 %v687
        %v727 = vunpack.c.l.b16 %v688
        %v728 = vunpack.c.l.b16 %v689
        %v729 = vunpack.c.l.b16 %v690
        %v730 = vunpack.c.l.b16 %v691
        %v731 = vunpack.c.l.b16 %v692
        %v732 = vunpack.c.l.b16 %v693
        %v733 = vunpack.c.l.b16 %v694
        %v734 = vunpack.c.l.b16 %v695
        %v735 = vunpack.c.l.b16 %v696
        %v736 = vpack.c.b16 %v721, %v720
        %v737 = vpack.c.b16 %v723, %v722
        %v738 = vpack.c.b16 %v725, %v724
        %v739 = vpack.c.b16 %v727, %v726
        %v740 = vpack.c.b16 %v729, %v728
        %v741 = vpack.c.b16 %v731, %v730
        %v742 = vpack.c.b16 %v733, %v732
        %v743 = vpack.c.b16 %v735, %v734
        %752 = vmatprep.subr.bf16.mxu0 0
        %753 = vmatpush1.bf16.msra.mxu0 %v736
        %754 = vmatprep.subr.bf16.mxu0 0
        %755 = vmatpush1.bf16.msra.mxu0 %v737
        %756 = vmatprep.subr.bf16.mxu0 0
        %757 = vmatpush1.bf16.msra.mxu0 %v738
        %758 = vmatprep.subr.bf16.mxu0 0
        %759 = vmatpush1.bf16.msra.mxu0 %v739
        %760 = vmatprep.subr.bf16.mxu0 0
        %761 = vmatpush1.bf16.msra.mxu0 %v740
        %762 = vmatprep.subr.bf16.mxu0 0
        %763 = vmatpush1.bf16.msra.mxu0 %v741
        %764 = vmatprep.subr.bf16.mxu0 0
        %765 = vmatpush1.bf16.msra.mxu0 %v742
        %766 = vmatprep.subr.bf16.mxu0 0
        %767 = vmatpush1.bf16.msra.mxu0 %v743
        %768 = vmatprep.subr.bf16.mxu0 0
        %769 = vmatpush1.bf16.msra.mxu0 0
        %770 = vmatprep.subr.bf16.mxu0 0
        %771 = vmatpush1.bf16.msra.mxu0 0
        %772 = vmatprep.subr.bf16.mxu0 0
        %773 = vmatpush1.bf16.msra.mxu0 0
        %774 = vmatprep.subr.bf16.mxu0 0
        %775 = vmatpush1.bf16.msra.mxu0 0
        %776 = vmatprep.subr.bf16.mxu0 0
        %777 = vmatpush1.bf16.msra.mxu0 0
        %778 = vmatprep.subr.bf16.mxu0 0
        %779 = vmatpush1.bf16.msra.mxu0 0
        %780 = vmatprep.subr.bf16.mxu0 0
        %781 = vmatpush1.bf16.msra.mxu0 0
        %782 = vmatprep.subr.bf16.mxu0 0
        %783 = vmatpush1.bf16.msra.mxu0 0
        %784 = vmatprep.mubr.bf16.mxu0 0
        %785 = vmatmul.mubr.bf16.gmra.mrb[0].mxu0 %v680
        %v786 = vpop.f32.mrb[0].mxu0
        %v787 = vadd.f32 %v702, %v786
        %v788 = vpop.f32.mrb[0].mxu0
        %v789 = vpop.f32.mrb[0].mxu0
        %v790 = vpop.f32.mrb[0].mxu0
        %791 = vdwg.mxu0
        %v792 = vadd.f32 %v643, %v787
        %v793 = vld [vmem:[%s621] sm:$0x1]
        %v794 = vld [vmem:[%s624] sm:$0x1]
        %795 = vadd.xlane.f32.xlu0 %v792
        %v796 = vpop.xlane.xlu0 %795
        %v797 = vmul.f32 %v796, %v648
        %v798 = vsub.f32 %v792, %v797
        %v799 = vmul.f32 %v798, %v798
        %800 = vadd.xlane.f32.xlu0 %v799
        %v801 = vpop.xlane.xlu0 %800
        %v802 = vmul.f32 %v801, 0.007874016
        %v803 = vrsqrt.pop %v802
        %v804 = vmul.f32 %v802, %v803
        %vm805 = vcmp.eq.f32.partialorder %v802, inf
        %v806 = vsel %vm805, %v802, %v804
        %vm807 = vcmp.eq.f32.partialorder %v802, 0.0
        %v808 = vand.u32 %v802, 2147483648
        %v809 = vsel %vm807, %v808, %v806
        %v810 = vadd.f32 %v809, 1e-06
        %v811 = vrcp.pop %v810
        %v812 = vmul.f32 1.0, %v811
        %v813 = vmul.f32 %v798, %v812
        %v815 = vlaneseq
        %v816 = vshrl.u32 %v815, 7
        %v817 = vsub.s32 0, %v816
        %v818 = vrot.slane %v793, %v817
        %v820 = vmul.f32 %v818, %v813
        %v822 = vlaneseq
        %v823 = vshrl.u32 %v822, 7
        %v824 = vsub.s32 0, %v823
        %v825 = vrot.slane %v794, %v824
        %v827 = vadd.f32 %v820, %v825
        %v828 = vpack.c.bf16 %v827, %v827
        %v829 = vld [vmem:[%s525] sm:$0xff]
        %v830 = vld [vmem:[%s525 + $0x8] sm:$0xff]
        %v831 = vld [vmem:[%s525 + $0x10] sm:$0xff]
        %v832 = vld [vmem:[%s525 + $0x18] sm:$0xff]
        %v833 = vld [vmem:[%s525 + $0x20] sm:$0xff]
        %v834 = vld [vmem:[%s525 + $0x28] sm:$0xff]
        %v835 = vld [vmem:[%s525 + $0x30] sm:$0xff]
        %v836 = vld [vmem:[%s525 + $0x38] sm:$0xff]
        %v837 = vld [vmem:[%s525 + $0x40] sm:$0xff]
        %v838 = vld [vmem:[%s525 + $0x48] sm:$0xff]
        %v839 = vld [vmem:[%s525 + $0x50] sm:$0xff]
        %v840 = vld [vmem:[%s525 + $0x58] sm:$0xff]
        %v841 = vld [vmem:[%s525 + $0x60] sm:$0xff]
        %v842 = vld [vmem:[%s525 + $0x68] sm:$0xff]
        %v843 = vld [vmem:[%s525 + $0x70] sm:$0xff]
        %v844 = vld [vmem:[%s525 + $0x78] sm:$0xff]
        %v845 = vld [vmem:[%s525 + $0x80] sm:$0xff]
        %v846 = vld [vmem:[%s525 + $0x88] sm:$0xff]
        %v847 = vld [vmem:[%s525 + $0x90] sm:$0xff]
        %v848 = vld [vmem:[%s525 + $0x98] sm:$0xff]
        %v849 = vld [vmem:[%s525 + $0xa0] sm:$0xff]
        %v850 = vld [vmem:[%s525 + $0xa8] sm:$0xff]
        %v851 = vld [vmem:[%s525 + $0xb0] sm:$0xff]
        %v852 = vld [vmem:[%s525 + $0xb8] sm:$0xff]
        %v853 = vld [vmem:[%s525 + $0xc0] sm:$0xff]
        %v854 = vld [vmem:[%s525 + $0xc8] sm:$0xff]
        %v855 = vld [vmem:[%s525 + $0xd0] sm:$0xff]
        %v856 = vld [vmem:[%s525 + $0xd8] sm:$0xff]
        %v857 = vld [vmem:[%s525 + $0xe0] sm:$0xff]
        %v858 = vld [vmem:[%s525 + $0xe8] sm:$0xff]
        %v859 = vld [vmem:[%s525 + $0xf0] sm:$0xff]
        %v860 = vld [vmem:[%s525 + $0xf8] sm:$0xff]
        %v861 = vld [vmem:[%s525 + $0x100] sm:$0xff]
        %v862 = vld [vmem:[%s525 + $0x108] sm:$0xff]
        %v863 = vld [vmem:[%s525 + $0x110] sm:$0xff]
        %v864 = vld [vmem:[%s525 + $0x118] sm:$0xff]
        %v865 = vld [vmem:[%s525 + $0x120] sm:$0xff]
        %v866 = vld [vmem:[%s525 + $0x128] sm:$0xff]
        %v867 = vld [vmem:[%s525 + $0x130] sm:$0xff]
        %v868 = vld [vmem:[%s525 + $0x138] sm:$0xff]
        %v869 = vld [vmem:[%s525 + $0x140] sm:$0xff]
        %v870 = vld [vmem:[%s525 + $0x148] sm:$0xff]
        %v871 = vld [vmem:[%s525 + $0x150] sm:$0xff]
        %v872 = vld [vmem:[%s525 + $0x158] sm:$0xff]
        %v873 = vld [vmem:[%s525 + $0x160] sm:$0xff]
        %v874 = vld [vmem:[%s525 + $0x168] sm:$0xff]
        %v875 = vld [vmem:[%s525 + $0x170] sm:$0xff]
        %v876 = vld [vmem:[%s525 + $0x178] sm:$0xff]
        %v877 = vld [vmem:[%s525 + $0x180] sm:$0xff]
        %v878 = vld [vmem:[%s525 + $0x188] sm:$0xff]
        %v879 = vld [vmem:[%s525 + $0x190] sm:$0xff]
        %v880 = vld [vmem:[%s525 + $0x198] sm:$0xff]
        %v881 = vld [vmem:[%s525 + $0x1a0] sm:$0xff]
        %v882 = vld [vmem:[%s525 + $0x1a8] sm:$0xff]
        %v883 = vld [vmem:[%s525 + $0x1b0] sm:$0xff]
        %v884 = vld [vmem:[%s525 + $0x1b8] sm:$0xff]
        %v885 = vld [vmem:[%s525 + $0x1c0] sm:$0xff]
        %v886 = vld [vmem:[%s525 + $0x1c8] sm:$0xff]
        %v887 = vld [vmem:[%s525 + $0x1d0] sm:$0xff]
        %v888 = vld [vmem:[%s525 + $0x1d8] sm:$0xff]
        %v889 = vld [vmem:[%s525 + $0x1e0] sm:$0xff]
        %v890 = vld [vmem:[%s525 + $0x1e8] sm:$0xff]
        %v891 = vld [vmem:[%s525 + $0x1f0] sm:$0xff]
        %v892 = vld [vmem:[%s525 + $0x1f8] sm:$0xff]
        %v893 = vld [vmem:[%s628] sm:$0xff]
        %v895 = vlaneseq
        %v896 = vshrl.u32 %v895, 7
        %v897 = vsub.s32 0, %v896
        %v898 = vrot.slane %v893, %v897
        %v899 = vlaneseq
        %v900 = vshrl.u32 %v899, 7
        %v901 = vsub.s32 1, %v900
        %v902 = vrot.slane %v893, %v901
        %v903 = vlaneseq
        %v904 = vshrl.u32 %v903, 7
        %v905 = vsub.s32 2, %v904
        %v906 = vrot.slane %v893, %v905
        %v907 = vlaneseq
        %v908 = vshrl.u32 %v907, 7
        %v909 = vsub.s32 3, %v908
        %v910 = vrot.slane %v893, %v909
        %v911 = vlaneseq
        %v912 = vshrl.u32 %v911, 7
        %v913 = vsub.s32 4, %v912
        %v914 = vrot.slane %v893, %v913
        %v915 = vlaneseq
        %v916 = vshrl.u32 %v915, 7
        %v917 = vsub.s32 5, %v916
        %v918 = vrot.slane %v893, %v917
        %v919 = vlaneseq
        %v920 = vshrl.u32 %v919, 7
        %v921 = vsub.s32 6, %v920
        %v922 = vrot.slane %v893, %v921
        %v923 = vlaneseq
        %v924 = vshrl.u32 %v923, 7
        %v925 = vsub.s32 7, %v924
        %v926 = vrot.slane %v893, %v925
        %v999 = vunpack.c.l.b16 %v829
        %v1000 = vunpack.c.h.b16 %v829
        %v1001 = vunpack.c.l.b16 %v830
        %v1002 = vunpack.c.h.b16 %v830
        %v1003 = vunpack.c.l.b16 %v831
        %v1004 = vunpack.c.h.b16 %v831
        %v1005 = vunpack.c.l.b16 %v832
        %v1006 = vunpack.c.h.b16 %v832
        %v1007 = vunpack.c.l.b16 %v833
        %v1008 = vunpack.c.h.b16 %v833
        %v1009 = vunpack.c.l.b16 %v834
        %v1010 = vunpack.c.h.b16 %v834
        %v1011 = vunpack.c.l.b16 %v835
        %v1012 = vunpack.c.h.b16 %v835
        %v1013 = vunpack.c.l.b16 %v836
        %v1014 = vunpack.c.h.b16 %v836
        %v1015 = vunpack.c.l.b16 %v837
        %v1016 = vunpack.c.h.b16 %v837
        %v1017 = vunpack.c.l.b16 %v838
        %v1018 = vunpack.c.h.b16 %v838
        %v1019 = vunpack.c.l.b16 %v839
        %v1020 = vunpack.c.h.b16 %v839
        %v1021 = vunpack.c.l.b16 %v840
        %v1022 = vunpack.c.h.b16 %v840
        %v1023 = vunpack.c.l.b16 %v841
        %v1024 = vunpack.c.h.b16 %v841
        %v1025 = vunpack.c.l.b16 %v842
        %v1026 = vunpack.c.h.b16 %v842
        %v1027 = vunpack.c.l.b16 %v843
        %v1028 = vunpack.c.h.b16 %v843
        %v1029 = vunpack.c.l.b16 %v844
        %v1030 = vunpack.c.h.b16 %v844
        %v1031 = vunpack.c.l.b16 %v845
        %v1032 = vunpack.c.h.b16 %v845
        %v1033 = vunpack.c.l.b16 %v846
        %v1034 = vunpack.c.h.b16 %v846
        %v1035 = vunpack.c.l.b16 %v847
        %v1036 = vunpack.c.h.b16 %v847
        %v1037 = vunpack.c.l.b16 %v848
        %v1038 = vunpack.c.h.b16 %v848
        %v1039 = vunpack.c.l.b16 %v849
        %v1040 = vunpack.c.h.b16 %v849
        %v1041 = vunpack.c.l.b16 %v850
        %v1042 = vunpack.c.h.b16 %v850
        %v1043 = vunpack.c.l.b16 %v851
        %v1044 = vunpack.c.h.b16 %v851
        %v1045 = vunpack.c.l.b16 %v852
        %v1046 = vunpack.c.h.b16 %v852
        %v1047 = vunpack.c.l.b16 %v853
        %v1048 = vunpack.c.h.b16 %v853
        %v1049 = vunpack.c.l.b16 %v854
        %v1050 = vunpack.c.h.b16 %v854
        %v1051 = vunpack.c.l.b16 %v855
        %v1052 = vunpack.c.h.b16 %v855
        %v1053 = vunpack.c.l.b16 %v856
        %v1054 = vunpack.c.h.b16 %v856
        %v1055 = vunpack.c.l.b16 %v857
        %v1056 = vunpack.c.h.b16 %v857
        %v1057 = vunpack.c.l.b16 %v858
        %v1058 = vunpack.c.h.b16 %v858
        %v1059 = vunpack.c.l.b16 %v859
        %v1060 = vunpack.c.h.b16 %v859
        %v1061 = vunpack.c.l.b16 %v860
        %v1062 = vunpack.c.h.b16 %v860
        %v1063 = vunpack.c.l.b16 %v861
        %v1064 = vunpack.c.h.b16 %v861
        %v1065 = vunpack.c.l.b16 %v862
        %v1066 = vunpack.c.h.b16 %v862
        %v1067 = vunpack.c.l.b16 %v863
        %v1068 = vunpack.c.h.b16 %v863
        %v1069 = vunpack.c.l.b16 %v864
        %v1070 = vunpack.c.h.b16 %v864
        %v1071 = vunpack.c.l.b16 %v865
        %v1072 = vunpack.c.h.b16 %v865
        %v1073 = vunpack.c.l.b16 %v866
        %v1074 = vunpack.c.h.b16 %v866
        %v1075 = vunpack.c.l.b16 %v867
        %v1076 = vunpack.c.h.b16 %v867
        %v1077 = vunpack.c.l.b16 %v868
        %v1078 = vunpack.c.h.b16 %v868
        %v1079 = vunpack.c.l.b16 %v869
        %v1080 = vunpack.c.h.b16 %v869
        %v1081 = vunpack.c.l.b16 %v870
        %v1082 = vunpack.c.h.b16 %v870
        %v1083 = vunpack.c.l.b16 %v871
        %v1084 = vunpack.c.h.b16 %v871
        %v1085 = vunpack.c.l.b16 %v872
        %v1086 = vunpack.c.h.b16 %v872
        %v1087 = vunpack.c.l.b16 %v873
        %v1088 = vunpack.c.h.b16 %v873
        %v1089 = vunpack.c.l.b16 %v874
        %v1090 = vunpack.c.h.b16 %v874
        %v1091 = vunpack.c.l.b16 %v875
        %v1092 = vunpack.c.h.b16 %v875
        %v1093 = vunpack.c.l.b16 %v876
        %v1094 = vunpack.c.h.b16 %v876
        %v1095 = vunpack.c.l.b16 %v877
        %v1096 = vunpack.c.h.b16 %v877
        %v1097 = vunpack.c.l.b16 %v878
        %v1098 = vunpack.c.h.b16 %v878
        %v1099 = vunpack.c.l.b16 %v879
        %v1100 = vunpack.c.h.b16 %v879
        %v1101 = vunpack.c.l.b16 %v880
        %v1102 = vunpack.c.h.b16 %v880
        %v1103 = vunpack.c.l.b16 %v881
        %v1104 = vunpack.c.h.b16 %v881
        %v1105 = vunpack.c.l.b16 %v882
        %v1106 = vunpack.c.h.b16 %v882
        %v1107 = vunpack.c.l.b16 %v883
        %v1108 = vunpack.c.h.b16 %v883
        %v1109 = vunpack.c.l.b16 %v884
        %v1110 = vunpack.c.h.b16 %v884
        %v1111 = vunpack.c.l.b16 %v885
        %v1112 = vunpack.c.h.b16 %v885
        %v1113 = vunpack.c.l.b16 %v886
        %v1114 = vunpack.c.h.b16 %v886
        %v1115 = vunpack.c.l.b16 %v887
        %v1116 = vunpack.c.h.b16 %v887
        %v1117 = vunpack.c.l.b16 %v888
        %v1118 = vunpack.c.h.b16 %v888
        %v1119 = vunpack.c.l.b16 %v889
        %v1120 = vunpack.c.h.b16 %v889
        %v1121 = vunpack.c.l.b16 %v890
        %v1122 = vunpack.c.h.b16 %v890
        %v1123 = vunpack.c.l.b16 %v891
        %v1124 = vunpack.c.h.b16 %v891
        %v1125 = vunpack.c.l.b16 %v892
        %v1126 = vunpack.c.h.b16 %v892
        %v1127 = vpack.c.b16 %v1007, %v999
        %v1128 = vpack.c.b16 %v1008, %v1000
        %v1129 = vpack.c.b16 %v1009, %v1001
        %v1130 = vpack.c.b16 %v1010, %v1002
        %v1131 = vpack.c.b16 %v1011, %v1003
        %v1132 = vpack.c.b16 %v1012, %v1004
        %v1133 = vpack.c.b16 %v1013, %v1005
        %v1134 = vpack.c.b16 %v1014, %v1006
        %v1135 = vpack.c.b16 %v1023, %v1015
        %v1136 = vpack.c.b16 %v1024, %v1016
        %v1137 = vpack.c.b16 %v1025, %v1017
        %v1138 = vpack.c.b16 %v1026, %v1018
        %v1139 = vpack.c.b16 %v1027, %v1019
        %v1140 = vpack.c.b16 %v1028, %v1020
        %v1141 = vpack.c.b16 %v1029, %v1021
        %v1142 = vpack.c.b16 %v1030, %v1022
        %v1143 = vpack.c.b16 %v1039, %v1031
        %v1144 = vpack.c.b16 %v1040, %v1032
        %v1145 = vpack.c.b16 %v1041, %v1033
        %v1146 = vpack.c.b16 %v1042, %v1034
        %v1147 = vpack.c.b16 %v1043, %v1035
        %v1148 = vpack.c.b16 %v1044, %v1036
        %v1149 = vpack.c.b16 %v1045, %v1037
        %v1150 = vpack.c.b16 %v1046, %v1038
        %v1151 = vpack.c.b16 %v1055, %v1047
        %v1152 = vpack.c.b16 %v1056, %v1048
        %v1153 = vpack.c.b16 %v1057, %v1049
        %v1154 = vpack.c.b16 %v1058, %v1050
        %v1155 = vpack.c.b16 %v1059, %v1051
        %v1156 = vpack.c.b16 %v1060, %v1052
        %v1157 = vpack.c.b16 %v1061, %v1053
        %v1158 = vpack.c.b16 %v1062, %v1054
        %v1159 = vpack.c.b16 %v1071, %v1063
        %v1160 = vpack.c.b16 %v1072, %v1064
        %v1161 = vpack.c.b16 %v1073, %v1065
        %v1162 = vpack.c.b16 %v1074, %v1066
        %v1163 = vpack.c.b16 %v1075, %v1067
        %v1164 = vpack.c.b16 %v1076, %v1068
        %v1165 = vpack.c.b16 %v1077, %v1069
        %v1166 = vpack.c.b16 %v1078, %v1070
        %v1167 = vpack.c.b16 %v1087, %v1079
        %v1168 = vpack.c.b16 %v1088, %v1080
        %v1169 = vpack.c.b16 %v1089, %v1081
        %v1170 = vpack.c.b16 %v1090, %v1082
        %v1171 = vpack.c.b16 %v1091, %v1083
        %v1172 = vpack.c.b16 %v1092, %v1084
        %v1173 = vpack.c.b16 %v1093, %v1085
        %v1174 = vpack.c.b16 %v1094, %v1086
        %v1175 = vpack.c.b16 %v1103, %v1095
        %v1176 = vpack.c.b16 %v1104, %v1096
        %v1177 = vpack.c.b16 %v1105, %v1097
        %v1178 = vpack.c.b16 %v1106, %v1098
        %v1179 = vpack.c.b16 %v1107, %v1099
        %v1180 = vpack.c.b16 %v1108, %v1100
        %v1181 = vpack.c.b16 %v1109, %v1101
        %v1182 = vpack.c.b16 %v1110, %v1102
        %v1183 = vpack.c.b16 %v1119, %v1111
        %v1184 = vpack.c.b16 %v1120, %v1112
        %v1185 = vpack.c.b16 %v1121, %v1113
        %v1186 = vpack.c.b16 %v1122, %v1114
        %v1187 = vpack.c.b16 %v1123, %v1115
        %v1188 = vpack.c.b16 %v1124, %v1116
        %v1189 = vpack.c.b16 %v1125, %v1117
        %v1190 = vpack.c.b16 %v1126, %v1118
        %1255 = vmatprep.subr.bf16.mxu0 %v1128
        %1256 = vmatpush1.bf16.msra.mxu0 %v1127
        %1257 = vmatprep.subr.bf16.mxu0 %v1136
        %1258 = vmatpush1.bf16.msra.mxu0 %v1135
        %1259 = vmatprep.subr.bf16.mxu0 %v1144
        %1260 = vmatpush1.bf16.msra.mxu0 %v1143
        %1261 = vmatprep.subr.bf16.mxu0 %v1152
        %1262 = vmatpush1.bf16.msra.mxu0 %v1151
        %1263 = vmatprep.subr.bf16.mxu0 %v1160
        %1264 = vmatpush1.bf16.msra.mxu0 %v1159
        %1265 = vmatprep.subr.bf16.mxu0 %v1168
        %1266 = vmatpush1.bf16.msra.mxu0 %v1167
        %1267 = vmatprep.subr.bf16.mxu0 %v1176
        %1268 = vmatpush1.bf16.msra.mxu0 %v1175
        %1269 = vmatprep.subr.bf16.mxu0 %v1184
        %1270 = vmatpush1.bf16.msra.mxu0 %v1183
        %1271 = vmatprep.subr.bf16.mxu0 0
        %1272 = vmatpush1.bf16.msra.mxu0 0
        %1273 = vmatprep.subr.bf16.mxu0 0
        %1274 = vmatpush1.bf16.msra.mxu0 0
        %1275 = vmatprep.subr.bf16.mxu0 0
        %1276 = vmatpush1.bf16.msra.mxu0 0
        %1277 = vmatprep.subr.bf16.mxu0 0
        %1278 = vmatpush1.bf16.msra.mxu0 0
        %1279 = vmatprep.subr.bf16.mxu0 0
        %1280 = vmatpush1.bf16.msra.mxu0 0
        %1281 = vmatprep.subr.bf16.mxu0 0
        %1282 = vmatpush1.bf16.msra.mxu0 0
        %1283 = vmatprep.subr.bf16.mxu0 0
        %1284 = vmatpush1.bf16.msra.mxu0 0
        %1285 = vmatprep.subr.bf16.mxu0 0
        %1286 = vmatpush1.bf16.msra.mxu0 0
        %1287 = vmatprep.mubr.bf16.mxu0 0
        %1288 = vmatmul.mubr.bf16.gmra.mrb[0].mxu0 %v828
        %v1289 = vpop.f32.mrb[0].mxu0
        %v1290 = vadd.f32 %v898, %v1289
        %v1291 = vpop.f32.mrb[0].mxu0
        %v1292 = vadd.f32 %v902, %v1291
        %v1293 = vpop.f32.mrb[0].mxu0
        %v1294 = vpop.f32.mrb[0].mxu0
        %1295 = vdwg.mxu0
        %1296 = vmatprep.subr.bf16.mxu0 %v1130
        %1297 = vmatpush1.bf16.msra.mxu0 %v1129
        %1298 = vmatprep.subr.bf16.mxu0 %v1138
        %1299 = vmatpush1.bf16.msra.mxu0 %v1137
        %1300 = vmatprep.subr.bf16.mxu0 %v1146
        %1301 = vmatpush1.bf16.msra.mxu0 %v1145
        %1302 = vmatprep.subr.bf16.mxu0 %v1154
        %1303 = vmatpush1.bf16.msra.mxu0 %v1153
        %1304 = vmatprep.subr.bf16.mxu0 %v1162
        %1305 = vmatpush1.bf16.msra.mxu0 %v1161
        %1306 = vmatprep.subr.bf16.mxu0 %v1170
        %1307 = vmatpush1.bf16.msra.mxu0 %v1169
        %1308 = vmatprep.subr.bf16.mxu0 %v1178
        %1309 = vmatpush1.bf16.msra.mxu0 %v1177
        %1310 = vmatprep.subr.bf16.mxu0 %v1186
        %1311 = vmatpush1.bf16.msra.mxu0 %v1185
        %1312 = vmatprep.subr.bf16.mxu0 0
        %1313 = vmatpush1.bf16.msra.mxu0 0
        %1314 = vmatprep.subr.bf16.mxu0 0
        %1315 = vmatpush1.bf16.msra.mxu0 0
        %1316 = vmatprep.subr.bf16.mxu0 0
        %1317 = vmatpush1.bf16.msra.mxu0 0
        %1318 = vmatprep.subr.bf16.mxu0 0
        %1319 = vmatpush1.bf16.msra.mxu0 0
        %1320 = vmatprep.subr.bf16.mxu0 0
        %1321 = vmatpush1.bf16.msra.mxu0 0
        %1322 = vmatprep.subr.bf16.mxu0 0
        %1323 = vmatpush1.bf16.msra.mxu0 0
        %1324 = vmatprep.subr.bf16.mxu0 0
        %1325 = vmatpush1.bf16.msra.mxu0 0
        %1326 = vmatprep.subr.bf16.mxu0 0
        %1327 = vmatpush1.bf16.msra.mxu0 0
        %1328 = vmatprep.mubr.bf16.mxu0 0
        %1329 = vmatmul.mubr.bf16.gmra.mrb[0].mxu0 %v828
        %v1330 = vpop.f32.mrb[0].mxu0
        %v1331 = vadd.f32 %v906, %v1330
        %v1332 = vpop.f32.mrb[0].mxu0
        %v1333 = vadd.f32 %v910, %v1332
        %v1334 = vpop.f32.mrb[0].mxu0
        %v1335 = vpop.f32.mrb[0].mxu0
        %1336 = vdwg.mxu0
        %1337 = vmatprep.subr.bf16.mxu0 %v1132
        %1338 = vmatpush1.bf16.msra.mxu0 %v1131
        %1339 = vmatprep.subr.bf16.mxu0 %v1140
        %1340 = vmatpush1.bf16.msra.mxu0 %v1139
        %1341 = vmatprep.subr.bf16.mxu0 %v1148
        %1342 = vmatpush1.bf16.msra.mxu0 %v1147
        %1343 = vmatprep.subr.bf16.mxu0 %v1156
        %1344 = vmatpush1.bf16.msra.mxu0 %v1155
        %1345 = vmatprep.subr.bf16.mxu0 %v1164
        %1346 = vmatpush1.bf16.msra.mxu0 %v1163
        %1347 = vmatprep.subr.bf16.mxu0 %v1172
        %1348 = vmatpush1.bf16.msra.mxu0 %v1171
        %1349 = vmatprep.subr.bf16.mxu0 %v1180
        %1350 = vmatpush1.bf16.msra.mxu0 %v1179
        %1351 = vmatprep.subr.bf16.mxu0 %v1188
        %1352 = vmatpush1.bf16.msra.mxu0 %v1187
        %1353 = vmatprep.subr.bf16.mxu0 0
        %1354 = vmatpush1.bf16.msra.mxu0 0
        %1355 = vmatprep.subr.bf16.mxu0 0
        %1356 = vmatpush1.bf16.msra.mxu0 0
        %1357 = vmatprep.subr.bf16.mxu0 0
        %1358 = vmatpush1.bf16.msra.mxu0 0
        %1359 = vmatprep.subr.bf16.mxu0 0
        %1360 = vmatpush1.bf16.msra.mxu0 0
        %1361 = vmatprep.subr.bf16.mxu0 0
        %1362 = vmatpush1.bf16.msra.mxu0 0
        %1363 = vmatprep.subr.bf16.mxu0 0
        %1364 = vmatpush1.bf16.msra.mxu0 0
        %1365 = vmatprep.subr.bf16.mxu0 0
        %1366 = vmatpush1.bf16.msra.mxu0 0
        %1367 = vmatprep.subr.bf16.mxu0 0
        %1368 = vmatpush1.bf16.msra.mxu0 0
        %1369 = vmatprep.mubr.bf16.mxu0 0
        %1370 = vmatmul.mubr.bf16.gmra.mrb[0].mxu0 %v828
        %v1371 = vpop.f32.mrb[0].mxu0
        %v1372 = vadd.f32 %v914, %v1371
        %v1373 = vpop.f32.mrb[0].mxu0
        %v1374 = vadd.f32 %v918, %v1373
        %v1375 = vpop.f32.mrb[0].mxu0
        %v1376 = vpop.f32.mrb[0].mxu0
        %1377 = vdwg.mxu0
        %1378 = vmatprep.subr.bf16.mxu0 %v1134
        %1379 = vmatpush1.bf16.msra.mxu0 %v1133
        %1380 = vmatprep.subr.bf16.mxu0 %v1142
        %1381 = vmatpush1.bf16.msra.mxu0 %v1141
        %1382 = vmatprep.subr.bf16.mxu0 %v1150
        %1383 = vmatpush1.bf16.msra.mxu0 %v1149
        %1384 = vmatprep.subr.bf16.mxu0 %v1158
        %1385 = vmatpush1.bf16.msra.mxu0 %v1157
        %1386 = vmatprep.subr.bf16.mxu0 %v1166
        %1387 = vmatpush1.bf16.msra.mxu0 %v1165
        %1388 = vmatprep.subr.bf16.mxu0 %v1174
        %1389 = vmatpush1.bf16.msra.mxu0 %v1173
        %1390 = vmatprep.subr.bf16.mxu0 %v1182
        %1391 = vmatpush1.bf16.msra.mxu0 %v1181
        %1392 = vmatprep.subr.bf16.mxu0 %v1190
        %1393 = vmatpush1.bf16.msra.mxu0 %v1189
        %1394 = vmatprep.subr.bf16.mxu0 0
        %1395 = vmatpush1.bf16.msra.mxu0 0
        %1396 = vmatprep.subr.bf16.mxu0 0
        %1397 = vmatpush1.bf16.msra.mxu0 0
        %1398 = vmatprep.subr.bf16.mxu0 0
        %1399 = vmatpush1.bf16.msra.mxu0 0
        %1400 = vmatprep.subr.bf16.mxu0 0
        %1401 = vmatpush1.bf16.msra.mxu0 0
        %1402 = vmatprep.subr.bf16.mxu0 0
        %1403 = vmatpush1.bf16.msra.mxu0 0
        %1404 = vmatprep.subr.bf16.mxu0 0
        %1405 = vmatpush1.bf16.msra.mxu0 0
        %1406 = vmatprep.subr.bf16.mxu0 0
        %1407 = vmatpush1.bf16.msra.mxu0 0
        %1408 = vmatprep.subr.bf16.mxu0 0
        %1409 = vmatpush1.bf16.msra.mxu0 0
        %1410 = vmatprep.mubr.bf16.mxu0 0
        %1411 = vmatmul.mubr.bf16.gmra.mrb[0].mxu0 %v828
        %v1412 = vpop.f32.mrb[0].mxu0
        %v1413 = vadd.f32 %v922, %v1412
        %v1414 = vpop.f32.mrb[0].mxu0
        %v1415 = vadd.f32 %v926, %v1414
        %v1416 = vpop.f32.mrb[0].mxu0
        %v1417 = vpop.f32.mrb[0].mxu0
        %1418 = vdwg.mxu0
        %v1419 = vpack.c.bf16 %v1290, %v1290
        %v1420 = vpack.c.bf16 %v1292, %v1292
        %v1421 = vpack.c.bf16 %v1331, %v1331
        %v1422 = vpack.c.bf16 %v1333, %v1333
        %v1423 = vpack.c.bf16 %v1372, %v1372
        %v1424 = vpack.c.bf16 %v1374, %v1374
        %v1425 = vpack.c.bf16 %v1413, %v1413
        %v1426 = vpack.c.bf16 %v1415, %v1415
        %v1427 = vmul.bf16 %v1419, 1056980736
        %v1428 = vmul.bf16 %v1420, 1056980736
        %v1429 = vmul.bf16 %v1421, 1056980736
        %v1430 = vmul.bf16 %v1422, 1056980736
        %v1431 = vmul.bf16 %v1423, 1056980736
        %v1432 = vmul.bf16 %v1424, 1056980736
        %v1433 = vmul.bf16 %v1425, 1056980736
        %v1434 = vmul.bf16 %v1426, 1056980736
        %v1435 = vmul.bf16 %v1419, 1027030327
        %v1436 = vmul.bf16 %v1420, 1027030327
        %v1437 = vmul.bf16 %v1421, 1027030327
        %v1438 = vmul.bf16 %v1422, 1027030327
        %v1439 = vmul.bf16 %v1423, 1027030327
        %v1440 = vmul.bf16 %v1424, 1027030327
        %v1441 = vmul.bf16 %v1425, 1027030327
        %v1442 = vmul.bf16 %v1426, 1027030327
        %v1443 = vmul.bf16 %v1435, %v1419
        %v1444 = vmul.bf16 %v1436, %v1420
        %v1445 = vmul.bf16 %v1437, %v1421
        %v1446 = vmul.bf16 %v1438, %v1422
        %v1447 = vmul.bf16 %v1439, %v1423
        %v1448 = vmul.bf16 %v1440, %v1424
        %v1449 = vmul.bf16 %v1441, %v1425
        %v1450 = vmul.bf16 %v1442, %v1426
        %v1451 = vmul.bf16 %v1443, %v1419
        %v1452 = vmul.bf16 %v1444, %v1420
        %v1453 = vmul.bf16 %v1445, %v1421
        %v1454 = vmul.bf16 %v1446, %v1422
        %v1455 = vmul.bf16 %v1447, %v1423
        %v1456 = vmul.bf16 %v1448, %v1424
        %v1457 = vmul.bf16 %v1449, %v1425
        %v1458 = vmul.bf16 %v1450, %v1426
        %v1459 = vadd.bf16 %v1419, %v1451
        %v1460 = vadd.bf16 %v1420, %v1452
        %v1461 = vadd.bf16 %v1421, %v1453
        %v1462 = vadd.bf16 %v1422, %v1454
        %v1463 = vadd.bf16 %v1423, %v1455
        %v1464 = vadd.bf16 %v1424, %v1456
        %v1465 = vadd.bf16 %v1425, %v1457
        %v1466 = vadd.bf16 %v1426, %v1458
        %v1467 = vmul.bf16 %v1459, 1061961548
        %v1468 = vmul.bf16 %v1460, 1061961548
        %v1469 = vmul.bf16 %v1461, 1061961548
        %v1470 = vmul.bf16 %v1462, 1061961548
        %v1471 = vmul.bf16 %v1463, 1061961548
        %v1472 = vmul.bf16 %v1464, 1061961548
        %v1473 = vmul.bf16 %v1465, 1061961548
        %v1474 = vmul.bf16 %v1466, 1061961548
        %v1475 = vtanh.bf16.pop %v1467
        %v1476 = vtanh.bf16.pop %v1468
        %v1477 = vtanh.bf16.pop %v1469
        %v1478 = vtanh.bf16.pop %v1470
        %v1479 = vtanh.bf16.pop %v1471
        %v1480 = vtanh.bf16.pop %v1472
        %v1481 = vtanh.bf16.pop %v1473
        %v1482 = vtanh.bf16.pop %v1474
        %v1483 = vadd.bf16 %v1475, 1065369472
        %v1484 = vadd.bf16 %v1476, 1065369472
        %v1485 = vadd.bf16 %v1477, 1065369472
        %v1486 = vadd.bf16 %v1478, 1065369472
        %v1487 = vadd.bf16 %v1479, 1065369472
        %v1488 = vadd.bf16 %v1480, 1065369472
        %v1489 = vadd.bf16 %v1481, 1065369472
        %v1490 = vadd.bf16 %v1482, 1065369472
        %v1491 = vmul.bf16 %v1427, %v1483
        %v1492 = vmul.bf16 %v1428, %v1484
        %v1493 = vmul.bf16 %v1429, %v1485
        %v1494 = vmul.bf16 %v1430, %v1486
        %v1495 = vmul.bf16 %v1431, %v1487
        %v1496 = vmul.bf16 %v1432, %v1488
        %v1497 = vmul.bf16 %v1433, %v1489
        %v1498 = vmul.bf16 %v1434, %v1490
        %v1499 = vld [vmem:[%s534] sm:$0xf]
        %v1500 = vld [vmem:[%s534 + $0x4] sm:$0xf]
        %v1501 = vld [vmem:[%s534 + $0x8] sm:$0xf]
        %v1502 = vld [vmem:[%s534 + $0xc] sm:$0xf]
        %v1503 = vld [vmem:[%s534 + $0x10] sm:$0xf]
        %v1504 = vld [vmem:[%s534 + $0x14] sm:$0xf]
        %v1505 = vld [vmem:[%s534 + $0x18] sm:$0xf]
        %v1506 = vld [vmem:[%s534 + $0x1c] sm:$0xf]
        %v1507 = vld [vmem:[%s534 + $0x20] sm:$0xf]
        %v1508 = vld [vmem:[%s534 + $0x24] sm:$0xf]
        %v1509 = vld [vmem:[%s534 + $0x28] sm:$0xf]
        %v1510 = vld [vmem:[%s534 + $0x2c] sm:$0xf]
        %v1511 = vld [vmem:[%s534 + $0x30] sm:$0xf]
        %v1512 = vld [vmem:[%s534 + $0x34] sm:$0xf]
        %v1513 = vld [vmem:[%s534 + $0x38] sm:$0xf]
        %v1514 = vld [vmem:[%s534 + $0x3c] sm:$0xf]
        %v1515 = vld [vmem:[%s534 + $0x40] sm:$0xf]
        %v1516 = vld [vmem:[%s534 + $0x44] sm:$0xf]
        %v1517 = vld [vmem:[%s534 + $0x48] sm:$0xf]
        %v1518 = vld [vmem:[%s534 + $0x4c] sm:$0xf]
        %v1519 = vld [vmem:[%s534 + $0x50] sm:$0xf]
        %v1520 = vld [vmem:[%s534 + $0x54] sm:$0xf]
        %v1521 = vld [vmem:[%s534 + $0x58] sm:$0xf]
        %v1522 = vld [vmem:[%s534 + $0x5c] sm:$0xf]
        %v1523 = vld [vmem:[%s534 + $0x60] sm:$0xf]
        %v1524 = vld [vmem:[%s534 + $0x64] sm:$0xf]
        %v1525 = vld [vmem:[%s534 + $0x68] sm:$0xf]
        %v1526 = vld [vmem:[%s534 + $0x6c] sm:$0xf]
        %v1527 = vld [vmem:[%s534 + $0x70] sm:$0xf]
        %v1528 = vld [vmem:[%s534 + $0x74] sm:$0xf]
        %v1529 = vld [vmem:[%s534 + $0x78] sm:$0xf]
        %v1530 = vld [vmem:[%s534 + $0x7c] sm:$0xf]
        %v1531 = vld [vmem:[%s534 + $0x80] sm:$0xf]
        %v1532 = vld [vmem:[%s534 + $0x84] sm:$0xf]
        %v1533 = vld [vmem:[%s534 + $0x88] sm:$0xf]
        %v1534 = vld [vmem:[%s534 + $0x8c] sm:$0xf]
        %v1535 = vld [vmem:[%s534 + $0x90] sm:$0xf]
        %v1536 = vld [vmem:[%s534 + $0x94] sm:$0xf]
        %v1537 = vld [vmem:[%s534 + $0x98] sm:$0xf]
        %v1538 = vld [vmem:[%s534 + $0x9c] sm:$0xf]
        %v1539 = vld [vmem:[%s534 + $0xa0] sm:$0xf]
        %v1540 = vld [vmem:[%s534 + $0xa4] sm:$0xf]
        %v1541 = vld [vmem:[%s534 + $0xa8] sm:$0xf]
        %v1542 = vld [vmem:[%s534 + $0xac] sm:$0xf]
        %v1543 = vld [vmem:[%s534 + $0xb0] sm:$0xf]
        %v1544 = vld [vmem:[%s534 + $0xb4] sm:$0xf]
        %v1545 = vld [vmem:[%s534 + $0xb8] sm:$0xf]
        %v1546 = vld [vmem:[%s534 + $0xbc] sm:$0xf]
        %v1547 = vld [vmem:[%s534 + $0xc0] sm:$0xf]
        %v1548 = vld [vmem:[%s534 + $0xc4] sm:$0xf]
        %v1549 = vld [vmem:[%s534 + $0xc8] sm:$0xf]
        %v1550 = vld [vmem:[%s534 + $0xcc] sm:$0xf]
        %v1551 = vld [vmem:[%s534 + $0xd0] sm:$0xf]
        %v1552 = vld [vmem:[%s534 + $0xd4] sm:$0xf]
        %v1553 = vld [vmem:[%s534 + $0xd8] sm:$0xf]
        %v1554 = vld [vmem:[%s534 + $0xdc] sm:$0xf]
        %v1555 = vld [vmem:[%s534 + $0xe0] sm:$0xf]
        %v1556 = vld [vmem:[%s534 + $0xe4] sm:$0xf]
        %v1557 = vld [vmem:[%s534 + $0xe8] sm:$0xf]
        %v1558 = vld [vmem:[%s534 + $0xec] sm:$0xf]
        %v1559 = vld [vmem:[%s534 + $0xf0] sm:$0xf]
        %v1560 = vld [vmem:[%s534 + $0xf4] sm:$0xf]
        %v1561 = vld [vmem:[%s534 + $0xf8] sm:$0xf]
        %v1562 = vld [vmem:[%s534 + $0xfc] sm:$0xf]
        %v1563 = vld [vmem:[%s534 + $0x100] sm:$0xf]
        %v1564 = vld [vmem:[%s534 + $0x104] sm:$0xf]
        %v1565 = vld [vmem:[%s534 + $0x108] sm:$0xf]
        %v1566 = vld [vmem:[%s534 + $0x10c] sm:$0xf]
        %v1567 = vld [vmem:[%s534 + $0x110] sm:$0xf]
        %v1568 = vld [vmem:[%s534 + $0x114] sm:$0xf]
        %v1569 = vld [vmem:[%s534 + $0x118] sm:$0xf]
        %v1570 = vld [vmem:[%s534 + $0x11c] sm:$0xf]
        %v1571 = vld [vmem:[%s534 + $0x120] sm:$0xf]
        %v1572 = vld [vmem:[%s534 + $0x124] sm:$0xf]
        %v1573 = vld [vmem:[%s534 + $0x128] sm:$0xf]
        %v1574 = vld [vmem:[%s534 + $0x12c] sm:$0xf]
        %v1575 = vld [vmem:[%s534 + $0x130] sm:$0xf]
        %v1576 = vld [vmem:[%s534 + $0x134] sm:$0xf]
        %v1577 = vld [vmem:[%s534 + $0x138] sm:$0xf]
        %v1578 = vld [vmem:[%s534 + $0x13c] sm:$0xf]
        %v1579 = vld [vmem:[%s534 + $0x140] sm:$0xf]
        %v1580 = vld [vmem:[%s534 + $0x144] sm:$0xf]
        %v1581 = vld [vmem:[%s534 + $0x148] sm:$0xf]
        %v1582 = vld [vmem:[%s534 + $0x14c] sm:$0xf]
        %v1583 = vld [vmem:[%s534 + $0x150] sm:$0xf]
        %v1584 = vld [vmem:[%s534 + $0x154] sm:$0xf]
        %v1585 = vld [vmem:[%s534 + $0x158] sm:$0xf]
        %v1586 = vld [vmem:[%s534 + $0x15c] sm:$0xf]
        %v1587 = vld [vmem:[%s534 + $0x160] sm:$0xf]
        %v1588 = vld [vmem:[%s534 + $0x164] sm:$0xf]
        %v1589 = vld [vmem:[%s534 + $0x168] sm:$0xf]
        %v1590 = vld [vmem:[%s534 + $0x16c] sm:$0xf]
        %v1591 = vld [vmem:[%s534 + $0x170] sm:$0xf]
        %v1592 = vld [vmem:[%s534 + $0x174] sm:$0xf]
        %v1593 = vld [vmem:[%s534 + $0x178] sm:$0xf]
        %v1594 = vld [vmem:[%s534 + $0x17c] sm:$0xf]
        %v1595 = vld [vmem:[%s534 + $0x180] sm:$0xf]
        %v1596 = vld [vmem:[%s534 + $0x184] sm:$0xf]
        %v1597 = vld [vmem:[%s534 + $0x188] sm:$0xf]
        %v1598 = vld [vmem:[%s534 + $0x18c] sm:$0xf]
        %v1599 = vld [vmem:[%s534 + $0x190] sm:$0xf]
        %v1600 = vld [vmem:[%s534 + $0x194] sm:$0xf]
        %v1601 = vld [vmem:[%s534 + $0x198] sm:$0xf]
        %v1602 = vld [vmem:[%s534 + $0x19c] sm:$0xf]
        %v1603 = vld [vmem:[%s534 + $0x1a0] sm:$0xf]
        %v1604 = vld [vmem:[%s534 + $0x1a4] sm:$0xf]
        %v1605 = vld [vmem:[%s534 + $0x1a8] sm:$0xf]
        %v1606 = vld [vmem:[%s534 + $0x1ac] sm:$0xf]
        %v1607 = vld [vmem:[%s534 + $0x1b0] sm:$0xf]
        %v1608 = vld [vmem:[%s534 + $0x1b4] sm:$0xf]
        %v1609 = vld [vmem:[%s534 + $0x1b8] sm:$0xf]
        %v1610 = vld [vmem:[%s534 + $0x1bc] sm:$0xf]
        %v1611 = vld [vmem:[%s534 + $0x1c0] sm:$0xf]
        %v1612 = vld [vmem:[%s534 + $0x1c4] sm:$0xf]
        %v1613 = vld [vmem:[%s534 + $0x1c8] sm:$0xf]
        %v1614 = vld [vmem:[%s534 + $0x1cc] sm:$0xf]
        %v1615 = vld [vmem:[%s534 + $0x1d0] sm:$0xf]
        %v1616 = vld [vmem:[%s534 + $0x1d4] sm:$0xf]
        %v1617 = vld [vmem:[%s534 + $0x1d8] sm:$0xf]
        %v1618 = vld [vmem:[%s534 + $0x1dc] sm:$0xf]
        %v1619 = vld [vmem:[%s534 + $0x1e0] sm:$0xf]
        %v1620 = vld [vmem:[%s534 + $0x1e4] sm:$0xf]
        %v1621 = vld [vmem:[%s534 + $0x1e8] sm:$0xf]
        %v1622 = vld [vmem:[%s534 + $0x1ec] sm:$0xf]
        %v1623 = vld [vmem:[%s534 + $0x1f0] sm:$0xf]
        %v1624 = vld [vmem:[%s534 + $0x1f4] sm:$0xf]
        %v1625 = vld [vmem:[%s534 + $0x1f8] sm:$0xf]
        %v1626 = vld [vmem:[%s534 + $0x1fc] sm:$0xf]
        %v1627 = vld [vmem:[%s631] sm:$0x1]
        %v1629 = vlaneseq
        %v1630 = vshrl.u32 %v1629, 7
        %v1631 = vsub.s32 0, %v1630
        %v1632 = vrot.slane %v1627, %v1631
        %v1762 = vunpack.c.l.b16 %v1499
        %v1763 = vunpack.c.l.b16 %v1500
        %v1764 = vunpack.c.l.b16 %v1501
        %v1765 = vunpack.c.l.b16 %v1502
        %v1766 = vunpack.c.l.b16 %v1503
        %v1767 = vunpack.c.l.b16 %v1504
        %v1768 = vunpack.c.l.b16 %v1505
        %v1769 = vunpack.c.l.b16 %v1506
        %v1770 = vunpack.c.l.b16 %v1507
        %v1771 = vunpack.c.l.b16 %v1508
        %v1772 = vunpack.c.l.b16 %v1509
        %v1773 = vunpack.c.l.b16 %v1510
        %v1774 = vunpack.c.l.b16 %v1511
        %v1775 = vunpack.c.l.b16 %v1512
        %v1776 = vunpack.c.l.b16 %v1513
        %v1777 = vunpack.c.l.b16 %v1514
        %v1778 = vunpack.c.l.b16 %v1515
        %v1779 = vunpack.c.l.b16 %v1516
        %v1780 = vunpack.c.l.b16 %v1517
        %v1781 = vunpack.c.l.b16 %v1518
        %v1782 = vunpack.c.l.b16 %v1519
        %v1783 = vunpack.c.l.b16 %v1520
        %v1784 = vunpack.c.l.b16 %v1521
        %v1785 = vunpack.c.l.b16 %v1522
        %v1786 = vunpack.c.l.b16 %v1523
        %v1787 = vunpack.c.l.b16 %v1524
        %v1788 = vunpack.c.l.b16 %v1525
        %v1789 = vunpack.c.l.b16 %v1526
        %v1790 = vunpack.c.l.b16 %v1527
        %v1791 = vunpack.c.l.b16 %v1528
        %v1792 = vunpack.c.l.b16 %v1529
        %v1793 = vunpack.c.l.b16 %v1530
        %v1794 = vunpack.c.l.b16 %v1531
        %v1795 = vunpack.c.l.b16 %v1532
        %v1796 = vunpack.c.l.b16 %v1533
        %v1797 = vunpack.c.l.b16 %v1534
        %v1798 = vunpack.c.l.b16 %v1535
        %v1799 = vunpack.c.l.b16 %v1536
        %v1800 = vunpack.c.l.b16 %v1537
        %v1801 = vunpack.c.l.b16 %v1538
        %v1802 = vunpack.c.l.b16 %v1539
        %v1803 = vunpack.c.l.b16 %v1540
        %v1804 = vunpack.c.l.b16 %v1541
        %v1805 = vunpack.c.l.b16 %v1542
        %v1806 = vunpack.c.l.b16 %v1543
        %v1807 = vunpack.c.l.b16 %v1544
        %v1808 = vunpack.c.l.b16 %v1545
        %v1809 = vunpack.c.l.b16 %v1546
        %v1810 = vunpack.c.l.b16 %v1547
        %v1811 = vunpack.c.l.b16 %v1548
        %v1812 = vunpack.c.l.b16 %v1549
        %v1813 = vunpack.c.l.b16 %v1550
        %v1814 = vunpack.c.l.b16 %v1551
        %v1815 = vunpack.c.l.b16 %v1552
        %v1816 = vunpack.c.l.b16 %v1553
        %v1817 = vunpack.c.l.b16 %v1554
        %v1818 = vunpack.c.l.b16 %v1555
        %v1819 = vunpack.c.l.b16 %v1556
        %v1820 = vunpack.c.l.b16 %v1557
        %v1821 = vunpack.c.l.b16 %v1558
        %v1822 = vunpack.c.l.b16 %v1559
        %v1823 = vunpack.c.l.b16 %v1560
        %v1824 = vunpack.c.l.b16 %v1561
        %v1825 = vunpack.c.l.b16 %v1562
        %v1826 = vunpack.c.l.b16 %v1563
        %v1827 = vunpack.c.l.b16 %v1564
        %v1828 = vunpack.c.l.b16 %v1565
        %v1829 = vunpack.c.l.b16 %v1566
        %v1830 = vunpack.c.l.b16 %v1567
        %v1831 = vunpack.c.l.b16 %v1568
        %v1832 = vunpack.c.l.b16 %v1569
        %v1833 = vunpack.c.l.b16 %v1570
        %v1834 = vunpack.c.l.b16 %v1571
        %v1835 = vunpack.c.l.b16 %v1572
        %v1836 = vunpack.c.l.b16 %v1573
        %v1837 = vunpack.c.l.b16 %v1574
        %v1838 = vunpack.c.l.b16 %v1575
        %v1839 = vunpack.c.l.b16 %v1576
        %v1840 = vunpack.c.l.b16 %v1577
        %v1841 = vunpack.c.l.b16 %v1578
        %v1842 = vunpack.c.l.b16 %v1579
        %v1843 = vunpack.c.l.b16 %v1580
        %v1844 = vunpack.c.l.b16 %v1581
        %v1845 = vunpack.c.l.b16 %v1582
        %v1846 = vunpack.c.l.b16 %v1583
        %v1847 = vunpack.c.l.b16 %v1584
        %v1848 = vunpack.c.l.b16 %v1585
        %v1849 = vunpack.c.l.b16 %v1586
        %v1850 = vunpack.c.l.b16 %v1587
        %v1851 = vunpack.c.l.b16 %v1588
        %v1852 = vunpack.c.l.b16 %v1589
        %v1853 = vunpack.c.l.b16 %v1590
        %v1854 = vunpack.c.l.b16 %v1591
        %v1855 = vunpack.c.l.b16 %v1592
        %v1856 = vunpack.c.l.b16 %v1593
        %v1857 = vunpack.c.l.b16 %v1594
        %v1858 = vunpack.c.l.b16 %v1595
        %v1859 = vunpack.c.l.b16 %v1596
        %v1860 = vunpack.c.l.b16 %v1597
        %v1861 = vunpack.c.l.b16 %v1598
        %v1862 = vunpack.c.l.b16 %v1599
        %v1863 = vunpack.c.l.b16 %v1600
        %v1864 = vunpack.c.l.b16 %v1601
        %v1865 = vunpack.c.l.b16 %v1602
        %v1866 = vunpack.c.l.b16 %v1603
        %v1867 = vunpack.c.l.b16 %v1604
        %v1868 = vunpack.c.l.b16 %v1605
        %v1869 = vunpack.c.l.b16 %v1606
        %v1870 = vunpack.c.l.b16 %v1607
        %v1871 = vunpack.c.l.b16 %v1608
        %v1872 = vunpack.c.l.b16 %v1609
        %v1873 = vunpack.c.l.b16 %v1610
        %v1874 = vunpack.c.l.b16 %v1611
        %v1875 = vunpack.c.l.b16 %v1612
        %v1876 = vunpack.c.l.b16 %v1613
        %v1877 = vunpack.c.l.b16 %v1614
        %v1878 = vunpack.c.l.b16 %v1615
        %v1879 = vunpack.c.l.b16 %v1616
        %v1880 = vunpack.c.l.b16 %v1617
        %v1881 = vunpack.c.l.b16 %v1618
        %v1882 = vunpack.c.l.b16 %v1619
        %v1883 = vunpack.c.l.b16 %v1620
        %v1884 = vunpack.c.l.b16 %v1621
        %v1885 = vunpack.c.l.b16 %v1622
        %v1886 = vunpack.c.l.b16 %v1623
        %v1887 = vunpack.c.l.b16 %v1624
        %v1888 = vunpack.c.l.b16 %v1625
        %v1889 = vunpack.c.l.b16 %v1626
        %v1890 = vpack.c.b16 %v1763, %v1762
        %v1891 = vpack.c.b16 %v1765, %v1764
        %v1892 = vpack.c.b16 %v1767, %v1766
        %v1893 = vpack.c.b16 %v1769, %v1768
        %v1894 = vpack.c.b16 %v1771, %v1770
        %v1895 = vpack.c.b16 %v1773, %v1772
        %v1896 = vpack.c.b16 %v1775, %v1774
        %v1897 = vpack.c.b16 %v1777, %v1776
        %v1898 = vpack.c.b16 %v1779, %v1778
        %v1899 = vpack.c.b16 %v1781, %v1780
        %v1900 = vpack.c.b16 %v1783, %v1782
        %v1901 = vpack.c.b16 %v1785, %v1784
        %v1902 = vpack.c.b16 %v1787, %v1786
        %v1903 = vpack.c.b16 %v1789, %v1788
        %v1904 = vpack.c.b16 %v1791, %v1790
        %v1905 = vpack.c.b16 %v1793, %v1792
        %v1906 = vpack.c.b16 %v1795, %v1794
        %v1907 = vpack.c.b16 %v1797, %v1796
        %v1908 = vpack.c.b16 %v1799, %v1798
        %v1909 = vpack.c.b16 %v1801, %v1800
        %v1910 = vpack.c.b16 %v1803, %v1802
        %v1911 = vpack.c.b16 %v1805, %v1804
        %v1912 = vpack.c.b16 %v1807, %v1806
        %v1913 = vpack.c.b16 %v1809, %v1808
        %v1914 = vpack.c.b16 %v1811, %v1810
        %v1915 = vpack.c.b16 %v1813, %v1812
        %v1916 = vpack.c.b16 %v1815, %v1814
        %v1917 = vpack.c.b16 %v1817, %v1816
        %v1918 = vpack.c.b16 %v1819, %v1818
        %v1919 = vpack.c.b16 %v1821, %v1820
        %v1920 = vpack.c.b16 %v1823, %v1822
        %v1921 = vpack.c.b16 %v1825, %v1824
        %v1922 = vpack.c.b16 %v1827, %v1826
        %v1923 = vpack.c.b16 %v1829, %v1828
        %v1924 = vpack.c.b16 %v1831, %v1830
        %v1925 = vpack.c.b16 %v1833, %v1832
        %v1926 = vpack.c.b16 %v1835, %v1834
        %v1927 = vpack.c.b16 %v1837, %v1836
        %v1928 = vpack.c.b16 %v1839, %v1838
        %v1929 = vpack.c.b16 %v1841, %v1840
        %v1930 = vpack.c.b16 %v1843, %v1842
        %v1931 = vpack.c.b16 %v1845, %v1844
        %v1932 = vpack.c.b16 %v1847, %v1846
        %v1933 = vpack.c.b16 %v1849, %v1848
        %v1934 = vpack.c.b16 %v1851, %v1850
        %v1935 = vpack.c.b16 %v1853, %v1852
        %v1936 = vpack.c.b16 %v1855, %v1854
        %v1937 = vpack.c.b16 %v1857, %v1856
        %v1938 = vpack.c.b16 %v1859, %v1858
        %v1939 = vpack.c.b16 %v1861, %v1860
        %v1940 = vpack.c.b16 %v1863, %v1862
        %v1941 = vpack.c.b16 %v1865, %v1864
        %v1942 = vpack.c.b16 %v1867, %v1866
        %v1943 = vpack.c.b16 %v1869, %v1868
        %v1944 = vpack.c.b16 %v1871, %v1870
        %v1945 = vpack.c.b16 %v1873, %v1872
        %v1946 = vpack.c.b16 %v1875, %v1874
        %v1947 = vpack.c.b16 %v1877, %v1876
        %v1948 = vpack.c.b16 %v1879, %v1878
        %v1949 = vpack.c.b16 %v1881, %v1880
        %v1950 = vpack.c.b16 %v1883, %v1882
        %v1951 = vpack.c.b16 %v1885, %v1884
        %v1952 = vpack.c.b16 %v1887, %v1886
        %v1953 = vpack.c.b16 %v1889, %v1888
        %2018 = vmatprep.subr.bf16.mxu0 0
        %2019 = vmatpush1.bf16.msra.mxu0 %v1890
        %2020 = vmatprep.subr.bf16.mxu0 0
        %2021 = vmatpush1.bf16.msra.mxu0 %v1891
        %2022 = vmatprep.subr.bf16.mxu0 0
        %2023 = vmatpush1.bf16.msra.mxu0 %v1892
        %2024 = vmatprep.subr.bf16.mxu0 0
        %2025 = vmatpush1.bf16.msra.mxu0 %v1893
        %2026 = vmatprep.subr.bf16.mxu0 0
        %2027 = vmatpush1.bf16.msra.mxu0 %v1894
        %2028 = vmatprep.subr.bf16.mxu0 0
        %2029 = vmatpush1.bf16.msra.mxu0 %v1895
        %2030 = vmatprep.subr.bf16.mxu0 0
        %2031 = vmatpush1.bf16.msra.mxu0 %v1896
        %2032 = vmatprep.subr.bf16.mxu0 0
        %2033 = vmatpush1.bf16.msra.mxu0 %v1897
        %2034 = vmatprep.subr.bf16.mxu0 0
        %2035 = vmatpush1.bf16.msra.mxu0 %v1898
        %2036 = vmatprep.subr.bf16.mxu0 0
        %2037 = vmatpush1.bf16.msra.mxu0 %v1899
        %2038 = vmatprep.subr.bf16.mxu0 0
        %2039 = vmatpush1.bf16.msra.mxu0 %v1900
        %2040 = vmatprep.subr.bf16.mxu0 0
        %2041 = vmatpush1.bf16.msra.mxu0 %v1901
        %2042 = vmatprep.subr.bf16.mxu0 0
        %2043 = vmatpush1.bf16.msra.mxu0 %v1902
        %2044 = vmatprep.subr.bf16.mxu0 0
        %2045 = vmatpush1.bf16.msra.mxu0 %v1903
        %2046 = vmatprep.subr.bf16.mxu0 0
        %2047 = vmatpush1.bf16.msra.mxu0 %v1904
        %2048 = vmatprep.subr.bf16.mxu0 0
        %2049 = vmatpush1.bf16.msra.mxu0 %v1905
        %2050 = vmatprep.mubr.bf16.mxu0 %v1492
        %2051 = vmatmul.mubr.bf16.gmra.mrb[0].mxu0 %v1491
        %v2052 = vpop.f32.mrb[0].mxu0
        %v2053 = vadd.f32 %v1632, %v2052
        %v2054 = vpop.f32.mrb[0].mxu0
        %v2055 = vpop.f32.mrb[0].mxu0
        %v2056 = vpop.f32.mrb[0].mxu0
        %2057 = vdwg.mxu0
        %2058 = vmatprep.subr.bf16.mxu0 0
        %2059 = vmatpush1.bf16.msra.mxu0 %v1906
        %2060 = vmatprep.subr.bf16.mxu0 0
        %2061 = vmatpush1.bf16.msra.mxu0 %v1907
        %2062 = vmatprep.subr.bf16.mxu0 0
        %2063 = vmatpush1.bf16.msra.mxu0 %v1908
        %2064 = vmatprep.subr.bf16.mxu0 0
        %2065 = vmatpush1.bf16.msra.mxu0 %v1909
        %2066 = vmatprep.subr.bf16.mxu0 0
        %2067 = vmatpush1.bf16.msra.mxu0 %v1910
        %2068 = vmatprep.subr.bf16.mxu0 0
        %2069 = vmatpush1.bf16.msra.mxu0 %v1911
        %2070 = vmatprep.subr.bf16.mxu0 0
        %2071 = vmatpush1.bf16.msra.mxu0 %v1912
        %2072 = vmatprep.subr.bf16.mxu0 0
        %2073 = vmatpush1.bf16.msra.mxu0 %v1913
        %2074 = vmatprep.subr.bf16.mxu0 0
        %2075 = vmatpush1.bf16.msra.mxu0 %v1914
        %2076 = vmatprep.subr.bf16.mxu0 0
        %2077 = vmatpush1.bf16.msra.mxu0 %v1915
        %2078 = vmatprep.subr.bf16.mxu0 0
        %2079 = vmatpush1.bf16.msra.mxu0 %v1916
        %2080 = vmatprep.subr.bf16.mxu0 0
        %2081 = vmatpush1.bf16.msra.mxu0 %v1917
        %2082 = vmatprep.subr.bf16.mxu0 0
        %2083 = vmatpush1.bf16.msra.mxu0 %v1918
        %2084 = vmatprep.subr.bf16.mxu0 0
        %2085 = vmatpush1.bf16.msra.mxu0 %v1919
        %2086 = vmatprep.subr.bf16.mxu0 0
        %2087 = vmatpush1.bf16.msra.mxu0 %v1920
        %2088 = vmatprep.subr.bf16.mxu0 0
        %2089 = vmatpush1.bf16.msra.mxu0 %v1921
        %2090 = vmatprep.mubr.bf16.mxu0 %v1494
        %2091 = vmatmul.mubr.bf16.gmra.mrb[0].mxu0 %v1493
        %v2092 = vpop.f32.mrb[0].mxu0
        %v2093 = vadd.f32 %v2053, %v2092
        %v2094 = vpop.f32.mrb[0].mxu0
        %v2095 = vpop.f32.mrb[0].mxu0
        %v2096 = vpop.f32.mrb[0].mxu0
        %2097 = vdwg.mxu0
        %2098 = vmatprep.subr.bf16.mxu0 0
        %2099 = vmatpush1.bf16.msra.mxu0 %v1922
        %2100 = vmatprep.subr.bf16.mxu0 0
        %2101 = vmatpush1.bf16.msra.mxu0 %v1923
        %2102 = vmatprep.subr.bf16.mxu0 0
        %2103 = vmatpush1.bf16.msra.mxu0 %v1924
        %2104 = vmatprep.subr.bf16.mxu0 0
        %2105 = vmatpush1.bf16.msra.mxu0 %v1925
        %2106 = vmatprep.subr.bf16.mxu0 0
        %2107 = vmatpush1.bf16.msra.mxu0 %v1926
        %2108 = vmatprep.subr.bf16.mxu0 0
        %2109 = vmatpush1.bf16.msra.mxu0 %v1927
        %2110 = vmatprep.subr.bf16.mxu0 0
        %2111 = vmatpush1.bf16.msra.mxu0 %v1928
        %2112 = vmatprep.subr.bf16.mxu0 0
        %2113 = vmatpush1.bf16.msra.mxu0 %v1929
        %2114 = vmatprep.subr.bf16.mxu0 0
        %2115 = vmatpush1.bf16.msra.mxu0 %v1930
        %2116 = vmatprep.subr.bf16.mxu0 0
        %2117 = vmatpush1.bf16.msra.mxu0 %v1931
        %2118 = vmatprep.subr.bf16.mxu0 0
        %2119 = vmatpush1.bf16.msra.mxu0 %v1932
        %2120 = vmatprep.subr.bf16.mxu0 0
        %2121 = vmatpush1.bf16.msra.mxu0 %v1933
        %2122 = vmatprep.subr.bf16.mxu0 0
        %2123 = vmatpush1.bf16.msra.mxu0 %v1934
        %2124 = vmatprep.subr.bf16.mxu0 0
        %2125 = vmatpush1.bf16.msra.mxu0 %v1935
        %2126 = vmatprep.subr.bf16.mxu0 0
        %2127 = vmatpush1.bf16.msra.mxu0 %v1936
        %2128 = vmatprep.subr.bf16.mxu0 0
        %2129 = vmatpush1.bf16.msra.mxu0 %v1937
        %2130 = vmatprep.mubr.bf16.mxu0 %v1496
        %2131 = vmatmul.mubr.bf16.gmra.mrb[0].mxu0 %v1495
        %v2132 = vpop.f32.mrb[0].mxu0
        %v2133 = vadd.f32 %v2093, %v2132
        %v2134 = vpop.f32.mrb[0].mxu0
        %v2135 = vpop.f32.mrb[0].mxu0
        %v2136 = vpop.f32.mrb[0].mxu0
        %2137 = vdwg.mxu0
        %2138 = vmatprep.subr.bf16.mxu0 0
        %2139 = vmatpush1.bf16.msra.mxu0 %v1938
        %2140 = vmatprep.subr.bf16.mxu0 0
        %2141 = vmatpush1.bf16.msra.mxu0 %v1939
        %2142 = vmatprep.subr.bf16.mxu0 0
        %2143 = vmatpush1.bf16.msra.mxu0 %v1940
        %2144 = vmatprep.subr.bf16.mxu0 0
        %2145 = vmatpush1.bf16.msra.mxu0 %v1941
        %2146 = vmatprep.subr.bf16.mxu0 0
        %2147 = vmatpush1.bf16.msra.mxu0 %v1942
        %2148 = vmatprep.subr.bf16.mxu0 0
        %2149 = vmatpush1.bf16.msra.mxu0 %v1943
        %2150 = vmatprep.subr.bf16.mxu0 0
        %2151 = vmatpush1.bf16.msra.mxu0 %v1944
        %2152 = vmatprep.subr.bf16.mxu0 0
        %2153 = vmatpush1.bf16.msra.mxu0 %v1945
        %2154 = vmatprep.subr.bf16.mxu0 0
        %2155 = vmatpush1.bf16.msra.mxu0 %v1946
        %2156 = vmatprep.subr.bf16.mxu0 0
        %2157 = vmatpush1.bf16.msra.mxu0 %v1947
        %2158 = vmatprep.subr.bf16.mxu0 0
        %2159 = vmatpush1.bf16.msra.mxu0 %v1948
        %2160 = vmatprep.subr.bf16.mxu0 0
        %2161 = vmatpush1.bf16.msra.mxu0 %v1949
        %2162 = vmatprep.subr.bf16.mxu0 0
        %2163 = vmatpush1.bf16.msra.mxu0 %v1950
        %2164 = vmatprep.subr.bf16.mxu0 0
        %2165 = vmatpush1.bf16.msra.mxu0 %v1951
        %2166 = vmatprep.subr.bf16.mxu0 0
        %2167 = vmatpush1.bf16.msra.mxu0 %v1952
        %2168 = vmatprep.subr.bf16.mxu0 0
        %2169 = vmatpush1.bf16.msra.mxu0 %v1953
        %2170 = vmatprep.mubr.bf16.mxu0 %v1498
        %2171 = vmatmul.mubr.bf16.gmra.mrb[0].mxu0 %v1497
        %v2172 = vpop.f32.mrb[0].mxu0
        %v2173 = vadd.f32 %v2133, %v2172
        %v2174 = vpop.f32.mrb[0].mxu0
        %v2175 = vpop.f32.mrb[0].mxu0
        %v2176 = vpop.f32.mrb[0].mxu0
        %2177 = vdwg.mxu0
        %v2178 = vadd.f32 %v792, %v2173
        %2179 = vst [vmem:[#allocation2] sm:$0xff] %v2178
        %p2180 = scmp.eq.s32.totalorder %s39, 1
        // Predicated region
        $region85: #{tpu_custom_call.1} parent=63 // pred_check
          %p2181 = pneg %p2180
        $region86: #{tpu_custom_call.1} parent=63 // pred_check_branch
          %2183 = sbr.rel (%p2181) target = $region88
        $region87: #{tpu_custom_call.1} parent=63 // pred_region
          %2184 = vst [vmem:[%s609] sm:$0xff] %v2178
        $region88: #{tpu_custom_call.1} parent=63 // pred_fallthru
          _
        %s2185 = sand.u32 %s340, 1
        %s2186 = scalar_lea.sflag [#allocation5], %s2185
        %s2187 = sand.u32 %s340, 1
        %s2188 = smul.addr %s2187, 8
        %s2189 = scalar_lea.vmem [#allocation11], %s2188
        // Predicated region
        $region89: #{tpu_custom_call.1} parent=63 // pred_check
          %p2190 = pneg %p350
        $region90: #{tpu_custom_call.1} parent=63 // pred_check_branch
          %2192 = sbr.rel (%p2190) target = $region92
        $region91: #{tpu_custom_call.1} parent=63 // pred_region
          %s2194 = ssub.s32 128, 128
          %2195 = vsyncadd %s2186, %s2194
          %s2196 = smul.addr %s38, 128
          %s2197 = scalar_lea.hbm %s11, %s2196
          %s2199 = sshll.u32 %s2189, 4
          %s2200 = int_to_ptr.vmem [resolvable:$true] %s2199
          %2202 = dma.vmem_to_hbm [thread:$0]  %s2200, 128, %s2197, %s2186
        $region92: #{tpu_custom_call.1} parent=63 // pred_fallthru
          _
      $region64: #{tpu_custom_call.1} parent=5 // pred_fallthru
        _
      %p2203 = scmp.le.s32.totalorder 2, %s29
      // Predicated region
      $region93: #{tpu_custom_call.1} parent=5 // pred_check
        %p2204 = pneg %p2203
      $region94: #{tpu_custom_call.1} parent=5 // pred_check_branch
        %2206 = sbr.rel (%p2204) target = $region96
      $region95: #{tpu_custom_call.1} parent=5 // pred_region
        %s2207 = ssub.s32 %s29, 2
        // Predicated region
        $region97: #{tpu_custom_call.1} parent=95 // pred_check
          %p2208 = pneg %p356
        $region98: #{tpu_custom_call.1} parent=95 // pred_check_branch
          %2210 = sbr.rel (%p2208) target = $region100
        $region99: #{tpu_custom_call.1} parent=95 // pred_region
          %s2211 = sand.u32 %s341, 1
          %s2212 = scalar_lea.sflag [#allocation5], %s2211
          %s2213 = sand.u32 %s341, 1
          %s2214 = smul.addr %s2213, 8
          %s2215 = scalar_lea.vmem [#allocation11], %s2214
          %2216 = dma.done %s2212, 128
        $region100: #{tpu_custom_call.1} parent=95 // pred_fallthru
          _
      $region96: #{tpu_custom_call.1} parent=5 // pred_fallthru
        _
    $region6: #{tpu_custom_call.1} parent=1 // loop_footer
      %s33 = sadd.s32 1, %s29
    $region7: #{tpu_custom_call.1} parent=1 // loop_footer_branch
      %28 = sbr.rel target = $region3
    $region8: #{tpu_custom_call.1} parent=1 // loop_exit
      _
    %2217 = vsyncpa [#allocation4], 1
    %s2218 = scalar_lea.sflag [#allocation4], 1
    %2219 = vsyncpa %s2218, 1
    %2220 = vsyncpa [#allocation7], 1
    %s2221 = scalar_lea.sflag [#allocation7], 1
    %2222 = vsyncpa %s2221, 1
    %2223 = vsyncpa [#allocation10], 1
    %s2224 = scalar_lea.sflag [#allocation10], 1
    %2225 = vsyncpa %s2224, 1
    %2226 = vsyncpa [#allocation5], 1
    %s2227 = scalar_lea.sflag [#allocation5], 1
    %2228 = vsyncpa %s2227, 1

// kernel: tpu_custom_call.1
$region0: #{tpu_custom_call.1}
  #allocation0 [shape = 'u32[]', space=smem, size = 0x4, offset = 0x4, fixed_abs, tag = 'smem constant byte address 0x4 - core index']
  #allocation1 [shape = 'u32[144,128]{1,0:T(1,128)}', space=vmem, size = 0x12000, scoped, tag = 'internal scratch']
  #allocation2 [shape = 'f32[8,128]{1,0:T(8,128)}', space=vmem, size = 0x1000, scoped, tag = 'scratch operand']
  %s0 = inlined_call_operand.hbm [shape: f32[16,128], index: 0, kind: input, shape index: {}]
  %s1 = inlined_call_operand.vmem [shape: f32[2,1,128], index: 1, kind: input, shape index: {}]
  %s2 = inlined_call_operand.vmem [shape: f32[2,1,128], index: 2, kind: input, shape index: {}]
  %s3 = inlined_call_operand.hbm [shape: bf16[2,128,128], index: 3, kind: input, shape index: {}]
  %s4 = inlined_call_operand.vmem [shape: f32[2,1,128], index: 4, kind: input, shape index: {}]
  %s5 = inlined_call_operand.vmem [shape: f32[2,1,128], index: 5, kind: input, shape index: {}]
  %s6 = inlined_call_operand.vmem [shape: f32[2,1,128], index: 6, kind: input, shape index: {}]
  %s7 = inlined_call_operand.hbm [shape: bf16[2,128,1024], index: 7, kind: input, shape index: {}]
  %s8 = inlined_call_operand.vmem [shape: f32[2,1,1024], index: 8, kind: input, shape index: {}]
  %s9 = inlined_call_operand.hbm [shape: bf16[2,1024,128], index: 9, kind: input, shape index: {}]
  %s10 = inlined_call_operand.vmem [shape: f32[2,1,128], index: 10, kind: input, shape index: {}]
  %s11 = inlined_call_operand.hbm [shape: f32[16,128], index: 11, kind: output, shape index: {}]
  %s12 = sld [smem:[#allocation0]]
  $region101: #{tpu_custom_call.1} parent=0
    _
  %s14 = ssub.s32 1, %s12
  %s15 = scalar_select 0, %s14, %s12
  $region1: #{tpu_custom_call.1} parent=0
    #allocation3 [shape = 'u8[8192]{0}', space=vmem, size = 0x2000, scoped, tag = 'input window, operand 0']
    #allocation4 [shape = 's32[2]{0}', space=sflag, size = 0x8, scoped, tag = 'scoped memory for tpu_custom_call.1']
    #allocation5 [shape = 's32[2]{0}', space=sflag, size = 0x8, scoped, tag = 'scoped memory for tpu_custom_call.1']
    #allocation6 [shape = 'u8[65536]{0}', space=vmem, size = 0x10000, scoped, tag = 'input window, operand 3']
    #allocation7 [shape = 's32[2]{0}', space=sflag, size = 0x8, scoped, tag = 'scoped memory for tpu_custom_call.1']
    #allocation8 [shape = 'u8[524288]{0}', space=vmem, size = 0x80000, scoped, tag = 'input window, operand 7']
    #allocation9 [shape = 'u8[524288]{0}', space=vmem, size = 0x80000, scoped, tag = 'input window, operand 9']
    #allocation10 [shape = 's32[2]{0}', space=sflag, size = 0x8, scoped, tag = 'scoped memory for tpu_custom_call.1']
    #allocation11 [shape = 'u8[8192]{0}', space=vmem, size = 0x2000, scoped, tag = 'output window, operand 0']
    %16 = vsyncpa [#allocation4], 0
    %s17 = scalar_lea.sflag [#allocation4], 1
    %18 = vsyncpa %s17, 0
    %19 = vsyncpa [#allocation7], 0
    %s20 = scalar_lea.sflag [#allocation7], 1
    %21 = vsyncpa %s20, 0
    %22 = vsyncpa [#allocation10], 0
    %s23 = scalar_lea.sflag [#allocation10], 1
    %24 = vsyncpa %s23, 0
    %25 = vsyncpa [#allocation5], 0
    %s26 = scalar_lea.sflag [#allocation5], 1
    %27 = vsyncpa %s26, 0
    loop: start=0, step=1, limit=6
    $region2: #{tpu_custom_call.1} parent=1 // loop_pre_header
      _
    $region3: #{tpu_custom_call.1} parent=1 // loop_header
      %s29 = sphi 0, %s33
      %p30 = scmp.ge.s32.totalorder %s29, 6
      %s36 = sphi 0, %s48
      %s37 = sphi 0, %s44
      %s38 = sphi 0, %s36
      %s39 = sphi 0, %s37
      %s40 = sphi 0, %s38
      %s41 = sphi 0, %s39
      %s51 = sphi 0, %s53
      %s54 = sphi 0, %s51
      %s55 = sphi 0, %s54
      %s71 = sphi 0, %s55
      %s77 = sphi 0, %s79
      %s80 = sphi 0, %s77
      %s81 = sphi 0, %s80
      %s97 = sphi 0, %s81
      %s103 = sphi 0, %s105
      %s106 = sphi 0, %s103
      %s107 = sphi 0, %s106
      %s123 = sphi 0, %s107
      %s129 = sphi 0, %s131
      %s132 = sphi 0, %s129
      %s133 = sphi 0, %s132
      %s149 = sphi 0, %s133
      %s155 = sphi 0, %s157
      %s158 = sphi 0, %s155
      %s159 = sphi 0, %s158
      %s175 = sphi 0, %s159
      %s181 = sphi 0, %s183
      %s184 = sphi 0, %s181
      %s185 = sphi 0, %s184
      %s201 = sphi 0, %s185
      %s207 = sphi 0, %s209
      %s210 = sphi 0, %s207
      %s211 = sphi 0, %s210
      %s227 = sphi 0, %s211
      %s233 = sphi 0, %s235
      %s236 = sphi 0, %s233
      %s237 = sphi 0, %s236
      %s253 = sphi 0, %s237
      %s259 = sphi 0, %s261
      %s262 = sphi 0, %s259
      %s263 = sphi 0, %s262
      %s279 = sphi 0, %s263
      %s285 = sphi 0, %s287
      %s288 = sphi 0, %s285
      %s289 = sphi 0, %s288
      %s305 = sphi 0, %s289
      %s311 = sphi 0, %s313
      %s314 = sphi 0, %s311
      %s315 = sphi 0, %s314
      %s331 = sphi 0, %s315
      %s337 = sphi 0, %s339
      %s340 = sphi 0, %s337
      %s341 = sphi 0, %s340
      %s357 = sphi 0, %s341
    $region4: #{tpu_custom_call.1} parent=1 // loop_header_branch
      %32 = sbr.rel (%p30) target = $region8
    $region5: #{tpu_custom_call.1} parent=1 // loop_body
      %s34 = ssub.s32 %s29, 1
      %s35 = ssub.s32 %s29, 2
      %s42 = sadd.s32 1, %s37
      %p43 = scmp.ge.s32.totalorder %s42, 2
      %s44 = scalar_select %p43, 0, %s42
      %s45 = sadd.s32 1, %s36
      %s46 = scalar_select %p43, %s45, %s36
      %p47 = scmp.ge.s32.totalorder %s46, 2
      %s48 = scalar_select %p47, 0, %s46
      %s49 = ssub.s32 %s36, %s48
      %p50 = scmp.eq.s32.totalorder %s49, 0
      %s52 = sadd.s32 %s51, 1
      %s53 = scalar_select %p50, %s51, %s52
      %p56 = pneg %p50
      %p57 = scmp.eq.s32.totalorder %s29, 3
      %p58 = por %p56, %p57
      %p59 = scmp.ne.s32.totalorder %s51, %s54
      %p60 = scmp.eq.s32.totalorder %s29, 0
      %p61 = por %p59, %p60
      %p62 = scmp.ne.s32.totalorder %s51, %s54
      %p63 = scmp.eq.s32.totalorder %s34, 3
      %p64 = por %p62, %p63
      %p65 = scmp.ne.s32.totalorder %s54, %s55
      %p66 = scmp.eq.s32.totalorder %s34, 0
      %p67 = por %p65, %p66
      %p68 = scmp.ne.s32.totalorder %s54, %s55
      %p69 = scmp.eq.s32.totalorder %s35, 3
      %p70 = por %p68, %p69
      %p72 = scmp.ne.s32.totalorder %s55, %s71
      %p73 = scmp.eq.s32.totalorder %s35, 0
      %p74 = por %p72, %p73
      %s75 = ssub.s32 %s37, %s44
      %p76 = scmp.eq.s32.totalorder %s75, 0
      %s78 = sadd.s32 %s77, 1
      %s79 = scalar_select %p76, %s77, %s78
      %p82 = pneg %p76
      %p83 = scmp.eq.s32.totalorder %s29, 3
      %p84 = por %p82, %p83
      %p85 = scmp.ne.s32.totalorder %s77, %s80
      %p86 = scmp.eq.s32.totalorder %s29, 0
      %p87 = por %p85, %p86
      %p88 = scmp.ne.s32.totalorder %s77, %s80
      %p89 = scmp.eq.s32.totalorder %s34, 3
      %p90 = por %p88, %p89
      %p91 = scmp.ne.s32.totalorder %s80, %s81
      %p92 = scmp.eq.s32.totalorder %s34, 0
      %p93 = por %p91, %p92
      %p94 = scmp.ne.s32.totalorder %s80, %s81
      %p95 = scmp.eq.s32.totalorder %s35, 3
      %p96 = por %p94, %p95
      %p98 = scmp.ne.s32.totalorder %s81, %s97
      %p99 = scmp.eq.s32.totalorder %s35, 0
      %p100 = por %p98, %p99
      %s101 = ssub.s32 %s37, %s44
      %p102 = scmp.eq.s32.totalorder %s101, 0
      %s104 = sadd.s32 %s103, 1
      %s105 = scalar_select %p102, %s103, %s104
      %p108 = pneg %p102
      %p109 = scmp.eq.s32.totalorder %s29, 3
      %p110 = por %p108, %p109
      %p111 = scmp.ne.s32.totalorder %s103, %s106
      %p112 = scmp.eq.s32.totalorder %s29, 0
      %p113 = por %p111, %p112
      %p114 = scmp.ne.s32.totalorder %s103, %s106
      %p115 = scmp.eq.s32.totalorder %s34, 3
      %p116 = por %p114, %p115
      %p117 = scmp.ne.s32.totalorder %s106, %s107
      %p118 = scmp.eq.s32.totalorder %s34, 0
      %p119 = por %p117, %p118
      %p120 = scmp.ne.s32.totalorder %s106, %s107
      %p121 = scmp.eq.s32.totalorder %s35, 3
      %p122 = por %p120, %p121
      %p124 = scmp.ne.s32.totalorder %s107, %s123
      %p125 = scmp.eq.s32.totalorder %s35, 0
      %p126 = por %p124, %p125
      %s127 = ssub.s32 %s37, %s44
      %p128 = scmp.eq.s32.totalorder %s127, 0
      %s130 = sadd.s32 %s129, 1
      %s131 = scalar_select %p128, %s129, %s130
      %p134 = pneg %p128
      %p135 = scmp.eq.s32.totalorder %s29, 3
      %p136 = por %p134, %p135
      %p137 = scmp.ne.s32.totalorder %s129, %s132
      %p138 = scmp.eq.s32.totalorder %s29, 0
      %p139 = por %p137, %p138
      %p140 = scmp.ne.s32.totalorder %s129, %s132
      %p141 = scmp.eq.s32.totalorder %s34, 3
      %p142 = por %p140, %p141
      %p143 = scmp.ne.s32.totalorder %s132, %s133
      %p144 = scmp.eq.s32.totalorder %s34, 0
      %p145 = por %p143, %p144
      %p146 = scmp.ne.s32.totalorder %s132, %s133
      %p147 = scmp.eq.s32.totalorder %s35, 3
      %p148 = por %p146, %p147
      %p150 = scmp.ne.s32.totalorder %s133, %s149
      %p151 = scmp.eq.s32.totalorder %s35, 0
      %p152 = por %p150, %p151
      %s153 = ssub.s32 %s37, %s44
      %p154 = scmp.eq.s32.totalorder %s153, 0
      %s156 = sadd.s32 %s155, 1
      %s157 = scalar_select %p154, %s155, %s156
      %p160 = pneg %p154
      %p161 = scmp.eq.s32.totalorder %s29, 3
      %p162 = por %p160, %p161
      %p163 = scmp.ne.s32.totalorder %s155, %s158
      %p164 = scmp.eq.s32.totalorder %s29, 0
      %p165 = por %p163, %p164
      %p166 = scmp.ne.s32.totalorder %s155, %s158
      %p167 = scmp.eq.s32.totalorder %s34, 3
      %p168 = por %p166, %p167
      %p169 = scmp.ne.s32.totalorder %s158, %s159
      %p170 = scmp.eq.s32.totalorder %s34, 0
      %p171 = por %p169, %p170
      %p172 = scmp.ne.s32.totalorder %s158, %s159
      %p173 = scmp.eq.s32.totalorder %s35, 3
      %p174 = por %p172, %p173
      %p176 = scmp.ne.s32.totalorder %s159, %s175
      %p177 = scmp.eq.s32.totalorder %s35, 0
      %p178 = por %p176, %p177
      %s179 = ssub.s32 %s37, %s44
      %p180 = scmp.eq.s32.totalorder %s179, 0
      %s182 = sadd.s32 %s181, 1
      %s183 = scalar_select %p180, %s181, %s182
      %p186 = pneg %p180
      %p187 = scmp.eq.s32.totalorder %s29, 3
      %p188 = por %p186, %p187
      %p189 = scmp.ne.s32.totalorder %s181, %s184
      %p190 = scmp.eq.s32.totalorder %s29, 0
      %p191 = por %p189, %p190
      %p192 = scmp.ne.s32.totalorder %s181, %s184
      %p193 = scmp.eq.s32.totalorder %s34, 3
      %p194 = por %p192, %p193
      %p195 = scmp.ne.s32.totalorder %s184, %s185
      %p196 = scmp.eq.s32.totalorder %s34, 0
      %p197 = por %p195, %p196
      %p198 = scmp.ne.s32.totalorder %s184, %s185
      %p199 = scmp.eq.s32.totalorder %s35, 3
      %p200 = por %p198, %p199
      %p202 = scmp.ne.s32.totalorder %s185, %s201
      %p203 = scmp.eq.s32.totalorder %s35, 0
      %p204 = por %p202, %p203
      %s205 = ssub.s32 %s37, %s44
      %p206 = scmp.eq.s32.totalorder %s205, 0
      %s208 = sadd.s32 %s207, 1
      %s209 = scalar_select %p206, %s207, %s208
      %p212 = pneg %p206
      %p213 = scmp.eq.s32.totalorder %s29, 3
      %p214 = por %p212, %p213
      %p215 = scmp.ne.s32.totalorder %s207, %s210
      %p216 = scmp.eq.s32.totalorder %s29, 0
      %p217 = por %p215, %p216
      %p218 = scmp.ne.s32.totalorder %s207, %s210
      %p219 = scmp.eq.s32.totalorder %s34, 3
      %p220 = por %p218, %p219
      %p221 = scmp.ne.s32.totalorder %s210, %s211
      %p222 = scmp.eq.s32.totalorder %s34, 0
      %p223 = por %p221, %p222
      %p224 = scmp.ne.s32.totalorder %s210, %s211
      %p225 = scmp.eq.s32.totalorder %s35, 3
      %p226 = por %p224, %p225
      %p228 = scmp.ne.s32.totalorder %s211, %s227
      %p229 = scmp.eq.s32.totalorder %s35, 0
      %p230 = por %p228, %p229
      %s231 = ssub.s32 %s37, %s44
      %p232 = scmp.eq.s32.totalorder %s231, 0
      %s234 = sadd.s32 %s233, 1
      %s235 = scalar_select %p232, %s233, %s234
      %p238 = pneg %p232
      %p239 = scmp.eq.s32.totalorder %s29, 3
      %p240 = por %p238, %p239
      %p241 = scmp.ne.s32.totalorder %s233, %s236
      %p242 = scmp.eq.s32.totalorder %s29, 0
      %p243 = por %p241, %p242
      %p244 = scmp.ne.s32.totalorder %s233, %s236
      %p245 = scmp.eq.s32.totalorder %s34, 3
      %p246 = por %p244, %p245
      %p247 = scmp.ne.s32.totalorder %s236, %s237
      %p248 = scmp.eq.s32.totalorder %s34, 0
      %p249 = por %p247, %p248
      %p250 = scmp.ne.s32.totalorder %s236, %s237
      %p251 = scmp.eq.s32.totalorder %s35, 3
      %p252 = por %p250, %p251
      %p254 = scmp.ne.s32.totalorder %s237, %s253
      %p255 = scmp.eq.s32.totalorder %s35, 0
      %p256 = por %p254, %p255
      %s257 = ssub.s32 %s37, %s44
      %p258 = scmp.eq.s32.totalorder %s257, 0
      %s260 = sadd.s32 %s259, 1
      %s261 = scalar_select %p258, %s259, %s260
      %p264 = pneg %p258
      %p265 = scmp.eq.s32.totalorder %s29, 3
      %p266 = por %p264, %p265
      %p267 = scmp.ne.s32.totalorder %s259, %s262
      %p268 = scmp.eq.s32.totalorder %s29, 0
      %p269 = por %p267, %p268
      %p270 = scmp.ne.s32.totalorder %s259, %s262
      %p271 = scmp.eq.s32.totalorder %s34, 3
      %p272 = por %p270, %p271
      %p273 = scmp.ne.s32.totalorder %s262, %s263
      %p274 = scmp.eq.s32.totalorder %s34, 0
      %p275 = por %p273, %p274
      %p276 = scmp.ne.s32.totalorder %s262, %s263
      %p277 = scmp.eq.s32.totalorder %s35, 3
      %p278 = por %p276, %p277
      %p280 = scmp.ne.s32.totalorder %s263, %s279
      %p281 = scmp.eq.s32.totalorder %s35, 0
      %p282 = por %p280, %p281
      %s283 = ssub.s32 %s37, %s44
      %p284 = scmp.eq.s32.totalorder %s283, 0
      %s286 = sadd.s32 %s285, 1
      %s287 = scalar_select %p284, %s285, %s286
      %p290 = pneg %p284
      %p291 = scmp.eq.s32.totalorder %s29, 3
      %p292 = por %p290, %p291
      %p293 = scmp.ne.s32.totalorder %s285, %s288
      %p294 = scmp.eq.s32.totalorder %s29, 0
      %p295 = por %p293, %p294
      %p296 = scmp.ne.s32.totalorder %s285, %s288
      %p297 = scmp.eq.s32.totalorder %s34, 3
      %p298 = por %p296, %p297
      %p299 = scmp.ne.s32.totalorder %s288, %s289
      %p300 = scmp.eq.s32.totalorder %s34, 0
      %p301 = por %p299, %p300
      %p302 = scmp.ne.s32.totalorder %s288, %s289
      %p303 = scmp.eq.s32.totalorder %s35, 3
      %p304 = por %p302, %p303
      %p306 = scmp.ne.s32.totalorder %s289, %s305
      %p307 = scmp.eq.s32.totalorder %s35, 0
      %p308 = por %p306, %p307
      %s309 = ssub.s32 %s37, %s44
      %p310 = scmp.eq.s32.totalorder %s309, 0
      %s312 = sadd.s32 %s311, 1
      %s313 = scalar_select %p310, %s311, %s312
      %p316 = pneg %p310
      %p317 = scmp.eq.s32.totalorder %s29, 3
      %p318 = por %p316, %p317
      %p319 = scmp.ne.s32.totalorder %s311, %s314
      %p320 = scmp.eq.s32.totalorder %s29, 0
      %p321 = por %p319, %p320
      %p322 = scmp.ne.s32.totalorder %s311, %s314
      %p323 = scmp.eq.s32.totalorder %s34, 3
      %p324 = por %p322, %p323
      %p325 = scmp.ne.s32.totalorder %s314, %s315
      %p326 = scmp.eq.s32.totalorder %s34, 0
      %p327 = por %p325, %p326
      %p328 = scmp.ne.s32.totalorder %s314, %s315
      %p329 = scmp.eq.s32.totalorder %s35, 3
      %p330 = por %p328, %p329
      %p332 = scmp.ne.s32.totalorder %s315, %s331
      %p333 = scmp.eq.s32.totalorder %s35, 0
      %p334 = por %p332, %p333
      %s335 = ssub.s32 %s36, %s48
      %p336 = scmp.eq.s32.totalorder %s335, 0
      %s338 = sadd.s32 %s337, 1
      %s339 = scalar_select %p336, %s337, %s338
      %p342 = pneg %p336
      %p343 = scmp.eq.s32.totalorder %s29, 3
      %p344 = por %p342, %p343
      %p345 = scmp.ne.s32.totalorder %s337, %s340
      %p346 = scmp.eq.s32.totalorder %s29, 0
      %p347 = por %p345, %p346
      %p348 = scmp.ne.s32.totalorder %s337, %s340
      %p349 = scmp.eq.s32.totalorder %s34, 3
      %p350 = por %p348, %p349
      %p351 = scmp.ne.s32.totalorder %s340, %s341
      %p352 = scmp.eq.s32.totalorder %s34, 0
      %p353 = por %p351, %p352
      %p354 = scmp.ne.s32.totalorder %s340, %s341
      %p355 = scmp.eq.s32.totalorder %s35, 3
      %p356 = por %p354, %p355
      %p358 = scmp.ne.s32.totalorder %s341, %s357
      %p359 = scmp.eq.s32.totalorder %s35, 0
      %p360 = por %p358, %p359
      %p361 = scmp.le.s32.totalorder 1, %s29
      %p362 = scmp.lt.s32.totalorder %s29, 5
      %p363 = pnand %p361, %p362
      %p364 = pneg %p363
      // Predicated region
      $region9: #{tpu_custom_call.1} parent=5 // pred_check
        _
      $region10: #{tpu_custom_call.1} parent=5 // pred_check_branch
        %366 = sbr.rel (%p363) target = $region12
      $region11: #{tpu_custom_call.1} parent=5 // pred_region
        %s367 = ssub.s32 %s29, 1
      $region12: #{tpu_custom_call.1} parent=5 // pred_fallthru
        _
      %p368 = scmp.lt.s32.totalorder %s29, 4
      // Predicated region
      $region13: #{tpu_custom_call.1} parent=5 // pred_check
        %p369 = pneg %p368
      $region14: #{tpu_custom_call.1} parent=5 // pred_check_branch
        %371 = sbr.rel (%p369) target = $region16
      $region15: #{tpu_custom_call.1} parent=5 // pred_region
        // Predicated region
        $region17: #{tpu_custom_call.1} parent=15 // pred_check
          %p372 = pneg %p61
        $region18: #{tpu_custom_call.1} parent=15 // pred_check_branch
          %374 = sbr.rel (%p372) target = $region20
        $region19: #{tpu_custom_call.1} parent=15 // pred_region
          %s375 = sand.u32 %s51, 1
          %s376 = scalar_lea.sflag [#allocation4], %s375
          %s377 = sand.u32 %s51, 1
          %s378 = smul.addr %s377, 8
          %s379 = scalar_lea.vmem [#allocation3], %s378
          %s381 = ssub.s32 128, 128
          %382 = vsyncadd %s376, %s381
          %s383 = smul.addr %s36, 128
          %s384 = scalar_lea.hbm %s0, %s383
          %s386 = sshll.u32 %s379, 4
          %s387 = int_to_ptr.vmem [resolvable:$true] %s386
          %389 = dma.hbm_to_vmem [thread:$0]  %s384, 128, %s387, %s376
        $region20: #{tpu_custom_call.1} parent=15 // pred_fallthru
          _
        // Predicated region
        $region21: #{tpu_custom_call.1} parent=15 // pred_check
          %p390 = pneg %p87
        $region22: #{tpu_custom_call.1} parent=15 // pred_check_branch
          %392 = sbr.rel (%p390) target = $region24
        $region23: #{tpu_custom_call.1} parent=15 // pred_region
          %p393 = scmp.lt.s32.totalorder %s37, 1
          %s394 = scalar_select %p393, %s37, 1
          %s395 = scalar_lea.vmem %s1, %s394
        $region24: #{tpu_custom_call.1} parent=15 // pred_fallthru
          _
        // Predicated region
        $region25: #{tpu_custom_call.1} parent=15 // pred_check
          %p396 = pneg %p113
        $region26: #{tpu_custom_call.1} parent=15 // pred_check_branch
          %398 = sbr.rel (%p396) target = $region28
        $region27: #{tpu_custom_call.1} parent=15 // pred_region
          %p399 = scmp.lt.s32.totalorder %s37, 1
          %s400 = scalar_select %p399, %s37, 1
          %s401 = scalar_lea.vmem %s2, %s400
        $region28: #{tpu_custom_call.1} parent=15 // pred_fallthru
          _
        // Predicated region
        $region29: #{tpu_custom_call.1} parent=15 // pred_check
          %p402 = pneg %p139
        $region30: #{tpu_custom_call.1} parent=15 // pred_check_branch
          %404 = sbr.rel (%p402) target = $region32
        $region31: #{tpu_custom_call.1} parent=15 // pred_region
          %s405 = sand.u32 %s29, 1
          %s406 = scalar_lea.sflag [#allocation7], %s405
          %s407 = sand.u32 %s129, 1
          %s408 = smul.addr %s407, 64
          %s409 = scalar_lea.vmem [#allocation6], %s408
          %s411 = ssub.s32 1024, 1024
          %412 = vsyncadd %s406, %s411
          %s413 = smul.addr %s37, 16
          %s414 = smul.addr %s413, 64
          %s415 = scalar_lea.hbm %s3, %s414
          %s416 = sshll.u32 %s409, 4
          %s417 = int_to_ptr.vmem [resolvable:$true] %s416
          %422 = dma.hbm_to_vmem [thread:$0]  %s415, 1024, %s417, %s406, 64, 64, 4
        $region32: #{tpu_custom_call.1} parent=15 // pred_fallthru
          _
        // Predicated region
        $region33: #{tpu_custom_call.1} parent=15 // pred_check
          %p423 = pneg %p165
        $region34: #{tpu_custom_call.1} parent=15 // pred_check_branch
          %425 = sbr.rel (%p423) target = $region36
        $region35: #{tpu_custom_call.1} parent=15 // pred_region
          %p426 = scmp.lt.s32.totalorder %s37, 1
          %s427 = scalar_select %p426, %s37, 1
          %s428 = scalar_lea.vmem %s4, %s427
        $region36: #{tpu_custom_call.1} parent=15 // pred_fallthru
          _
        // Predicated region
        $region37: #{tpu_custom_call.1} parent=15 // pred_check
          %p429 = pneg %p191
        $region38: #{tpu_custom_call.1} parent=15 // pred_check_branch
          %431 = sbr.rel (%p429) target = $region40
        $region39: #{tpu_custom_call.1} parent=15 // pred_region
          %p432 = scmp.lt.s32.totalorder %s37, 1
          %s433 = scalar_select %p432, %s37, 1
          %s434 = scalar_lea.vmem %s5, %s433
        $region40: #{tpu_custom_call.1} parent=15 // pred_fallthru
          _
        // Predicated region
        $region41: #{tpu_custom_call.1} parent=15 // pred_check
          %p435 = pneg %p217
        $region42: #{tpu_custom_call.1} parent=15 // pred_check_branch
          %437 = sbr.rel (%p435) target = $region44
        $region43: #{tpu_custom_call.1} parent=15 // pred_region
          %p438 = scmp.lt.s32.totalorder %s37, 1
          %s439 = scalar_select %p438, %s37, 1
          %s440 = scalar_lea.vmem %s6, %s439
        $region44: #{tpu_custom_call.1} parent=15 // pred_fallthru
          _
        // Predicated region
        $region45: #{tpu_custom_call.1} parent=15 // pred_check
          %p441 = pneg %p243
        $region46: #{tpu_custom_call.1} parent=15 // pred_check_branch
          %443 = sbr.rel (%p441) target = $region48
        $region47: #{tpu_custom_call.1} parent=15 // pred_region
          %s444 = sand.u32 %s29, 1
          %s445 = scalar_lea.sflag [#allocation7], %s444
          %s446 = sand.u32 %s233, 1
          %s447 = smul.addr %s446, 512
          %s448 = scalar_lea.vmem [#allocation8], %s447
          %s450 = ssub.s32 8192, 8192
          %451 = vsyncadd %s445, %s450
          %s452 = smul.addr %s37, 128
          %s453 = smul.addr %s452, 64
          %s454 = scalar_lea.hbm %s7, %s453
          %s455 = sshll.u32 %s448, 4
          %s456 = int_to_ptr.vmem [resolvable:$true] %s455
          %461 = dma.hbm_to_vmem [thread:$0]  %s454, 8192, %s456, %s445, 512, 512, 32
        $region48: #{tpu_custom_call.1} parent=15 // pred_fallthru
          _
        // Predicated region
        $region49: #{tpu_custom_call.1} parent=15 // pred_check
          %p462 = pneg %p269
        $region50: #{tpu_custom_call.1} parent=15 // pred_check_branch
          %464 = sbr.rel (%p462) target = $region52
        $region51: #{tpu_custom_call.1} parent=15 // pred_region
          %p465 = scmp.lt.s32.totalorder %s37, 1
          %s466 = scalar_select %p465, %s37, 1
          %s467 = smul.addr %s466, 8
          %s468 = scalar_lea.vmem %s8, %s467
        $region52: #{tpu_custom_call.1} parent=15 // pred_fallthru
          _
        // Predicated region
        $region53: #{tpu_custom_call.1} parent=15 // pred_check
          %p469 = pneg %p295
        $region54: #{tpu_custom_call.1} parent=15 // pred_check_branch
          %471 = sbr.rel (%p469) target = $region56
        $region55: #{tpu_custom_call.1} parent=15 // pred_region
          %s472 = sand.u32 %s285, 1
          %s473 = scalar_lea.sflag [#allocation10], %s472
          %s474 = sand.u32 %s285, 1
          %s475 = smul.addr %s474, 512
          %s476 = scalar_lea.vmem [#allocation9], %s475
          %s478 = ssub.s32 8192, 8192
          %479 = vsyncadd %s473, %s478
          %s480 = smul.addr %s37, 128
          %s481 = smul.addr %s480, 64
          %s482 = scalar_lea.hbm %s9, %s481
          %s483 = sshll.u32 %s476, 4
          %s484 = int_to_ptr.vmem [resolvable:$true] %s483
          %489 = dma.hbm_to_vmem [thread:$0]  %s482, 8192, %s484, %s473, 64, 64, 4
        $region56: #{tpu_custom_call.1} parent=15 // pred_fallthru
          _
        // Predicated region
        $region57: #{tpu_custom_call.1} parent=15 // pred_check
          %p490 = pneg %p321
        $region58: #{tpu_custom_call.1} parent=15 // pred_check_branch
          %492 = sbr.rel (%p490) target = $region60
        $region59: #{tpu_custom_call.1} parent=15 // pred_region
          %p493 = scmp.lt.s32.totalorder %s37, 1
          %s494 = scalar_select %p493, %s37, 1
          %s495 = scalar_lea.vmem %s10, %s494
        $region60: #{tpu_custom_call.1} parent=15 // pred_fallthru
          _
      $region16: #{tpu_custom_call.1} parent=5 // pred_fallthru
        _
      %p496 = scmp.le.s32.totalorder 1, %s29
      %p497 = scmp.lt.s32.totalorder %s29, 5
      %p498 = pnand %p496, %p497
      %p499 = pneg %p498
      // Predicated region
      $region61: #{tpu_custom_call.1} parent=5 // pred_check
        _
      $region62: #{tpu_custom_call.1} parent=5 // pred_check_branch
        %501 = sbr.rel (%p498) target = $region64
      $region63: #{tpu_custom_call.1} parent=5 // pred_region
        %s502 = ssub.s32 %s29, 1
        %s503 = sand.u32 %s54, 1
        %s504 = scalar_lea.sflag [#allocation4], %s503
        %s505 = sand.u32 %s54, 1
        %s506 = smul.addr %s505, 8
        %s507 = scalar_lea.vmem [#allocation3], %s506
        // Predicated region
        $region65: #{tpu_custom_call.1} parent=63 // pred_check
          %p508 = pneg %p67
        $region66: #{tpu_custom_call.1} parent=63 // pred_check_branch
          %510 = sbr.rel (%p508) target = $region68
        $region67: #{tpu_custom_call.1} parent=63 // pred_region
          %511 = dma.done %s504, 128
        $region68: #{tpu_custom_call.1} parent=63 // pred_fallthru
          _
        %s512 = sand.u32 %s34, 1
        %s513 = scalar_lea.sflag [#allocation7], %s512
        %s514 = sand.u32 %s132, 1
        %s515 = smul.addr %s514, 64
        %s516 = scalar_lea.vmem [#allocation6], %s515
        // Predicated region
        $region69: #{tpu_custom_call.1} parent=63 // pred_check
          %p517 = pneg %p145
        $region70: #{tpu_custom_call.1} parent=63 // pred_check_branch
          %519 = sbr.rel (%p517) target = $region72
        $region71: #{tpu_custom_call.1} parent=63 // pred_region
          %520 = dma.done %s513, 1024
        $region72: #{tpu_custom_call.1} parent=63 // pred_fallthru
          _
        %s521 = sand.u32 %s34, 1
        %s522 = scalar_lea.sflag [#allocation7], %s521
        %s523 = sand.u32 %s236, 1
        %s524 = smul.addr %s523, 512
        %s525 = scalar_lea.vmem [#allocation8], %s524
        // Predicated region
        $region73: #{tpu_custom_call.1} parent=63 // pred_check
          %p526 = pneg %p249
        $region74: #{tpu_custom_call.1} parent=63 // pred_check_branch
          %528 = sbr.rel (%p526) target = $region76
        $region75: #{tpu_custom_call.1} parent=63 // pred_region
          %529 = dma.done %s522, 8192
        $region76: #{tpu_custom_call.1} parent=63 // pred_fallthru
          _
        %s530 = sand.u32 %s288, 1
        %s531 = scalar_lea.sflag [#allocation10], %s530
        %s532 = sand.u32 %s288, 1
        %s533 = smul.addr %s532, 512
        %s534 = scalar_lea.vmem [#allocation9], %s533
        // Predicated region
        $region77: #{tpu_custom_call.1} parent=63 // pred_check
          %p535 = pneg %p301
        $region78: #{tpu_custom_call.1} parent=63 // pred_check_branch
          %537 = sbr.rel (%p535) target = $region80
        $region79: #{tpu_custom_call.1} parent=63 // pred_region
          %538 = dma.done %s531, 8192
        $region80: #{tpu_custom_call.1} parent=63 // pred_fallthru
          _
        %s539 = sand.u32 %s54, 1
        %s540 = scalar_lea.sflag [#allocation4], %s539
        %s541 = sand.u32 %s54, 1
        %s542 = smul.addr %s541, 8
        %s543 = scalar_lea.vmem [#allocation3], %s542
        %p544 = pneg %p67
        %p545 = pneg %p64
        %p546 = scmp.lt.s32.totalorder %s39, 1
        %s547 = scalar_select %p546, %s39, 1
        %s548 = scalar_lea.vmem %s1, %s547
        %p549 = pneg %p93
        %p550 = pneg %p90
        %p551 = scmp.lt.s32.totalorder %s39, 1
        %s552 = scalar_select %p551, %s39, 1
        %s553 = scalar_lea.vmem %s2, %s552
        %p554 = pneg %p119
        %p555 = pneg %p116
        %s556 = sand.u32 %s34, 1
        %s557 = scalar_lea.sflag [#allocation7], %s556
        %s558 = sand.u32 %s132, 1
        %s559 = smul.addr %s558, 64
        %s560 = scalar_lea.vmem [#allocation6], %s559
        %p561 = pneg %p145
        %p562 = pneg %p142
        %p563 = scmp.lt.s32.totalorder %s39, 1
        %s564 = scalar_select %p563, %s39, 1
        %s565 = scalar_lea.vmem %s4, %s564
        %p566 = pneg %p171
        %p567 = pneg %p168
        %p568 = scmp.lt.s32.totalorder %s39, 1
        %s569 = scalar_select %p568, %s39, 1
        %s570 = scalar_lea.vmem %s5, %s569
        %p571 = pneg %p197
        %p572 = pneg %p194
        %p573 = scmp.lt.s32.totalorder %s39, 1
        %s574 = scalar_select %p573, %s39, 1
        %s575 = scalar_lea.vmem %s6, %s574
        %p576 = pneg %p223
        %p577 = pneg %p220
        %s578 = sand.u32 %s34, 1
        %s579 = scalar_lea.sflag [#allocation7], %s578
        %s580 = sand.u32 %s236, 1
        %s581 = smul.addr %s580, 512
        %s582 = scalar_lea.vmem [#allocation8], %s581
        %p583 = pneg %p249
        %p584 = pneg %p246
        %p585 = scmp.lt.s32.totalorder %s39, 1
        %s586 = scalar_select %p585, %s39, 1
        %s587 = smul.addr %s586, 8
        %s588 = scalar_lea.vmem %s8, %s587
        %p589 = pneg %p275
        %p590 = pneg %p272
        %s591 = sand.u32 %s288, 1
        %s592 = scalar_lea.sflag [#allocation10], %s591
        %s593 = sand.u32 %s288, 1
        %s594 = smul.addr %s593, 512
        %s595 = scalar_lea.vmem [#allocation9], %s594
        %p596 = pneg %p301
        %p597 = pneg %p298
        %p598 = scmp.lt.s32.totalorder %s39, 1
        %s599 = scalar_select %p598, %s39, 1
        %s600 = scalar_lea.vmem %s10, %s599
        %p601 = pneg %p327
        %p602 = pneg %p324
        %p603 = pneg %p353
        %p604 = pneg %p350
        %s605 = sand.u32 %s340, 1
        %s606 = scalar_lea.sflag [#allocation5], %s605
        %s607 = sand.u32 %s340, 1
        %s608 = smul.addr %s607, 8
        %s609 = scalar_lea.vmem [#allocation11], %s608
        %p610 = scmp.lt.s32.totalorder %s39, 1
        %s611 = scalar_select %p610, %s39, 1
        %s612 = scalar_lea.vmem %s1, %s611
        %p613 = scmp.lt.s32.totalorder %s39, 1
        %s614 = scalar_select %p613, %s39, 1
        %s615 = scalar_lea.vmem %s2, %s614
        %p616 = scmp.lt.s32.totalorder %s39, 1
        %s617 = scalar_select %p616, %s39, 1
        %s618 = scalar_lea.vmem %s4, %s617
        %p619 = scmp.lt.s32.totalorder %s39, 1
        %s620 = scalar_select %p619, %s39, 1
        %s621 = scalar_lea.vmem %s5, %s620
        %p622 = scmp.lt.s32.totalorder %s39, 1
        %s623 = scalar_select %p622, %s39, 1
        %s624 = scalar_lea.vmem %s6, %s623
        %p625 = scmp.lt.s32.totalorder %s39, 1
        %s626 = scalar_select %p625, %s39, 1
        %s627 = smul.addr %s626, 8
        %s628 = scalar_lea.vmem %s8, %s627
        %p629 = scmp.lt.s32.totalorder %s39, 1
        %s630 = scalar_select %p629, %s39, 1
        %s631 = scalar_lea.vmem %s10, %s630
        %p637 = scmp.eq.s32.totalorder %s39, 0
        // Predicated region
        $region81: #{tpu_custom_call.1} parent=63 // pred_check
          %p638 = pneg %p637
        $region82: #{tpu_custom_call.1} parent=63 // pred_check_branch
          %640 = sbr.rel (%p638) target = $region84
        $region83: #{tpu_custom_call.1} parent=63 // pred_region
          %v641 = vld [vmem:[%s507] sm:$0xff]
          %642 = vst [vmem:[#allocation2] sm:$0xff] %v641
        $region84: #{tpu_custom_call.1} parent=63 // pred_fallthru
          _
        %v643 = vld [vmem:[#allocation2] sm:$0xff]
        %v644 = vld [vmem:[%s612] sm:$0x1]
        %v645 = vld [vmem:[%s615] sm:$0x1]
        %646 = vadd.xlane.f32.xlu0 %v643
        %v647 = vpop.xlane.xlu0 %646
        %v648 = vrcp.pop 128.0
        %v649 = vmul.f32 %v647, %v648
        %v650 = vsub.f32 %v643, %v649
        %v651 = vmul.f32 %v650, %v650
        %652 = vadd.xlane.f32.xlu0 %v651
        %v653 = vpop.xlane.xlu0 %652
        %v654 = vmul.f32 %v653, 0.007874016
        %v655 = vrsqrt.pop %v654
        %v656 = vmul.f32 %v654, %v655
        %vm657 = vcmp.eq.f32.partialorder %v654, inf
        %v658 = vsel %vm657, %v654, %v656
        %vm659 = vcmp.eq.f32.partialorder %v654, 0.0
        %v660 = vand.u32 %v654, 2147483648
        %v661 = vsel %vm659, %v660, %v658
        %v662 = vadd.f32 %v661, 1e-06
        %v663 = vrcp.pop %v662
        %v664 = vmul.f32 1.0, %v663
        %v665 = vmul.f32 %v650, %v664
        %v667 = vlaneseq
        %v668 = vshrl.u32 %v667, 7
        %v669 = vsub.s32 0, %v668
        %v670 = vrot.slane %v644, %v669
        %v672 = vmul.f32 %v670, %v665
        %v674 = vlaneseq
        %v675 = vshrl.u32 %v674, 7
        %v676 = vsub.s32 0, %v675
        %v677 = vrot.slane %v645, %v676
        %v679 = vadd.f32 %v672, %v677
        %v680 = vpack.c.bf16 %v679, %v679
        %v681 = vld [vmem:[%s516] sm:$0xf]
        %v682 = vld [vmem:[%s516 + $0x4] sm:$0xf]
        %v683 = vld [vmem:[%s516 + $0x8] sm:$0xf]
        %v684 = vld [vmem:[%s516 + $0xc] sm:$0xf]
        %v685 = vld [vmem:[%s516 + $0x10] sm:$0xf]
        %v686 = vld [vmem:[%s516 + $0x14] sm:$0xf]
        %v687 = vld [vmem:[%s516 + $0x18] sm:$0xf]
        %v688 = vld [vmem:[%s516 + $0x1c] sm:$0xf]
        %v689 = vld [vmem:[%s516 + $0x20] sm:$0xf]
        %v690 = vld [vmem:[%s516 + $0x24] sm:$0xf]
        %v691 = vld [vmem:[%s516 + $0x28] sm:$0xf]
        %v692 = vld [vmem:[%s516 + $0x2c] sm:$0xf]
        %v693 = vld [vmem:[%s516 + $0x30] sm:$0xf]
        %v694 = vld [vmem:[%s516 + $0x34] sm:$0xf]
        %v695 = vld [vmem:[%s516 + $0x38] sm:$0xf]
        %v696 = vld [vmem:[%s516 + $0x3c] sm:$0xf]
        %v697 = vld [vmem:[%s618] sm:$0x1]
        %v699 = vlaneseq
        %v700 = vshrl.u32 %v699, 7
        %v701 = vsub.s32 0, %v700
        %v702 = vrot.slane %v697, %v701
        %v720 = vunpack.c.l.b16 %v681
        %v721 = vunpack.c.l.b16 %v682
        %v722 = vunpack.c.l.b16 %v683
        %v723 = vunpack.c.l.b16 %v684
        %v724 = vunpack.c.l.b16 %v685
        %v725 = vunpack.c.l.b16 %v686
        %v726 = vunpack.c.l.b16 %v687
        %v727 = vunpack.c.l.b16 %v688
        %v728 = vunpack.c.l.b16 %v689
        %v729 = vunpack.c.l.b16 %v690
        %v730 = vunpack.c.l.b16 %v691
        %v731 = vunpack.c.l.b16 %v692
        %v732 = vunpack.c.l.b16 %v693
        %v733 = vunpack.c.l.b16 %v694
        %v734 = vunpack.c.l.b16 %v695
        %v735 = vunpack.c.l.b16 %v696
        %v736 = vpack.c.b16 %v721, %v720
        %v737 = vpack.c.b16 %v723, %v722
        %v738 = vpack.c.b16 %v725, %v724
        %v739 = vpack.c.b16 %v727, %v726
        %v740 = vpack.c.b16 %v729, %v728
        %v741 = vpack.c.b16 %v731, %v730
        %v742 = vpack.c.b16 %v733, %v732
        %v743 = vpack.c.b16 %v735, %v734
        %752 = vmatprep.subr.bf16.mxu0 0
        %753 = vmatpush1.bf16.msra.mxu0 %v736
        %754 = vmatprep.subr.bf16.mxu0 0
        %755 = vmatpush1.bf16.msra.mxu0 %v737
        %756 = vmatprep.subr.bf16.mxu0 0
        %757 = vmatpush1.bf16.msra.mxu0 %v738
        %758 = vmatprep.subr.bf16.mxu0 0
        %759 = vmatpush1.bf16.msra.mxu0 %v739
        %760 = vmatprep.subr.bf16.mxu0 0
        %761 = vmatpush1.bf16.msra.mxu0 %v740
        %762 = vmatprep.subr.bf16.mxu0 0
        %763 = vmatpush1.bf16.msra.mxu0 %v741
        %764 = vmatprep.subr.bf16.mxu0 0
        %765 = vmatpush1.bf16.msra.mxu0 %v742
        %766 = vmatprep.subr.bf16.mxu0 0
        %767 = vmatpush1.bf16.msra.mxu0 %v743
        %768 = vmatprep.subr.bf16.mxu0 0
        %769 = vmatpush1.bf16.msra.mxu0 0
        %770 = vmatprep.subr.bf16.mxu0 0
        %771 = vmatpush1.bf16.msra.mxu0 0
        %772 = vmatprep.subr.bf16.mxu0 0
        %773 = vmatpush1.bf16.msra.mxu0 0
        %774 = vmatprep.subr.bf16.mxu0 0
        %775 = vmatpush1.bf16.msra.mxu0 0
        %776 = vmatprep.subr.bf16.mxu0 0
        %777 = vmatpush1.bf16.msra.mxu0 0
        %778 = vmatprep.subr.bf16.mxu0 0
        %779 = vmatpush1.bf16.msra.mxu0 0
        %780 = vmatprep.subr.bf16.mxu0 0
        %781 = vmatpush1.bf16.msra.mxu0 0
        %782 = vmatprep.subr.bf16.mxu0 0
        %783 = vmatpush1.bf16.msra.mxu0 0
        %784 = vmatprep.mubr.bf16.mxu0 0
        %785 = vmatmul.mubr.bf16.gmra.mrb[0].mxu0 %v680
        %v786 = vpop.f32.mrb[0].mxu0
        %v787 = vadd.f32 %v702, %v786
        %v788 = vpop.f32.mrb[0].mxu0
        %v789 = vpop.f32.mrb[0].mxu0
        %v790 = vpop.f32.mrb[0].mxu0
        %791 = vdwg.mxu0
        %v792 = vadd.f32 %v643, %v787
        %v793 = vld [vmem:[%s621] sm:$0x1]
        %v794 = vld [vmem:[%s624] sm:$0x1]
        %795 = vadd.xlane.f32.xlu0 %v792
        %v796 = vpop.xlane.xlu0 %795
        %v797 = vmul.f32 %v796, %v648
        %v798 = vsub.f32 %v792, %v797
        %v799 = vmul.f32 %v798, %v798
        %800 = vadd.xlane.f32.xlu0 %v799
        %v801 = vpop.xlane.xlu0 %800
        %v802 = vmul.f32 %v801, 0.007874016
        %v803 = vrsqrt.pop %v802
        %v804 = vmul.f32 %v802, %v803
        %vm805 = vcmp.eq.f32.partialorder %v802, inf
        %v806 = vsel %vm805, %v802, %v804
        %vm807 = vcmp.eq.f32.partialorder %v802, 0.0
        %v808 = vand.u32 %v802, 2147483648
        %v809 = vsel %vm807, %v808, %v806
        %v810 = vadd.f32 %v809, 1e-06
        %v811 = vrcp.pop %v810
        %v812 = vmul.f32 1.0, %v811
        %v813 = vmul.f32 %v798, %v812
        %v815 = vlaneseq
        %v816 = vshrl.u32 %v815, 7
        %v817 = vsub.s32 0, %v816
        %v818 = vrot.slane %v793, %v817
        %v820 = vmul.f32 %v818, %v813
        %v822 = vlaneseq
        %v823 = vshrl.u32 %v822, 7
        %v824 = vsub.s32 0, %v823
        %v825 = vrot.slane %v794, %v824
        %v827 = vadd.f32 %v820, %v825
        %v828 = vpack.c.bf16 %v827, %v827
        %v829 = vld [vmem:[%s525] sm:$0xff]
        %v830 = vld [vmem:[%s525 + $0x8] sm:$0xff]
        %v831 = vld [vmem:[%s525 + $0x10] sm:$0xff]
        %v832 = vld [vmem:[%s525 + $0x18] sm:$0xff]
        %v833 = vld [vmem:[%s525 + $0x20] sm:$0xff]
        %v834 = vld [vmem:[%s525 + $0x28] sm:$0xff]
        %v835 = vld [vmem:[%s525 + $0x30] sm:$0xff]
        %v836 = vld [vmem:[%s525 + $0x38] sm:$0xff]
        %v837 = vld [vmem:[%s525 + $0x40] sm:$0xff]
        %v838 = vld [vmem:[%s525 + $0x48] sm:$0xff]
        %v839 = vld [vmem:[%s525 + $0x50] sm:$0xff]
        %v840 = vld [vmem:[%s525 + $0x58] sm:$0xff]
        %v841 = vld [vmem:[%s525 + $0x60] sm:$0xff]
        %v842 = vld [vmem:[%s525 + $0x68] sm:$0xff]
        %v843 = vld [vmem:[%s525 + $0x70] sm:$0xff]
        %v844 = vld [vmem:[%s525 + $0x78] sm:$0xff]
        %v845 = vld [vmem:[%s525 + $0x80] sm:$0xff]
        %v846 = vld [vmem:[%s525 + $0x88] sm:$0xff]
        %v847 = vld [vmem:[%s525 + $0x90] sm:$0xff]
        %v848 = vld [vmem:[%s525 + $0x98] sm:$0xff]
        %v849 = vld [vmem:[%s525 + $0xa0] sm:$0xff]
        %v850 = vld [vmem:[%s525 + $0xa8] sm:$0xff]
        %v851 = vld [vmem:[%s525 + $0xb0] sm:$0xff]
        %v852 = vld [vmem:[%s525 + $0xb8] sm:$0xff]
        %v853 = vld [vmem:[%s525 + $0xc0] sm:$0xff]
        %v854 = vld [vmem:[%s525 + $0xc8] sm:$0xff]
        %v855 = vld [vmem:[%s525 + $0xd0] sm:$0xff]
        %v856 = vld [vmem:[%s525 + $0xd8] sm:$0xff]
        %v857 = vld [vmem:[%s525 + $0xe0] sm:$0xff]
        %v858 = vld [vmem:[%s525 + $0xe8] sm:$0xff]
        %v859 = vld [vmem:[%s525 + $0xf0] sm:$0xff]
        %v860 = vld [vmem:[%s525 + $0xf8] sm:$0xff]
        %v861 = vld [vmem:[%s525 + $0x100] sm:$0xff]
        %v862 = vld [vmem:[%s525 + $0x108] sm:$0xff]
        %v863 = vld [vmem:[%s525 + $0x110] sm:$0xff]
        %v864 = vld [vmem:[%s525 + $0x118] sm:$0xff]
        %v865 = vld [vmem:[%s525 + $0x120] sm:$0xff]
        %v866 = vld [vmem:[%s525 + $0x128] sm:$0xff]
        %v867 = vld [vmem:[%s525 + $0x130] sm:$0xff]
        %v868 = vld [vmem:[%s525 + $0x138] sm:$0xff]
        %v869 = vld [vmem:[%s525 + $0x140] sm:$0xff]
        %v870 = vld [vmem:[%s525 + $0x148] sm:$0xff]
        %v871 = vld [vmem:[%s525 + $0x150] sm:$0xff]
        %v872 = vld [vmem:[%s525 + $0x158] sm:$0xff]
        %v873 = vld [vmem:[%s525 + $0x160] sm:$0xff]
        %v874 = vld [vmem:[%s525 + $0x168] sm:$0xff]
        %v875 = vld [vmem:[%s525 + $0x170] sm:$0xff]
        %v876 = vld [vmem:[%s525 + $0x178] sm:$0xff]
        %v877 = vld [vmem:[%s525 + $0x180] sm:$0xff]
        %v878 = vld [vmem:[%s525 + $0x188] sm:$0xff]
        %v879 = vld [vmem:[%s525 + $0x190] sm:$0xff]
        %v880 = vld [vmem:[%s525 + $0x198] sm:$0xff]
        %v881 = vld [vmem:[%s525 + $0x1a0] sm:$0xff]
        %v882 = vld [vmem:[%s525 + $0x1a8] sm:$0xff]
        %v883 = vld [vmem:[%s525 + $0x1b0] sm:$0xff]
        %v884 = vld [vmem:[%s525 + $0x1b8] sm:$0xff]
        %v885 = vld [vmem:[%s525 + $0x1c0] sm:$0xff]
        %v886 = vld [vmem:[%s525 + $0x1c8] sm:$0xff]
        %v887 = vld [vmem:[%s525 + $0x1d0] sm:$0xff]
        %v888 = vld [vmem:[%s525 + $0x1d8] sm:$0xff]
        %v889 = vld [vmem:[%s525 + $0x1e0] sm:$0xff]
        %v890 = vld [vmem:[%s525 + $0x1e8] sm:$0xff]
        %v891 = vld [vmem:[%s525 + $0x1f0] sm:$0xff]
        %v892 = vld [vmem:[%s525 + $0x1f8] sm:$0xff]
        %v893 = vld [vmem:[%s628] sm:$0xff]
        %v895 = vlaneseq
        %v896 = vshrl.u32 %v895, 7
        %v897 = vsub.s32 0, %v896
        %v898 = vrot.slane %v893, %v897
        %v899 = vlaneseq
        %v900 = vshrl.u32 %v899, 7
        %v901 = vsub.s32 1, %v900
        %v902 = vrot.slane %v893, %v901
        %v903 = vlaneseq
        %v904 = vshrl.u32 %v903, 7
        %v905 = vsub.s32 2, %v904
        %v906 = vrot.slane %v893, %v905
        %v907 = vlaneseq
        %v908 = vshrl.u32 %v907, 7
        %v909 = vsub.s32 3, %v908
        %v910 = vrot.slane %v893, %v909
        %v911 = vlaneseq
        %v912 = vshrl.u32 %v911, 7
        %v913 = vsub.s32 4, %v912
        %v914 = vrot.slane %v893, %v913
        %v915 = vlaneseq
        %v916 = vshrl.u32 %v915, 7
        %v917 = vsub.s32 5, %v916
        %v918 = vrot.slane %v893, %v917
        %v919 = vlaneseq
        %v920 = vshrl.u32 %v919, 7
        %v921 = vsub.s32 6, %v920
        %v922 = vrot.slane %v893, %v921
        %v923 = vlaneseq
        %v924 = vshrl.u32 %v923, 7
        %v925 = vsub.s32 7, %v924
        %v926 = vrot.slane %v893, %v925
        %v999 = vunpack.c.l.b16 %v829
        %v1000 = vunpack.c.h.b16 %v829
        %v1001 = vunpack.c.l.b16 %v830
        %v1002 = vunpack.c.h.b16 %v830
        %v1003 = vunpack.c.l.b16 %v831
        %v1004 = vunpack.c.h.b16 %v831
        %v1005 = vunpack.c.l.b16 %v832
        %v1006 = vunpack.c.h.b16 %v832
        %v1007 = vunpack.c.l.b16 %v833
        %v1008 = vunpack.c.h.b16 %v833
        %v1009 = vunpack.c.l.b16 %v834
        %v1010 = vunpack.c.h.b16 %v834
        %v1011 = vunpack.c.l.b16 %v835
        %v1012 = vunpack.c.h.b16 %v835
        %v1013 = vunpack.c.l.b16 %v836
        %v1014 = vunpack.c.h.b16 %v836
        %v1015 = vunpack.c.l.b16 %v837
        %v1016 = vunpack.c.h.b16 %v837
        %v1017 = vunpack.c.l.b16 %v838
        %v1018 = vunpack.c.h.b16 %v838
        %v1019 = vunpack.c.l.b16 %v839
        %v1020 = vunpack.c.h.b16 %v839
        %v1021 = vunpack.c.l.b16 %v840
        %v1022 = vunpack.c.h.b16 %v840
        %v1023 = vunpack.c.l.b16 %v841
        %v1024 = vunpack.c.h.b16 %v841
        %v1025 = vunpack.c.l.b16 %v842
        %v1026 = vunpack.c.h.b16 %v842
        %v1027 = vunpack.c.l.b16 %v843
        %v1028 = vunpack.c.h.b16 %v843
        %v1029 = vunpack.c.l.b16 %v844
        %v1030 = vunpack.c.h.b16 %v844
        %v1031 = vunpack.c.l.b16 %v845
        %v1032 = vunpack.c.h.b16 %v845
        %v1033 = vunpack.c.l.b16 %v846
        %v1034 = vunpack.c.h.b16 %v846
        %v1035 = vunpack.c.l.b16 %v847
        %v1036 = vunpack.c.h.b16 %v847
        %v1037 = vunpack.c.l.b16 %v848
        %v1038 = vunpack.c.h.b16 %v848
        %v1039 = vunpack.c.l.b16 %v849
        %v1040 = vunpack.c.h.b16 %v849
        %v1041 = vunpack.c.l.b16 %v850
        %v1042 = vunpack.c.h.b16 %v850
        %v1043 = vunpack.c.l.b16 %v851
        %v1044 = vunpack.c.h.b16 %v851
        %v1045 = vunpack.c.l.b16 %v852
        %v1046 = vunpack.c.h.b16 %v852
        %v1047 = vunpack.c.l.b16 %v853
        %v1048 = vunpack.c.h.b16 %v853
        %v1049 = vunpack.c.l.b16 %v854
        %v1050 = vunpack.c.h.b16 %v854
        %v1051 = vunpack.c.l.b16 %v855
        %v1052 = vunpack.c.h.b16 %v855
        %v1053 = vunpack.c.l.b16 %v856
        %v1054 = vunpack.c.h.b16 %v856
        %v1055 = vunpack.c.l.b16 %v857
        %v1056 = vunpack.c.h.b16 %v857
        %v1057 = vunpack.c.l.b16 %v858
        %v1058 = vunpack.c.h.b16 %v858
        %v1059 = vunpack.c.l.b16 %v859
        %v1060 = vunpack.c.h.b16 %v859
        %v1061 = vunpack.c.l.b16 %v860
        %v1062 = vunpack.c.h.b16 %v860
        %v1063 = vunpack.c.l.b16 %v861
        %v1064 = vunpack.c.h.b16 %v861
        %v1065 = vunpack.c.l.b16 %v862
        %v1066 = vunpack.c.h.b16 %v862
        %v1067 = vunpack.c.l.b16 %v863
        %v1068 = vunpack.c.h.b16 %v863
        %v1069 = vunpack.c.l.b16 %v864
        %v1070 = vunpack.c.h.b16 %v864
        %v1071 = vunpack.c.l.b16 %v865
        %v1072 = vunpack.c.h.b16 %v865
        %v1073 = vunpack.c.l.b16 %v866
        %v1074 = vunpack.c.h.b16 %v866
        %v1075 = vunpack.c.l.b16 %v867
        %v1076 = vunpack.c.h.b16 %v867
        %v1077 = vunpack.c.l.b16 %v868
        %v1078 = vunpack.c.h.b16 %v868
        %v1079 = vunpack.c.l.b16 %v869
        %v1080 = vunpack.c.h.b16 %v869
        %v1081 = vunpack.c.l.b16 %v870
        %v1082 = vunpack.c.h.b16 %v870
        %v1083 = vunpack.c.l.b16 %v871
        %v1084 = vunpack.c.h.b16 %v871
        %v1085 = vunpack.c.l.b16 %v872
        %v1086 = vunpack.c.h.b16 %v872
        %v1087 = vunpack.c.l.b16 %v873
        %v1088 = vunpack.c.h.b16 %v873
        %v1089 = vunpack.c.l.b16 %v874
        %v1090 = vunpack.c.h.b16 %v874
        %v1091 = vunpack.c.l.b16 %v875
        %v1092 = vunpack.c.h.b16 %v875
        %v1093 = vunpack.c.l.b16 %v876
        %v1094 = vunpack.c.h.b16 %v876
        %v1095 = vunpack.c.l.b16 %v877
        %v1096 = vunpack.c.h.b16 %v877
        %v1097 = vunpack.c.l.b16 %v878
        %v1098 = vunpack.c.h.b16 %v878
        %v1099 = vunpack.c.l.b16 %v879
        %v1100 = vunpack.c.h.b16 %v879
        %v1101 = vunpack.c.l.b16 %v880
        %v1102 = vunpack.c.h.b16 %v880
        %v1103 = vunpack.c.l.b16 %v881
        %v1104 = vunpack.c.h.b16 %v881
        %v1105 = vunpack.c.l.b16 %v882
        %v1106 = vunpack.c.h.b16 %v882
        %v1107 = vunpack.c.l.b16 %v883
        %v1108 = vunpack.c.h.b16 %v883
        %v1109 = vunpack.c.l.b16 %v884
        %v1110 = vunpack.c.h.b16 %v884
        %v1111 = vunpack.c.l.b16 %v885
        %v1112 = vunpack.c.h.b16 %v885
        %v1113 = vunpack.c.l.b16 %v886
        %v1114 = vunpack.c.h.b16 %v886
        %v1115 = vunpack.c.l.b16 %v887
        %v1116 = vunpack.c.h.b16 %v887
        %v1117 = vunpack.c.l.b16 %v888
        %v1118 = vunpack.c.h.b16 %v888
        %v1119 = vunpack.c.l.b16 %v889
        %v1120 = vunpack.c.h.b16 %v889
        %v1121 = vunpack.c.l.b16 %v890
        %v1122 = vunpack.c.h.b16 %v890
        %v1123 = vunpack.c.l.b16 %v891
        %v1124 = vunpack.c.h.b16 %v891
        %v1125 = vunpack.c.l.b16 %v892
        %v1126 = vunpack.c.h.b16 %v892
        %v1127 = vpack.c.b16 %v1007, %v999
        %v1128 = vpack.c.b16 %v1008, %v1000
        %v1129 = vpack.c.b16 %v1009, %v1001
        %v1130 = vpack.c.b16 %v1010, %v1002
        %v1131 = vpack.c.b16 %v1011, %v1003
        %v1132 = vpack.c.b16 %v1012, %v1004
        %v1133 = vpack.c.b16 %v1013, %v1005
        %v1134 = vpack.c.b16 %v1014, %v1006
        %v1135 = vpack.c.b16 %v1023, %v1015
        %v1136 = vpack.c.b16 %v1024, %v1016
        %v1137 = vpack.c.b16 %v1025, %v1017
        %v1138 = vpack.c.b16 %v1026, %v1018
        %v1139 = vpack.c.b16 %v1027, %v1019
        %v1140 = vpack.c.b16 %v1028, %v1020
        %v1141 = vpack.c.b16 %v1029, %v1021
        %v1142 = vpack.c.b16 %v1030, %v1022
        %v1143 = vpack.c.b16 %v1039, %v1031
        %v1144 = vpack.c.b16 %v1040, %v1032
        %v1145 = vpack.c.b16 %v1041, %v1033
        %v1146 = vpack.c.b16 %v1042, %v1034
        %v1147 = vpack.c.b16 %v1043, %v1035
        %v1148 = vpack.c.b16 %v1044, %v1036
        %v1149 = vpack.c.b16 %v1045, %v1037
        %v1150 = vpack.c.b16 %v1046, %v1038
        %v1151 = vpack.c.b16 %v1055, %v1047
        %v1152 = vpack.c.b16 %v1056, %v1048
        %v1153 = vpack.c.b16 %v1057, %v1049
        %v1154 = vpack.c.b16 %v1058, %v1050
        %v1155 = vpack.c.b16 %v1059, %v1051
        %v1156 = vpack.c.b16 %v1060, %v1052
        %v1157 = vpack.c.b16 %v1061, %v1053
        %v1158 = vpack.c.b16 %v1062, %v1054
        %v1159 = vpack.c.b16 %v1071, %v1063
        %v1160 = vpack.c.b16 %v1072, %v1064
        %v1161 = vpack.c.b16 %v1073, %v1065
        %v1162 = vpack.c.b16 %v1074, %v1066
        %v1163 = vpack.c.b16 %v1075, %v1067
        %v1164 = vpack.c.b16 %v1076, %v1068
        %v1165 = vpack.c.b16 %v1077, %v1069
        %v1166 = vpack.c.b16 %v1078, %v1070
        %v1167 = vpack.c.b16 %v1087, %v1079
        %v1168 = vpack.c.b16 %v1088, %v1080
        %v1169 = vpack.c.b16 %v1089, %v1081
        %v1170 = vpack.c.b16 %v1090, %v1082
        %v1171 = vpack.c.b16 %v1091, %v1083
        %v1172 = vpack.c.b16 %v1092, %v1084
        %v1173 = vpack.c.b16 %v1093, %v1085
        %v1174 = vpack.c.b16 %v1094, %v1086
        %v1175 = vpack.c.b16 %v1103, %v1095
        %v1176 = vpack.c.b16 %v1104, %v1096
        %v1177 = vpack.c.b16 %v1105, %v1097
        %v1178 = vpack.c.b16 %v1106, %v1098
        %v1179 = vpack.c.b16 %v1107, %v1099
        %v1180 = vpack.c.b16 %v1108, %v1100
        %v1181 = vpack.c.b16 %v1109, %v1101
        %v1182 = vpack.c.b16 %v1110, %v1102
        %v1183 = vpack.c.b16 %v1119, %v1111
        %v1184 = vpack.c.b16 %v1120, %v1112
        %v1185 = vpack.c.b16 %v1121, %v1113
        %v1186 = vpack.c.b16 %v1122, %v1114
        %v1187 = vpack.c.b16 %v1123, %v1115
        %v1188 = vpack.c.b16 %v1124, %v1116
        %v1189 = vpack.c.b16 %v1125, %v1117
        %v1190 = vpack.c.b16 %v1126, %v1118
        %1255 = vmatprep.subr.bf16.mxu0 %v1128
        %1256 = vmatpush1.bf16.msra.mxu0 %v1127
        %1257 = vmatprep.subr.bf16.mxu0 %v1136
        %1258 = vmatpush1.bf16.msra.mxu0 %v1135
        %1259 = vmatprep.subr.bf16.mxu0 %v1144
        %1260 = vmatpush1.bf16.msra.mxu0 %v1143
        %1261 = vmatprep.subr.bf16.mxu0 %v1152
        %1262 = vmatpush1.bf16.msra.mxu0 %v1151
        %1263 = vmatprep.subr.bf16.mxu0 %v1160
        %1264 = vmatpush1.bf16.msra.mxu0 %v1159
        %1265 = vmatprep.subr.bf16.mxu0 %v1168
        %1266 = vmatpush1.bf16.msra.mxu0 %v1167
        %1267 = vmatprep.subr.bf16.mxu0 %v1176
        %1268 = vmatpush1.bf16.msra.mxu0 %v1175
        %1269 = vmatprep.subr.bf16.mxu0 %v1184
        %1270 = vmatpush1.bf16.msra.mxu0 %v1183
        %1271 = vmatprep.subr.bf16.mxu0 0
        %1272 = vmatpush1.bf16.msra.mxu0 0
        %1273 = vmatprep.subr.bf16.mxu0 0
        %1274 = vmatpush1.bf16.msra.mxu0 0
        %1275 = vmatprep.subr.bf16.mxu0 0
        %1276 = vmatpush1.bf16.msra.mxu0 0
        %1277 = vmatprep.subr.bf16.mxu0 0
        %1278 = vmatpush1.bf16.msra.mxu0 0
        %1279 = vmatprep.subr.bf16.mxu0 0
        %1280 = vmatpush1.bf16.msra.mxu0 0
        %1281 = vmatprep.subr.bf16.mxu0 0
        %1282 = vmatpush1.bf16.msra.mxu0 0
        %1283 = vmatprep.subr.bf16.mxu0 0
        %1284 = vmatpush1.bf16.msra.mxu0 0
        %1285 = vmatprep.subr.bf16.mxu0 0
        %1286 = vmatpush1.bf16.msra.mxu0 0
        %1287 = vmatprep.mubr.bf16.mxu0 0
        %1288 = vmatmul.mubr.bf16.gmra.mrb[0].mxu0 %v828
        %v1289 = vpop.f32.mrb[0].mxu0
        %v1290 = vadd.f32 %v898, %v1289
        %v1291 = vpop.f32.mrb[0].mxu0
        %v1292 = vadd.f32 %v902, %v1291
        %v1293 = vpop.f32.mrb[0].mxu0
        %v1294 = vpop.f32.mrb[0].mxu0
        %1295 = vdwg.mxu0
        %1296 = vmatprep.subr.bf16.mxu0 %v1130
        %1297 = vmatpush1.bf16.msra.mxu0 %v1129
        %1298 = vmatprep.subr.bf16.mxu0 %v1138
        %1299 = vmatpush1.bf16.msra.mxu0 %v1137
        %1300 = vmatprep.subr.bf16.mxu0 %v1146
        %1301 = vmatpush1.bf16.msra.mxu0 %v1145
        %1302 = vmatprep.subr.bf16.mxu0 %v1154
        %1303 = vmatpush1.bf16.msra.mxu0 %v1153
        %1304 = vmatprep.subr.bf16.mxu0 %v1162
        %1305 = vmatpush1.bf16.msra.mxu0 %v1161
        %1306 = vmatprep.subr.bf16.mxu0 %v1170
        %1307 = vmatpush1.bf16.msra.mxu0 %v1169
        %1308 = vmatprep.subr.bf16.mxu0 %v1178
        %1309 = vmatpush1.bf16.msra.mxu0 %v1177
        %1310 = vmatprep.subr.bf16.mxu0 %v1186
        %1311 = vmatpush1.bf16.msra.mxu0 %v1185
        %1312 = vmatprep.subr.bf16.mxu0 0
        %1313 = vmatpush1.bf16.msra.mxu0 0
        %1314 = vmatprep.subr.bf16.mxu0 0
        %1315 = vmatpush1.bf16.msra.mxu0 0
        %1316 = vmatprep.subr.bf16.mxu0 0
        %1317 = vmatpush1.bf16.msra.mxu0 0
        %1318 = vmatprep.subr.bf16.mxu0 0
        %1319 = vmatpush1.bf16.msra.mxu0 0
        %1320 = vmatprep.subr.bf16.mxu0 0
        %1321 = vmatpush1.bf16.msra.mxu0 0
        %1322 = vmatprep.subr.bf16.mxu0 0
        %1323 = vmatpush1.bf16.msra.mxu0 0
        %1324 = vmatprep.subr.bf16.mxu0 0
        %1325 = vmatpush1.bf16.msra.mxu0 0
        %1326 = vmatprep.subr.bf16.mxu0 0
        %1327 = vmatpush1.bf16.msra.mxu0 0
        %1328 = vmatprep.mubr.bf16.mxu0 0
        %1329 = vmatmul.mubr.bf16.gmra.mrb[0].mxu0 %v828
        %v1330 = vpop.f32.mrb[0].mxu0
        %v1331 = vadd.f32 %v906, %v1330
        %v1332 = vpop.f32.mrb[0].mxu0
        %v1333 = vadd.f32 %v910, %v1332
        %v1334 = vpop.f32.mrb[0].mxu0
        %v1335 = vpop.f32.mrb[0].mxu0
        %1336 = vdwg.mxu0
        %1337 = vmatprep.subr.bf16.mxu0 %v1132
        %1338 = vmatpush1.bf16.msra.mxu0 %v1131
        %1339 = vmatprep.subr.bf16.mxu0 %v1140
        %1340 = vmatpush1.bf16.msra.mxu0 %v1139
        %1341 = vmatprep.subr.bf16.mxu0 %v1148
        %1342 = vmatpush1.bf16.msra.mxu0 %v1147
        %1343 = vmatprep.subr.bf16.mxu0 %v1156
        %1344 = vmatpush1.bf16.msra.mxu0 %v1155
        %1345 = vmatprep.subr.bf16.mxu0 %v1164
        %1346 = vmatpush1.bf16.msra.mxu0 %v1163
        %1347 = vmatprep.subr.bf16.mxu0 %v1172
        %1348 = vmatpush1.bf16.msra.mxu0 %v1171
        %1349 = vmatprep.subr.bf16.mxu0 %v1180
        %1350 = vmatpush1.bf16.msra.mxu0 %v1179
        %1351 = vmatprep.subr.bf16.mxu0 %v1188
        %1352 = vmatpush1.bf16.msra.mxu0 %v1187
        %1353 = vmatprep.subr.bf16.mxu0 0
        %1354 = vmatpush1.bf16.msra.mxu0 0
        %1355 = vmatprep.subr.bf16.mxu0 0
        %1356 = vmatpush1.bf16.msra.mxu0 0
        %1357 = vmatprep.subr.bf16.mxu0 0
        %1358 = vmatpush1.bf16.msra.mxu0 0
        %1359 = vmatprep.subr.bf16.mxu0 0
        %1360 = vmatpush1.bf16.msra.mxu0 0
        %1361 = vmatprep.subr.bf16.mxu0 0
        %1362 = vmatpush1.bf16.msra.mxu0 0
        %1363 = vmatprep.subr.bf16.mxu0 0
        %1364 = vmatpush1.bf16.msra.mxu0 0
        %1365 = vmatprep.subr.bf16.mxu0 0
        %1366 = vmatpush1.bf16.msra.mxu0 0
        %1367 = vmatprep.subr.bf16.mxu0 0
        %1368 = vmatpush1.bf16.msra.mxu0 0
        %1369 = vmatprep.mubr.bf16.mxu0 0
        %1370 = vmatmul.mubr.bf16.gmra.mrb[0].mxu0 %v828
        %v1371 = vpop.f32.mrb[0].mxu0
        %v1372 = vadd.f32 %v914, %v1371
        %v1373 = vpop.f32.mrb[0].mxu0
        %v1374 = vadd.f32 %v918, %v1373
        %v1375 = vpop.f32.mrb[0].mxu0
        %v1376 = vpop.f32.mrb[0].mxu0
        %1377 = vdwg.mxu0
        %1378 = vmatprep.subr.bf16.mxu0 %v1134
        %1379 = vmatpush1.bf16.msra.mxu0 %v1133
        %1380 = vmatprep.subr.bf16.mxu0 %v1142
        %1381 = vmatpush1.bf16.msra.mxu0 %v1141
        %1382 = vmatprep.subr.bf16.mxu0 %v1150
        %1383 = vmatpush1.bf16.msra.mxu0 %v1149
        %1384 = vmatprep.subr.bf16.mxu0 %v1158
        %1385 = vmatpush1.bf16.msra.mxu0 %v1157
        %1386 = vmatprep.subr.bf16.mxu0 %v1166
        %1387 = vmatpush1.bf16.msra.mxu0 %v1165
        %1388 = vmatprep.subr.bf16.mxu0 %v1174
        %1389 = vmatpush1.bf16.msra.mxu0 %v1173
        %1390 = vmatprep.subr.bf16.mxu0 %v1182
        %1391 = vmatpush1.bf16.msra.mxu0 %v1181
        %1392 = vmatprep.subr.bf16.mxu0 %v1190
        %1393 = vmatpush1.bf16.msra.mxu0 %v1189
        %1394 = vmatprep.subr.bf16.mxu0 0
        %1395 = vmatpush1.bf16.msra.mxu0 0
        %1396 = vmatprep.subr.bf16.mxu0 0
        %1397 = vmatpush1.bf16.msra.mxu0 0
        %1398 = vmatprep.subr.bf16.mxu0 0
        %1399 = vmatpush1.bf16.msra.mxu0 0
        %1400 = vmatprep.subr.bf16.mxu0 0
        %1401 = vmatpush1.bf16.msra.mxu0 0
        %1402 = vmatprep.subr.bf16.mxu0 0
        %1403 = vmatpush1.bf16.msra.mxu0 0
        %1404 = vmatprep.subr.bf16.mxu0 0
        %1405 = vmatpush1.bf16.msra.mxu0 0
        %1406 = vmatprep.subr.bf16.mxu0 0
        %1407 = vmatpush1.bf16.msra.mxu0 0
        %1408 = vmatprep.subr.bf16.mxu0 0
        %1409 = vmatpush1.bf16.msra.mxu0 0
        %1410 = vmatprep.mubr.bf16.mxu0 0
        %1411 = vmatmul.mubr.bf16.gmra.mrb[0].mxu0 %v828
        %v1412 = vpop.f32.mrb[0].mxu0
        %v1413 = vadd.f32 %v922, %v1412
        %v1414 = vpop.f32.mrb[0].mxu0
        %v1415 = vadd.f32 %v926, %v1414
        %v1416 = vpop.f32.mrb[0].mxu0
        %v1417 = vpop.f32.mrb[0].mxu0
        %1418 = vdwg.mxu0
        %v1419 = vpack.c.bf16 %v1290, %v1290
        %v1420 = vpack.c.bf16 %v1292, %v1292
        %v1421 = vpack.c.bf16 %v1331, %v1331
        %v1422 = vpack.c.bf16 %v1333, %v1333
        %v1423 = vpack.c.bf16 %v1372, %v1372
        %v1424 = vpack.c.bf16 %v1374, %v1374
        %v1425 = vpack.c.bf16 %v1413, %v1413
        %v1426 = vpack.c.bf16 %v1415, %v1415
        %v1427 = vmul.bf16 %v1419, 1056980736
        %v1428 = vmul.bf16 %v1420, 1056980736
        %v1429 = vmul.bf16 %v1421, 1056980736
        %v1430 = vmul.bf16 %v1422, 1056980736
        %v1431 = vmul.bf16 %v1423, 1056980736
        %v1432 = vmul.bf16 %v1424, 1056980736
        %v1433 = vmul.bf16 %v1425, 1056980736
        %v1434 = vmul.bf16 %v1426, 1056980736
        %v1435 = vmul.bf16 %v1419, 1027030327
        %v1436 = vmul.bf16 %v1420, 1027030327
        %v1437 = vmul.bf16 %v1421, 1027030327
        %v1438 = vmul.bf16 %v1422, 1027030327
        %v1439 = vmul.bf16 %v1423, 1027030327
        %v1440 = vmul.bf16 %v1424, 1027030327
        %v1441 = vmul.bf16 %v1425, 1027030327
        %v1442 = vmul.bf16 %v1426, 1027030327
        %v1443 = vmul.bf16 %v1435, %v1419
        %v1444 = vmul.bf16 %v1436, %v1420
        %v1445 = vmul.bf16 %v1437, %v1421
        %v1446 = vmul.bf16 %v1438, %v1422
        %v1447 = vmul.bf16 %v1439, %v1423
        %v1448 = vmul.bf16 %v1440, %v1424
        %v1449 = vmul.bf16 %v1441, %v1425
        %v1450 = vmul.bf16 %v1442, %v1426
        %v1451 = vmul.bf16 %v1443, %v1419
        %v1452 = vmul.bf16 %v1444, %v1420
        %v1453 = vmul.bf16 %v1445, %v1421
        %v1454 = vmul.bf16 %v1446, %v1422
        %v1455 = vmul.bf16 %v1447, %v1423
        %v1456 = vmul.bf16 %v1448, %v1424
        %v1457 = vmul.bf16 %v1449, %v1425
        %v1458 = vmul.bf16 %v1450, %v1426
        %v1459 = vadd.bf16 %v1419, %v1451
        %v1460 = vadd.bf16 %v1420, %v1452
        %v1461 = vadd.bf16 %v1421, %v1453
        %v1462 = vadd.bf16 %v1422, %v1454
        %v1463 = vadd.bf16 %v1423, %v1455
        %v1464 = vadd.bf16 %v1424, %v1456
        %v1465 = vadd.bf16 %v1425, %v1457
        %v1466 = vadd.bf16 %v1426, %v1458
        %v1467 = vmul.bf16 %v1459, 1061961548
        %v1468 = vmul.bf16 %v1460, 1061961548
        %v1469 = vmul.bf16 %v1461, 1061961548
        %v1470 = vmul.bf16 %v1462, 1061961548
        %v1471 = vmul.bf16 %v1463, 1061961548
        %v1472 = vmul.bf16 %v1464, 1061961548
        %v1473 = vmul.bf16 %v1465, 1061961548
        %v1474 = vmul.bf16 %v1466, 1061961548
        %v1475 = vtanh.bf16.pop %v1467
        %v1476 = vtanh.bf16.pop %v1468
        %v1477 = vtanh.bf16.pop %v1469
        %v1478 = vtanh.bf16.pop %v1470
        %v1479 = vtanh.bf16.pop %v1471
        %v1480 = vtanh.bf16.pop %v1472
        %v1481 = vtanh.bf16.pop %v1473
        %v1482 = vtanh.bf16.pop %v1474
        %v1483 = vadd.bf16 %v1475, 1065369472
        %v1484 = vadd.bf16 %v1476, 1065369472
        %v1485 = vadd.bf16 %v1477, 1065369472
        %v1486 = vadd.bf16 %v1478, 1065369472
        %v1487 = vadd.bf16 %v1479, 1065369472
        %v1488 = vadd.bf16 %v1480, 1065369472
        %v1489 = vadd.bf16 %v1481, 1065369472
        %v1490 = vadd.bf16 %v1482, 1065369472
        %v1491 = vmul.bf16 %v1427, %v1483
        %v1492 = vmul.bf16 %v1428, %v1484
        %v1493 = vmul.bf16 %v1429, %v1485
        %v1494 = vmul.bf16 %v1430, %v1486
        %v1495 = vmul.bf16 %v1431, %v1487
        %v1496 = vmul.bf16 %v1432, %v1488
        %v1497 = vmul.bf16 %v1433, %v1489
        %v1498 = vmul.bf16 %v1434, %v1490
        %v1499 = vld [vmem:[%s534] sm:$0xf]
        %v1500 = vld [vmem:[%s534 + $0x4] sm:$0xf]
        %v1501 = vld [vmem:[%s534 + $0x8] sm:$0xf]
        %v1502 = vld [vmem:[%s534 + $0xc] sm:$0xf]
        %v1503 = vld [vmem:[%s534 + $0x10] sm:$0xf]
        %v1504 = vld [vmem:[%s534 + $0x14] sm:$0xf]
        %v1505 = vld [vmem:[%s534 + $0x18] sm:$0xf]
        %v1506 = vld [vmem:[%s534 + $0x1c] sm:$0xf]
        %v1507 = vld [vmem:[%s534 + $0x20] sm:$0xf]
        %v1508 = vld [vmem:[%s534 + $0x24] sm:$0xf]
        %v1509 = vld [vmem:[%s534 + $0x28] sm:$0xf]
        %v1510 = vld [vmem:[%s534 + $0x2c] sm:$0xf]
        %v1511 = vld [vmem:[%s534 + $0x30] sm:$0xf]
        %v1512 = vld [vmem:[%s534 + $0x34] sm:$0xf]
        %v1513 = vld [vmem:[%s534 + $0x38] sm:$0xf]
        %v1514 = vld [vmem:[%s534 + $0x3c] sm:$0xf]
        %v1515 = vld [vmem:[%s534 + $0x40] sm:$0xf]
        %v1516 = vld [vmem:[%s534 + $0x44] sm:$0xf]
        %v1517 = vld [vmem:[%s534 + $0x48] sm:$0xf]
        %v1518 = vld [vmem:[%s534 + $0x4c] sm:$0xf]
        %v1519 = vld [vmem:[%s534 + $0x50] sm:$0xf]
        %v1520 = vld [vmem:[%s534 + $0x54] sm:$0xf]
        %v1521 = vld [vmem:[%s534 + $0x58] sm:$0xf]
        %v1522 = vld [vmem:[%s534 + $0x5c] sm:$0xf]
        %v1523 = vld [vmem:[%s534 + $0x60] sm:$0xf]
        %v1524 = vld [vmem:[%s534 + $0x64] sm:$0xf]
        %v1525 = vld [vmem:[%s534 + $0x68] sm:$0xf]
        %v1526 = vld [vmem:[%s534 + $0x6c] sm:$0xf]
        %v1527 = vld [vmem:[%s534 + $0x70] sm:$0xf]
        %v1528 = vld [vmem:[%s534 + $0x74] sm:$0xf]
        %v1529 = vld [vmem:[%s534 + $0x78] sm:$0xf]
        %v1530 = vld [vmem:[%s534 + $0x7c] sm:$0xf]
        %v1531 = vld [vmem:[%s534 + $0x80] sm:$0xf]
        %v1532 = vld [vmem:[%s534 + $0x84] sm:$0xf]
        %v1533 = vld [vmem:[%s534 + $0x88] sm:$0xf]
        %v1534 = vld [vmem:[%s534 + $0x8c] sm:$0xf]
        %v1535 = vld [vmem:[%s534 + $0x90] sm:$0xf]
        %v1536 = vld [vmem:[%s534 + $0x94] sm:$0xf]
        %v1537 = vld [vmem:[%s534 + $0x98] sm:$0xf]
        %v1538 = vld [vmem:[%s534 + $0x9c] sm:$0xf]
        %v1539 = vld [vmem:[%s534 + $0xa0] sm:$0xf]
        %v1540 = vld [vmem:[%s534 + $0xa4] sm:$0xf]
        %v1541 = vld [vmem:[%s534 + $0xa8] sm:$0xf]
        %v1542 = vld [vmem:[%s534 + $0xac] sm:$0xf]
        %v1543 = vld [vmem:[%s534 + $0xb0] sm:$0xf]
        %v1544 = vld [vmem:[%s534 + $0xb4] sm:$0xf]
        %v1545 = vld [vmem:[%s534 + $0xb8] sm:$0xf]
        %v1546 = vld [vmem:[%s534 + $0xbc] sm:$0xf]
        %v1547 = vld [vmem:[%s534 + $0xc0] sm:$0xf]
        %v1548 = vld [vmem:[%s534 + $0xc4] sm:$0xf]
        %v1549 = vld [vmem:[%s534 + $0xc8] sm:$0xf]
        %v1550 = vld [vmem:[%s534 + $0xcc] sm:$0xf]
        %v1551 = vld [vmem:[%s534 + $0xd0] sm:$0xf]
        %v1552 = vld [vmem:[%s534 + $0xd4] sm:$0xf]
        %v1553 = vld [vmem:[%s534 + $0xd8] sm:$0xf]
        %v1554 = vld [vmem:[%s534 + $0xdc] sm:$0xf]
        %v1555 = vld [vmem:[%s534 + $0xe0] sm:$0xf]
        %v1556 = vld [vmem:[%s534 + $0xe4] sm:$0xf]
        %v1557 = vld [vmem:[%s534 + $0xe8] sm:$0xf]
        %v1558 = vld [vmem:[%s534 + $0xec] sm:$0xf]
        %v1559 = vld [vmem:[%s534 + $0xf0] sm:$0xf]
        %v1560 = vld [vmem:[%s534 + $0xf4] sm:$0xf]
        %v1561 = vld [vmem:[%s534 + $0xf8] sm:$0xf]
        %v1562 = vld [vmem:[%s534 + $0xfc] sm:$0xf]
        %v1563 = vld [vmem:[%s534 + $0x100] sm:$0xf]
        %v1564 = vld [vmem:[%s534 + $0x104] sm:$0xf]
        %v1565 = vld [vmem:[%s534 + $0x108] sm:$0xf]
        %v1566 = vld [vmem:[%s534 + $0x10c] sm:$0xf]
        %v1567 = vld [vmem:[%s534 + $0x110] sm:$0xf]
        %v1568 = vld [vmem:[%s534 + $0x114] sm:$0xf]
        %v1569 = vld [vmem:[%s534 + $0x118] sm:$0xf]
        %v1570 = vld [vmem:[%s534 + $0x11c] sm:$0xf]
        %v1571 = vld [vmem:[%s534 + $0x120] sm:$0xf]
        %v1572 = vld [vmem:[%s534 + $0x124] sm:$0xf]
        %v1573 = vld [vmem:[%s534 + $0x128] sm:$0xf]
        %v1574 = vld [vmem:[%s534 + $0x12c] sm:$0xf]
        %v1575 = vld [vmem:[%s534 + $0x130] sm:$0xf]
        %v1576 = vld [vmem:[%s534 + $0x134] sm:$0xf]
        %v1577 = vld [vmem:[%s534 + $0x138] sm:$0xf]
        %v1578 = vld [vmem:[%s534 + $0x13c] sm:$0xf]
        %v1579 = vld [vmem:[%s534 + $0x140] sm:$0xf]
        %v1580 = vld [vmem:[%s534 + $0x144] sm:$0xf]
        %v1581 = vld [vmem:[%s534 + $0x148] sm:$0xf]
        %v1582 = vld [vmem:[%s534 + $0x14c] sm:$0xf]
        %v1583 = vld [vmem:[%s534 + $0x150] sm:$0xf]
        %v1584 = vld [vmem:[%s534 + $0x154] sm:$0xf]
        %v1585 = vld [vmem:[%s534 + $0x158] sm:$0xf]
        %v1586 = vld [vmem:[%s534 + $0x15c] sm:$0xf]
        %v1587 = vld [vmem:[%s534 + $0x160] sm:$0xf]
        %v1588 = vld [vmem:[%s534 + $0x164] sm:$0xf]
        %v1589 = vld [vmem:[%s534 + $0x168] sm:$0xf]
        %v1590 = vld [vmem:[%s534 + $0x16c] sm:$0xf]
        %v1591 = vld [vmem:[%s534 + $0x170] sm:$0xf]
        %v1592 = vld [vmem:[%s534 + $0x174] sm:$0xf]
        %v1593 = vld [vmem:[%s534 + $0x178] sm:$0xf]
        %v1594 = vld [vmem:[%s534 + $0x17c] sm:$0xf]
        %v1595 = vld [vmem:[%s534 + $0x180] sm:$0xf]
        %v1596 = vld [vmem:[%s534 + $0x184] sm:$0xf]
        %v1597 = vld [vmem:[%s534 + $0x188] sm:$0xf]
        %v1598 = vld [vmem:[%s534 + $0x18c] sm:$0xf]
        %v1599 = vld [vmem:[%s534 + $0x190] sm:$0xf]
        %v1600 = vld [vmem:[%s534 + $0x194] sm:$0xf]
        %v1601 = vld [vmem:[%s534 + $0x198] sm:$0xf]
        %v1602 = vld [vmem:[%s534 + $0x19c] sm:$0xf]
        %v1603 = vld [vmem:[%s534 + $0x1a0] sm:$0xf]
        %v1604 = vld [vmem:[%s534 + $0x1a4] sm:$0xf]
        %v1605 = vld [vmem:[%s534 + $0x1a8] sm:$0xf]
        %v1606 = vld [vmem:[%s534 + $0x1ac] sm:$0xf]
        %v1607 = vld [vmem:[%s534 + $0x1b0] sm:$0xf]
        %v1608 = vld [vmem:[%s534 + $0x1b4] sm:$0xf]
        %v1609 = vld [vmem:[%s534 + $0x1b8] sm:$0xf]
        %v1610 = vld [vmem:[%s534 + $0x1bc] sm:$0xf]
        %v1611 = vld [vmem:[%s534 + $0x1c0] sm:$0xf]
        %v1612 = vld [vmem:[%s534 + $0x1c4] sm:$0xf]
        %v1613 = vld [vmem:[%s534 + $0x1c8] sm:$0xf]
        %v1614 = vld [vmem:[%s534 + $0x1cc] sm:$0xf]
        %v1615 = vld [vmem:[%s534 + $0x1d0] sm:$0xf]
        %v1616 = vld [vmem:[%s534 + $0x1d4] sm:$0xf]
        %v1617 = vld [vmem:[%s534 + $0x1d8] sm:$0xf]
        %v1618 = vld [vmem:[%s534 + $0x1dc] sm:$0xf]
        %v1619 = vld [vmem:[%s534 + $0x1e0] sm:$0xf]
        %v1620 = vld [vmem:[%s534 + $0x1e4] sm:$0xf]
        %v1621 = vld [vmem:[%s534 + $0x1e8] sm:$0xf]
        %v1622 = vld [vmem:[%s534 + $0x1ec] sm:$0xf]
        %v1623 = vld [vmem:[%s534 + $0x1f0] sm:$0xf]
        %v1624 = vld [vmem:[%s534 + $0x1f4] sm:$0xf]
        %v1625 = vld [vmem:[%s534 + $0x1f8] sm:$0xf]
        %v1626 = vld [vmem:[%s534 + $0x1fc] sm:$0xf]
        %v1627 = vld [vmem:[%s631] sm:$0x1]
        %v1629 = vlaneseq
        %v1630 = vshrl.u32 %v1629, 7
        %v1631 = vsub.s32 0, %v1630
        %v1632 = vrot.slane %v1627, %v1631
        %v1762 = vunpack.c.l.b16 %v1499
        %v1763 = vunpack.c.l.b16 %v1500
        %v1764 = vunpack.c.l.b16 %v1501
        %v1765 = vunpack.c.l.b16 %v1502
        %v1766 = vunpack.c.l.b16 %v1503
        %v1767 = vunpack.c.l.b16 %v1504
        %v1768 = vunpack.c.l.b16 %v1505
        %v1769 = vunpack.c.l.b16 %v1506
        %v1770 = vunpack.c.l.b16 %v1507
        %v1771 = vunpack.c.l.b16 %v1508
        %v1772 = vunpack.c.l.b16 %v1509
        %v1773 = vunpack.c.l.b16 %v1510
        %v1774 = vunpack.c.l.b16 %v1511
        %v1775 = vunpack.c.l.b16 %v1512
        %v1776 = vunpack.c.l.b16 %v1513
        %v1777 = vunpack.c.l.b16 %v1514
        %v1778 = vunpack.c.l.b16 %v1515
        %v1779 = vunpack.c.l.b16 %v1516
        %v1780 = vunpack.c.l.b16 %v1517
        %v1781 = vunpack.c.l.b16 %v1518
        %v1782 = vunpack.c.l.b16 %v1519
        %v1783 = vunpack.c.l.b16 %v1520
        %v1784 = vunpack.c.l.b16 %v1521
        %v1785 = vunpack.c.l.b16 %v1522
        %v1786 = vunpack.c.l.b16 %v1523
        %v1787 = vunpack.c.l.b16 %v1524
        %v1788 = vunpack.c.l.b16 %v1525
        %v1789 = vunpack.c.l.b16 %v1526
        %v1790 = vunpack.c.l.b16 %v1527
        %v1791 = vunpack.c.l.b16 %v1528
        %v1792 = vunpack.c.l.b16 %v1529
        %v1793 = vunpack.c.l.b16 %v1530
        %v1794 = vunpack.c.l.b16 %v1531
        %v1795 = vunpack.c.l.b16 %v1532
        %v1796 = vunpack.c.l.b16 %v1533
        %v1797 = vunpack.c.l.b16 %v1534
        %v1798 = vunpack.c.l.b16 %v1535
        %v1799 = vunpack.c.l.b16 %v1536
        %v1800 = vunpack.c.l.b16 %v1537
        %v1801 = vunpack.c.l.b16 %v1538
        %v1802 = vunpack.c.l.b16 %v1539
        %v1803 = vunpack.c.l.b16 %v1540
        %v1804 = vunpack.c.l.b16 %v1541
        %v1805 = vunpack.c.l.b16 %v1542
        %v1806 = vunpack.c.l.b16 %v1543
        %v1807 = vunpack.c.l.b16 %v1544
        %v1808 = vunpack.c.l.b16 %v1545
        %v1809 = vunpack.c.l.b16 %v1546
        %v1810 = vunpack.c.l.b16 %v1547
        %v1811 = vunpack.c.l.b16 %v1548
        %v1812 = vunpack.c.l.b16 %v1549
        %v1813 = vunpack.c.l.b16 %v1550
        %v1814 = vunpack.c.l.b16 %v1551
        %v1815 = vunpack.c.l.b16 %v1552
        %v1816 = vunpack.c.l.b16 %v1553
        %v1817 = vunpack.c.l.b16 %v1554
        %v1818 = vunpack.c.l.b16 %v1555
        %v1819 = vunpack.c.l.b16 %v1556
        %v1820 = vunpack.c.l.b16 %v1557
        %v1821 = vunpack.c.l.b16 %v1558
        %v1822 = vunpack.c.l.b16 %v1559
        %v1823 = vunpack.c.l.b16 %v1560
        %v1824 = vunpack.c.l.b16 %v1561
        %v1825 = vunpack.c.l.b16 %v1562
        %v1826 = vunpack.c.l.b16 %v1563
        %v1827 = vunpack.c.l.b16 %v1564
        %v1828 = vunpack.c.l.b16 %v1565
        %v1829 = vunpack.c.l.b16 %v1566
        %v1830 = vunpack.c.l.b16 %v1567
        %v1831 = vunpack.c.l.b16 %v1568
        %v1832 = vunpack.c.l.b16 %v1569
        %v1833 = vunpack.c.l.b16 %v1570
        %v1834 = vunpack.c.l.b16 %v1571
        %v1835 = vunpack.c.l.b16 %v1572
        %v1836 = vunpack.c.l.b16 %v1573
        %v1837 = vunpack.c.l.b16 %v1574
        %v1838 = vunpack.c.l.b16 %v1575
        %v1839 = vunpack.c.l.b16 %v1576
        %v1840 = vunpack.c.l.b16 %v1577
        %v1841 = vunpack.c.l.b16 %v1578
        %v1842 = vunpack.c.l.b16 %v1579
        %v1843 = vunpack.c.l.b16 %v1580
        %v1844 = vunpack.c.l.b16 %v1581
        %v1845 = vunpack.c.l.b16 %v1582
        %v1846 = vunpack.c.l.b16 %v1583
        %v1847 = vunpack.c.l.b16 %v1584
        %v1848 = vunpack.c.l.b16 %v1585
        %v1849 = vunpack.c.l.b16 %v1586
        %v1850 = vunpack.c.l.b16 %v1587
        %v1851 = vunpack.c.l.b16 %v1588
        %v1852 = vunpack.c.l.b16 %v1589
        %v1853 = vunpack.c.l.b16 %v1590
        %v1854 = vunpack.c.l.b16 %v1591
        %v1855 = vunpack.c.l.b16 %v1592
        %v1856 = vunpack.c.l.b16 %v1593
        %v1857 = vunpack.c.l.b16 %v1594
        %v1858 = vunpack.c.l.b16 %v1595
        %v1859 = vunpack.c.l.b16 %v1596
        %v1860 = vunpack.c.l.b16 %v1597
        %v1861 = vunpack.c.l.b16 %v1598
        %v1862 = vunpack.c.l.b16 %v1599
        %v1863 = vunpack.c.l.b16 %v1600
        %v1864 = vunpack.c.l.b16 %v1601
        %v1865 = vunpack.c.l.b16 %v1602
        %v1866 = vunpack.c.l.b16 %v1603
        %v1867 = vunpack.c.l.b16 %v1604
        %v1868 = vunpack.c.l.b16 %v1605
        %v1869 = vunpack.c.l.b16 %v1606
        %v1870 = vunpack.c.l.b16 %v1607
        %v1871 = vunpack.c.l.b16 %v1608
        %v1872 = vunpack.c.l.b16 %v1609
        %v1873 = vunpack.c.l.b16 %v1610
        %v1874 = vunpack.c.l.b16 %v1611
        %v1875 = vunpack.c.l.b16 %v1612
        %v1876 = vunpack.c.l.b16 %v1613
        %v1877 = vunpack.c.l.b16 %v1614
        %v1878 = vunpack.c.l.b16 %v1615
        %v1879 = vunpack.c.l.b16 %v1616
        %v1880 = vunpack.c.l.b16 %v1617
        %v1881 = vunpack.c.l.b16 %v1618
        %v1882 = vunpack.c.l.b16 %v1619
        %v1883 = vunpack.c.l.b16 %v1620
        %v1884 = vunpack.c.l.b16 %v1621
        %v1885 = vunpack.c.l.b16 %v1622
        %v1886 = vunpack.c.l.b16 %v1623
        %v1887 = vunpack.c.l.b16 %v1624
        %v1888 = vunpack.c.l.b16 %v1625
        %v1889 = vunpack.c.l.b16 %v1626
        %v1890 = vpack.c.b16 %v1763, %v1762
        %v1891 = vpack.c.b16 %v1765, %v1764
        %v1892 = vpack.c.b16 %v1767, %v1766
        %v1893 = vpack.c.b16 %v1769, %v1768
        %v1894 = vpack.c.b16 %v1771, %v1770
        %v1895 = vpack.c.b16 %v1773, %v1772
        %v1896 = vpack.c.b16 %v1775, %v1774
        %v1897 = vpack.c.b16 %v1777, %v1776
        %v1898 = vpack.c.b16 %v1779, %v1778
        %v1899 = vpack.c.b16 %v1781, %v1780
        %v1900 = vpack.c.b16 %v1783, %v1782
        %v1901 = vpack.c.b16 %v1785, %v1784
        %v1902 = vpack.c.b16 %v1787, %v1786
        %v1903 = vpack.c.b16 %v1789, %v1788
        %v1904 = vpack.c.b16 %v1791, %v1790
        %v1905 = vpack.c.b16 %v1793, %v1792
        %v1906 = vpack.c.b16 %v1795, %v1794
        %v1907 = vpack.c.b16 %v1797, %v1796
        %v1908 = vpack.c.b16 %v1799, %v1798
        %v1909 = vpack.c.b16 %v1801, %v1800
        %v1910 = vpack.c.b16 %v1803, %v1802
        %v1911 = vpack.c.b16 %v1805, %v1804
        %v1912 = vpack.c.b16 %v1807, %v1806
        %v1913 = vpack.c.b16 %v1809, %v1808
        %v1914 = vpack.c.b16 %v1811, %v1810
        %v1915 = vpack.c.b16 %v1813, %v1812
        %v1916 = vpack.c.b16 %v1815, %v1814
        %v1917 = vpack.c.b16 %v1817, %v1816
        %v1918 = vpack.c.b16 %v1819, %v1818
        %v1919 = vpack.c.b16 %v1821, %v1820
        %v1920 = vpack.c.b16 %v1823, %v1822
        %v1921 = vpack.c.b16 %v1825, %v1824
        %v1922 = vpack.c.b16 %v1827, %v1826
        %v1923 = vpack.c.b16 %v1829, %v1828
        %v1924 = vpack.c.b16 %v1831, %v1830
        %v1925 = vpack.c.b16 %v1833, %v1832
        %v1926 = vpack.c.b16 %v1835, %v1834
        %v1927 = vpack.c.b16 %v1837, %v1836
        %v1928 = vpack.c.b16 %v1839, %v1838
        %v1929 = vpack.c.b16 %v1841, %v1840
        %v1930 = vpack.c.b16 %v1843, %v1842
        %v1931 = vpack.c.b16 %v1845, %v1844
        %v1932 = vpack.c.b16 %v1847, %v1846
        %v1933 = vpack.c.b16 %v1849, %v1848
        %v1934 = vpack.c.b16 %v1851, %v1850
        %v1935 = vpack.c.b16 %v1853, %v1852
        %v1936 = vpack.c.b16 %v1855, %v1854
        %v1937 = vpack.c.b16 %v1857, %v1856
        %v1938 = vpack.c.b16 %v1859, %v1858
        %v1939 = vpack.c.b16 %v1861, %v1860
        %v1940 = vpack.c.b16 %v1863, %v1862
        %v1941 = vpack.c.b16 %v1865, %v1864
        %v1942 = vpack.c.b16 %v1867, %v1866
        %v1943 = vpack.c.b16 %v1869, %v1868
        %v1944 = vpack.c.b16 %v1871, %v1870
        %v1945 = vpack.c.b16 %v1873, %v1872
        %v1946 = vpack.c.b16 %v1875, %v1874
        %v1947 = vpack.c.b16 %v1877, %v1876
        %v1948 = vpack.c.b16 %v1879, %v1878
        %v1949 = vpack.c.b16 %v1881, %v1880
        %v1950 = vpack.c.b16 %v1883, %v1882
        %v1951 = vpack.c.b16 %v1885, %v1884
        %v1952 = vpack.c.b16 %v1887, %v1886
        %v1953 = vpack.c.b16 %v1889, %v1888
        %2018 = vmatprep.subr.bf16.mxu0 0
        %2019 = vmatpush1.bf16.msra.mxu0 %v1890
        %2020 = vmatprep.subr.bf16.mxu0 0
        %2021 = vmatpush1.bf16.msra.mxu0 %v1891
        %2022 = vmatprep.subr.bf16.mxu0 0
        %2023 = vmatpush1.bf16.msra.mxu0 %v1892
        %2024 = vmatprep.subr.bf16.mxu0 0
        %2025 = vmatpush1.bf16.msra.mxu0 %v1893
        %2026 = vmatprep.subr.bf16.mxu0 0
        %2027 = vmatpush1.bf16.msra.mxu0 %v1894
        %2028 = vmatprep.subr.bf16.mxu0 0
        %2029 = vmatpush1.bf16.msra.mxu0 %v1895
        %2030 = vmatprep.subr.bf16.mxu0 0
        %2031 = vmatpush1.bf16.msra.mxu0 %v1896
        %2032 = vmatprep.subr.bf16.mxu0 0
        %2033 = vmatpush1.bf16.msra.mxu0 %v1897
        %2034 = vmatprep.subr.bf16.mxu0 0
        %2035 = vmatpush1.bf16.msra.mxu0 %v1898
        %2036 = vmatprep.subr.bf16.mxu0 0
        %2037 = vmatpush1.bf16.msra.mxu0 %v1899
        %2038 = vmatprep.subr.bf16.mxu0 0
        %2039 = vmatpush1.bf16.msra.mxu0 %v1900
        %2040 = vmatprep.subr.bf16.mxu0 0
        %2041 = vmatpush1.bf16.msra.mxu0 %v1901
        %2042 = vmatprep.subr.bf16.mxu0 0
        %2043 = vmatpush1.bf16.msra.mxu0 %v1902
        %2044 = vmatprep.subr.bf16.mxu0 0
        %2045 = vmatpush1.bf16.msra.mxu0 %v1903
        %2046 = vmatprep.subr.bf16.mxu0 0
        %2047 = vmatpush1.bf16.msra.mxu0 %v1904
        %2048 = vmatprep.subr.bf16.mxu0 0
        %2049 = vmatpush1.bf16.msra.mxu0 %v1905
        %2050 = vmatprep.mubr.bf16.mxu0 %v1492
        %2051 = vmatmul.mubr.bf16.gmra.mrb[0].mxu0 %v1491
        %v2052 = vpop.f32.mrb[0].mxu0
        %v2053 = vadd.f32 %v1632, %v2052
        %v2054 = vpop.f32.mrb[0].mxu0
        %v2055 = vpop.f32.mrb[0].mxu0
        %v2056 = vpop.f32.mrb[0].mxu0
        %2057 = vdwg.mxu0
        %2058 = vmatprep.subr.bf16.mxu0 0
        %2059 = vmatpush1.bf16.msra.mxu0 %v1906
        %2060 = vmatprep.subr.bf16.mxu0 0
        %2061 = vmatpush1.bf16.msra.mxu0 %v1907
        %2062 = vmatprep.subr.bf16.mxu0 0
        %2063 = vmatpush1.bf16.msra.mxu0 %v1908
        %2064 = vmatprep.subr.bf16.mxu0 0
        %2065 = vmatpush1.bf16.msra.mxu0 %v1909
        %2066 = vmatprep.subr.bf16.mxu0 0
        %2067 = vmatpush1.bf16.msra.mxu0 %v1910
        %2068 = vmatprep.subr.bf16.mxu0 0
        %2069 = vmatpush1.bf16.msra.mxu0 %v1911
        %2070 = vmatprep.subr.bf16.mxu0 0
        %2071 = vmatpush1.bf16.msra.mxu0 %v1912
        %2072 = vmatprep.subr.bf16.mxu0 0
        %2073 = vmatpush1.bf16.msra.mxu0 %v1913
        %2074 = vmatprep.subr.bf16.mxu0 0
        %2075 = vmatpush1.bf16.msra.mxu0 %v1914
        %2076 = vmatprep.subr.bf16.mxu0 0
        %2077 = vmatpush1.bf16.msra.mxu0 %v1915
        %2078 = vmatprep.subr.bf16.mxu0 0
        %2079 = vmatpush1.bf16.msra.mxu0 %v1916
        %2080 = vmatprep.subr.bf16.mxu0 0
        %2081 = vmatpush1.bf16.msra.mxu0 %v1917
        %2082 = vmatprep.subr.bf16.mxu0 0
        %2083 = vmatpush1.bf16.msra.mxu0 %v1918
        %2084 = vmatprep.subr.bf16.mxu0 0
        %2085 = vmatpush1.bf16.msra.mxu0 %v1919
        %2086 = vmatprep.subr.bf16.mxu0 0
        %2087 = vmatpush1.bf16.msra.mxu0 %v1920
        %2088 = vmatprep.subr.bf16.mxu0 0
        %2089 = vmatpush1.bf16.msra.mxu0 %v1921
        %2090 = vmatprep.mubr.bf16.mxu0 %v1494
        %2091 = vmatmul.mubr.bf16.gmra.mrb[0].mxu0 %v1493
        %v2092 = vpop.f32.mrb[0].mxu0
        %v2093 = vadd.f32 %v2053, %v2092
        %v2094 = vpop.f32.mrb[0].mxu0
        %v2095 = vpop.f32.mrb[0].mxu0
        %v2096 = vpop.f32.mrb[0].mxu0
        %2097 = vdwg.mxu0
        %2098 = vmatprep.subr.bf16.mxu0 0
        %2099 = vmatpush1.bf16.msra.mxu0 %v1922
        %2100 = vmatprep.subr.bf16.mxu0 0
        %2101 = vmatpush1.bf16.msra.mxu0 %v1923
        %2102 = vmatprep.subr.bf16.mxu0 0
        %2103 = vmatpush1.bf16.msra.mxu0 %v1924
        %2104 = vmatprep.subr.bf16.mxu0 0
        %2105 = vmatpush1.bf16.msra.mxu0 %v1925
        %2106 = vmatprep.subr.bf16.mxu0 0
        %2107 = vmatpush1.bf16.msra.mxu0 %v1926
        %2108 = vmatprep.subr.bf16.mxu0 0
        %2109 = vmatpush1.bf16.msra.mxu0 %v1927
        %2110 = vmatprep.subr.bf16.mxu0 0
        %2111 = vmatpush1.bf16.msra.mxu0 %v1928
        %2112 = vmatprep.subr.bf16.mxu0 0
        %2113 = vmatpush1.bf16.msra.mxu0 %v1929
        %2114 = vmatprep.subr.bf16.mxu0 0
        %2115 = vmatpush1.bf16.msra.mxu0 %v1930
        %2116 = vmatprep.subr.bf16.mxu0 0
        %2117 = vmatpush1.bf16.msra.mxu0 %v1931
        %2118 = vmatprep.subr.bf16.mxu0 0
        %2119 = vmatpush1.bf16.msra.mxu0 %v1932
        %2120 = vmatprep.subr.bf16.mxu0 0
        %2121 = vmatpush1.bf16.msra.mxu0 %v1933
        %2122 = vmatprep.subr.bf16.mxu0 0
        %2123 = vmatpush1.bf16.msra.mxu0 %v1934
        %2124 = vmatprep.subr.bf16.mxu0 0
        %2125 = vmatpush1.bf16.msra.mxu0 %v1935
        %2126 = vmatprep.subr.bf16.mxu0 0
        %2127 = vmatpush1.bf16.msra.mxu0 %v1936
        %2128 = vmatprep.subr.bf16.mxu0 0
        %2129 = vmatpush1.bf16.msra.mxu0 %v1937
        %2130 = vmatprep.mubr.bf16.mxu0 %v1496
        %2131 = vmatmul.mubr.bf16.gmra.mrb[0].mxu0 %v1495
        %v2132 = vpop.f32.mrb[0].mxu0
        %v2133 = vadd.f32 %v2093, %v2132
        %v2134 = vpop.f32.mrb[0].mxu0
        %v2135 = vpop.f32.mrb[0].mxu0
        %v2136 = vpop.f32.mrb[0].mxu0
        %2137 = vdwg.mxu0
        %2138 = vmatprep.subr.bf16.mxu0 0
        %2139 = vmatpush1.bf16.msra.mxu0 %v1938
        %2140 = vmatprep.subr.bf16.mxu0 0
        %2141 = vmatpush1.bf16.msra.mxu0 %v1939
        %2142 = vmatprep.subr.bf16.mxu0 0
        %2143 = vmatpush1.bf16.msra.mxu0 %v1940
        %2144 = vmatprep.subr.bf16.mxu0 0
        %2145 = vmatpush1.bf16.msra.mxu0 %v1941
        %2146 = vmatprep.subr.bf16.mxu0 0
        %2147 = vmatpush1.bf16.msra.mxu0 %v1942
        %2148 = vmatprep.subr.bf16.mxu0 0
        %2149 = vmatpush1.bf16.msra.mxu0 %v1943
        %2150 = vmatprep.subr.bf16.mxu0 0
        %2151 = vmatpush1.bf16.msra.mxu0 %v1944
        %2152 = vmatprep.subr.bf16.mxu0 0
        %2153 = vmatpush1.bf16.msra.mxu0 %v1945
        %2154 = vmatprep.subr.bf16.mxu0 0
        %2155 = vmatpush1.bf16.msra.mxu0 %v1946
        %2156 = vmatprep.subr.bf16.mxu0 0
        %2157 = vmatpush1.bf16.msra.mxu0 %v1947
        %2158 = vmatprep.subr.bf16.mxu0 0
        %2159 = vmatpush1.bf16.msra.mxu0 %v1948
        %2160 = vmatprep.subr.bf16.mxu0 0
        %2161 = vmatpush1.bf16.msra.mxu0 %v1949
        %2162 = vmatprep.subr.bf16.mxu0 0
        %2163 = vmatpush1.bf16.msra.mxu0 %v1950
        %2164 = vmatprep.subr.bf16.mxu0 0
        %2165 = vmatpush1.bf16.msra.mxu0 %v1951
        %2166 = vmatprep.subr.bf16.mxu0 0
        %2167 = vmatpush1.bf16.msra.mxu0 %v1952
        %2168 = vmatprep.subr.bf16.mxu0 0
        %2169 = vmatpush1.bf16.msra.mxu0 %v1953
        %2170 = vmatprep.mubr.bf16.mxu0 %v1498
        %2171 = vmatmul.mubr.bf16.gmra.mrb[0].mxu0 %v1497
        %v2172 = vpop.f32.mrb[0].mxu0
        %v2173 = vadd.f32 %v2133, %v2172
        %v2174 = vpop.f32.mrb[0].mxu0
        %v2175 = vpop.f32.mrb[0].mxu0
        %v2176 = vpop.f32.mrb[0].mxu0
        %2177 = vdwg.mxu0
        %v2178 = vadd.f32 %v792, %v2173
        %2179 = vst [vmem:[#allocation2] sm:$0xff] %v2178
        %p2180 = scmp.eq.s32.totalorder %s39, 1
        // Predicated region
        $region85: #{tpu_custom_call.1} parent=63 // pred_check
          %p2181 = pneg %p2180
        $region86: #{tpu_custom_call.1} parent=63 // pred_check_branch
          %2183 = sbr.rel (%p2181) target = $region88
        $region87: #{tpu_custom_call.1} parent=63 // pred_region
          %2184 = vst [vmem:[%s609] sm:$0xff] %v2178
        $region88: #{tpu_custom_call.1} parent=63 // pred_fallthru
          _
        %s2185 = sand.u32 %s340, 1
        %s2186 = scalar_lea.sflag [#allocation5], %s2185
        %s2187 = sand.u32 %s340, 1
        %s2188 = smul.addr %s2187, 8
        %s2189 = scalar_lea.vmem [#allocation11], %s2188
        // Predicated region
        $region89: #{tpu_custom_call.1} parent=63 // pred_check
          %p2190 = pneg %p350
        $region90: #{tpu_custom_call.1} parent=63 // pred_check_branch
          %2192 = sbr.rel (%p2190) target = $region92
        $region91: #{tpu_custom_call.1} parent=63 // pred_region
          %s2194 = ssub.s32 128, 128
          %2195 = vsyncadd %s2186, %s2194
          %s2196 = smul.addr %s38, 128
          %s2197 = scalar_lea.hbm %s11, %s2196
          %s2199 = sshll.u32 %s2189, 4
          %s2200 = int_to_ptr.vmem [resolvable:$true] %s2199
          %2202 = dma.vmem_to_hbm [thread:$0]  %s2200, 128, %s2197, %s2186
        $region92: #{tpu_custom_call.1} parent=63 // pred_fallthru
          _
      $region64: #{tpu_custom_call.1} parent=5 // pred_fallthru
        _
      %p2203 = scmp.le.s32.totalorder 2, %s29
      // Predicated region
      $region93: #{tpu_custom_call.1} parent=5 // pred_check
        %p2204 = pneg %p2203
      $region94: #{tpu_custom_call.1} parent=5 // pred_check_branch
        %2206 = sbr.rel (%p2204) target = $region96
      $region95: #{tpu_custom_call.1} parent=5 // pred_region
        %s2207 = ssub.s32 %s29, 2
        // Predicated region
        $region97: #{tpu_custom_call.1} parent=95 // pred_check
          %p2208 = pneg %p356
        $region98: #{tpu_custom_call.1} parent=95 // pred_check_branch
          %2210 = sbr.rel (%p2208) target = $region100
        $region99: #{tpu_custom_call.1} parent=95 // pred_region
          %s2211 = sand.u32 %s341, 1
          %s2212 = scalar_lea.sflag [#allocation5], %s2211
          %s2213 = sand.u32 %s341, 1
          %s2214 = smul.addr %s2213, 8
          %s2215 = scalar_lea.vmem [#allocation11], %s2214
          %2216 = dma.done %s2212, 128
        $region100: #{tpu_custom_call.1} parent=95 // pred_fallthru
          _
      $region96: #{tpu_custom_call.1} parent=5 // pred_fallthru
        _
    $region6: #{tpu_custom_call.1} parent=1 // loop_footer
      %s33 = sadd.s32 1, %s29
    $region7: #{tpu_custom_call.1} parent=1 // loop_footer_branch
      %28 = sbr.rel target = $region3
    $region8: #{tpu_custom_call.1} parent=1 // loop_exit
      _
    %2217 = vsyncpa [#allocation4], 1
    %s2218 = scalar_lea.sflag [#allocation4], 1
    %2219 = vsyncpa %s2218, 1
    %2220 = vsyncpa [#allocation7], 1
    %s2221 = scalar_lea.sflag [#allocation7], 1
    %2222 = vsyncpa %s2221, 1
    %2223 = vsyncpa [#allocation10], 1
    %s2224 = scalar_lea.sflag [#allocation10], 1
    %2225 = vsyncpa %s2224, 1
    %2226 = vsyncpa [#allocation5], 1
    %s2227 = scalar_lea.sflag [#allocation5], 1
    %2228 = vsyncpa %s2227, 1

</llo_original>
